<compile_context>
chip_gen: v5e
topology: v5e:2x2
jax: 0.10.0
libtpu: 0.0.40
codegen_flags: <defaults>
</compile_context>

<pallas_src>
import functools

import jax
import jax.numpy as jnp
from jax.experimental import pallas as pl
from jax.experimental.pallas import tpu as pltpu

# ---- model dims (synthetic, small stand-in for whisper-small encoder) ----
B = 2          # batch
N_MELS = 8     # mel bins (whisper: 80)
T_IN = 16      # input frames (whisper: 3000)
D_MODEL = 32   # hidden (whisper: 768)
N_HEADS = 4    # heads (whisper: 12)
HEAD_DIM = D_MODEL // N_HEADS
FFN_DIM = 64   # ffn (whisper: 3072)
N_LAYERS = 2   # layers (whisper: 12)
T_OUT = T_IN // 2  # conv2 has stride 2
LN_EPS = 1e-5

# Row tile for the row-parallel fused kernels.  At real Whisper-small dims
# (rows = B*1500) use 256; here 8 so even the toy problem exercises a
# multi-step, double-buffered, megacore-shardable grid.
TM_ROWS = 8
# Safe on every generation (v7x has only 64 MiB physical VMEM); raise per-chip
# when scaling to real dims.
VMEM_LIMIT = 32 * 1024 * 1024


def _cparams(*sem):
    return pltpu.CompilerParams(dimension_semantics=sem,
                                vmem_limit_bytes=VMEM_LIMIT)


def _row_tiles(rows):
    tm = TM_ROWS if rows % TM_ROWS == 0 else rows
    return tm, rows // tm


# ---------------- in-kernel math helpers ----------------
def _erf(x):
    # Abramowitz & Stegun 7.1.26, |err| <= 1.5e-7 (fp32-accurate), built only
    # from VPU/EUP ops (mul/add/div/exp) that are guaranteed to lower.
    p = 0.3275911
    a1, a2, a3, a4, a5 = (0.254829592, -0.284496736, 1.421413741,
                          -1.453152027, 1.061405429)
    s = jnp.where(x < 0.0, -1.0, 1.0)
    ax = jnp.abs(x)
    t = 1.0 / (1.0 + p * ax)
    poly = ((((a5 * t + a4) * t + a3) * t + a2) * t + a1) * t
    return s * (1.0 - poly * jnp.exp(-ax * ax))


def _gelu(x):
    # exact (erf-form) GELU, as in torch.nn.GELU() / Whisper "gelu"
    return 0.5 * x * (1.0 + _erf(x * 0.7071067811865476))


def _layernorm(x, g, b):
    mu = jnp.mean(x, axis=-1, keepdims=True)
    var = jnp.mean(jnp.square(x - mu), axis=-1, keepdims=True)
    return (x - mu) * jax.lax.rsqrt(var + LN_EPS) * g + b


# ---------------- conv front-end: fused tap-matmul + bias + GELU (+pos) ----
def _conv_kernel(x_ref, w_ref, b_ref, post_ref, o_ref, *, shifts, l_out):
    x = x_ref[0]                                    # (L_rows, C)
    d_out = o_ref.shape[-1]
    acc = jnp.zeros((l_out, d_out), jnp.float32)
    for t, sh in enumerate(shifts):                 # in-kernel tap accumulation
        acc = acc + jnp.dot(x[sh:sh + l_out, :], w_ref[t],
                            preferred_element_type=jnp.float32)
    o_ref[0] = _gelu(acc + b_ref[...]) + post_ref[...]


def conv1d_gelu(x_pad, w_taps, bias, post, *, shifts, l_out):
    """Conv1d as shifted-tap matmuls, fused with bias + exact GELU + `post`."""
    bsz, l_rows, c = x_pad.shape
    n_taps, cw, d_out = w_taps.shape
    return pl.pallas_call(
        functools.partial(_conv_kernel, shifts=shifts, l_out=l_out),
        out_shape=jax.ShapeDtypeStruct((bsz, l_out, d_out), jnp.float32),
        grid=(bsz,),
        in_specs=[
            pl.BlockSpec((1, l_rows, c), lambda i: (i, 0, 0)),
            pl.BlockSpec((n_taps, cw, d_out), lambda i: (0, 0, 0)),
            pl.BlockSpec((1, d_out), lambda i: (0, 0)),
            pl.BlockSpec((l_out, d_out), lambda i: (0, 0)),
        ],
        out_specs=pl.BlockSpec((1, l_out, d_out), lambda i: (i, 0, 0)),
        compiler_params=_cparams("parallel"),
    )(x_pad, w_taps, bias.reshape(1, d_out), post)


# ---------------- fused LN1 + Q/K/V projection ----------------
def _ln_qkv_kernel(x_ref, g_ref, b_ref, wq_ref, bq_ref, wk_ref, wv_ref, bv_ref,
                   q_ref, k_ref, v_ref):
    xn = _layernorm(x_ref[...], g_ref[...], b_ref[...])
    q_ref[...] = jnp.dot(xn, wq_ref[...],
                         preferred_element_type=jnp.float32) + bq_ref[...]
    # Whisper k_proj has bias=False
    k_ref[...] = jnp.dot(xn, wk_ref[...], preferred_element_type=jnp.float32)
    v_ref[...] = jnp.dot(xn, wv_ref[...],
                         preferred_element_type=jnp.float32) + bv_ref[...]


def ln_qkv(x, g, b, wq, bq, wk, wv, bv):
    rows, d = x.shape
    tm, nblk = _row_tiles(rows)
    row = lambda i: (i, 0)
    rep = lambda i: (0, 0)
    return pl.pallas_call(
        _ln_qkv_kernel,
        out_shape=tuple(jax.ShapeDtypeStruct((rows, d), jnp.float32)
                        for _ in range(3)),
        grid=(nblk,),
        in_specs=[
            pl.BlockSpec((tm, d), row),
            pl.BlockSpec((1, d), rep), pl.BlockSpec((1, d), rep),
            pl.BlockSpec((d, d), rep), pl.BlockSpec((1, d), rep),
            pl.BlockSpec((d, d), rep),
            pl.BlockSpec((d, d), rep), pl.BlockSpec((1, d), rep),
        ],
        out_specs=tuple(pl.BlockSpec((tm, d), row) for _ in range(3)),
        compiler_params=_cparams("parallel"),
    )(x, g.reshape(1, d), b.reshape(1, d),
      wq, bq.reshape(1, d), wk, wv, bv.reshape(1, d))


# ---------------- flash-style multi-head self-attention ----------------
def _mha_kernel(q_ref, k_ref, v_ref, o_ref, m_ref, l_ref, acc_ref,
                *, n_heads, head_dim, scale):
    kv = pl.program_id(1)

    @pl.when(kv == 0)
    def _init():
        m_ref[...] = jnp.full(m_ref.shape, -jnp.inf, jnp.float32)
        l_ref[...] = jnp.zeros(l_ref.shape, jnp.float32)
        acc_ref[...] = jnp.zeros(acc_ref.shape, jnp.float32)

    q = q_ref[0] * scale      # (Tq, D); Whisper scales q before the score matmul
    k = k_ref[0]              # (Tk, D)
    v = v_ref[0]
    # heads unrolled: pure 2-D MXU matmuls, lane-sliced out of the folded D dim
    for h in range(n_heads):
        sl = slice(h * head_dim, (h + 1) * head_dim)
        s = jnp.dot(q[:, sl], k[:, sl].T,
                    preferred_element_type=jnp.float32)           # (Tq, Tk)
        m_prev = m_ref[h]
        m_new = jnp.maximum(m_prev, jnp.max(s, axis=-1, keepdims=True))
        alpha = jnp.exp(m_prev - m_new)
        p = jnp.exp(s - m_new)
        l_ref[h] = alpha * l_ref[h] + jnp.sum(p, axis=-1, keepdims=True)
        acc_ref[h] = alpha * acc_ref[h] + jnp.dot(
            p, v[:, sl], preferred_element_type=jnp.float32)
        m_ref[h] = m_new

    @pl.when(kv == pl.num_programs(1) - 1)
    def _finalize():
        parts = [acc_ref[h] / l_ref[h] for h in range(n_heads)]
        o_ref[0] = jnp.concatenate(parts, axis=-1)


def mha_flash(q, k, v):
    bsz, t, d = q.shape
    tk = t          # kv tile; at real T=1500 pick 128/256 -> real online-softmax loop
    n_kv = t // tk
    scale = float(HEAD_DIM) ** -0.5
    cost = pl.CostEstimate(flops=4 * bsz * t * t * d,
                           transcendentals=2 * bsz * N_HEADS * t * t,
                           bytes_accessed=4 * 4 * bsz * t * d)
    return pl.pallas_call(
        functools.partial(_mha_kernel, n_heads=N_HEADS, head_dim=HEAD_DIM,
                          scale=scale),
        out_shape=jax.ShapeDtypeStruct((bsz, t, d), jnp.float32),
        grid=(bsz, n_kv),
        in_specs=[
            pl.BlockSpec((1, t, d), lambda b, j: (b, 0, 0)),
            pl.BlockSpec((1, tk, d), lambda b, j: (b, j, 0)),
            pl.BlockSpec((1, tk, d), lambda b, j: (b, j, 0)),
        ],
        out_specs=pl.BlockSpec((1, t, d), lambda b, j: (b, 0, 0)),
        scratch_shapes=[
            pltpu.VMEM((N_HEADS, t, 1), jnp.float32),        # running max
            pltpu.VMEM((N_HEADS, t, 1), jnp.float32),        # running denom
            pltpu.VMEM((N_HEADS, t, HEAD_DIM), jnp.float32),  # output accumulator
        ],
        compiler_params=_cparams("parallel", "arbitrary"),
        cost_estimate=cost,
    )(q, k, v)


# ---------------- fused O-projection + residual ----------------
def _oproj_res_kernel(x_ref, w_ref, b_ref, res_ref, o_ref):
    o_ref[...] = (res_ref[...] + b_ref[...]
                  + jnp.dot(x_ref[...], w_ref[...],
                            preferred_element_type=jnp.float32))


def oproj_residual(x, w, b, res):
    rows, d = x.shape
    tm, nblk = _row_tiles(rows)
    row = lambda i: (i, 0)
    rep = lambda i: (0, 0)
    return pl.pallas_call(
        _oproj_res_kernel,
        out_shape=jax.ShapeDtypeStruct((rows, d), jnp.float32),
        grid=(nblk,),
        in_specs=[pl.BlockSpec((tm, d), row), pl.BlockSpec((d, d), rep),
                  pl.BlockSpec((1, d), rep), pl.BlockSpec((tm, d), row)],
        out_specs=pl.BlockSpec((tm, d), row),
        compiler_params=_cparams("parallel"),
    )(x, w, b.reshape(1, d), res)


# ---------------- fused LN2 + FC1 + GELU + FC2 + residual ----------------
def _ln_ffn_res_kernel(x_ref, g_ref, b_ref, w1_ref, b1_ref, w2_ref, b2_ref,
                       o_ref):
    x = x_ref[...]
    xn = _layernorm(x, g_ref[...], b_ref[...])
    h1 = _gelu(jnp.dot(xn, w1_ref[...],
                       preferred_element_type=jnp.float32) + b1_ref[...])
    o_ref[...] = x + b2_ref[...] + jnp.dot(
        h1, w2_ref[...], preferred_element_type=jnp.float32)


def ln_ffn_residual(x, g, b, w1, b1, w2, b2):
    rows, d = x.shape
    f = w1.shape[1]
    tm, nblk = _row_tiles(rows)
    row = lambda i: (i, 0)
    rep = lambda i: (0, 0)
    cost = pl.CostEstimate(flops=4 * rows * d * f, transcendentals=2 * rows * f,
                           bytes_accessed=4 * (2 * rows * d + 2 * d * f))
    return pl.pallas_call(
        _ln_ffn_res_kernel,
        out_shape=jax.ShapeDtypeStruct((rows, d), jnp.float32),
        grid=(nblk,),
        in_specs=[
            pl.BlockSpec((tm, d), row),
            pl.BlockSpec((1, d), rep), pl.BlockSpec((1, d), rep),
            pl.BlockSpec((d, f), rep), pl.BlockSpec((1, f), rep),
            pl.BlockSpec((f, d), rep), pl.BlockSpec((1, d), rep),
        ],
        out_specs=pl.BlockSpec((tm, d), row),
        compiler_params=_cparams("parallel"),
        cost_estimate=cost,
    )(x, g.reshape(1, d), b.reshape(1, d),
      w1, b1.reshape(1, f), w2, b2.reshape(1, d))


# ---------------- final LayerNorm ----------------
def _ln_kernel(x_ref, g_ref, b_ref, o_ref):
    o_ref[...] = _layernorm(x_ref[...], g_ref[...], b_ref[...])


def layer_norm(x, g, b):
    rows, d = x.shape
    tm, nblk = _row_tiles(rows)
    row = lambda i: (i, 0)
    rep = lambda i: (0, 0)
    return pl.pallas_call(
        _ln_kernel,
        out_shape=jax.ShapeDtypeStruct((rows, d), jnp.float32),
        grid=(nblk,),
        in_specs=[pl.BlockSpec((tm, d), row), pl.BlockSpec((1, d), rep),
                  pl.BlockSpec((1, d), rep)],
        out_specs=pl.BlockSpec((tm, d), row),
        compiler_params=_cparams("parallel"),
    )(x, g.reshape(1, d), b.reshape(1, d))


# ---------------- params ----------------
def sinusoid_positions(length, channels):
    # Whisper's sinusoidal positional embedding init.
    half = channels // 2
    log_timescale_increment = jnp.log(10000.0) / (half - 1)
    inv_timescales = jnp.exp(
        -log_timescale_increment * jnp.arange(half, dtype=jnp.float32))
    scaled_time = (jnp.arange(length, dtype=jnp.float32)[:, None]
                   * inv_timescales[None, :])
    return jnp.concatenate([jnp.sin(scaled_time), jnp.cos(scaled_time)], axis=1)


def init_params(key):
    ks = iter(jax.random.split(key, 8 + 16 * N_LAYERS))
    nrm = lambda k, shape: 0.02 * jax.random.normal(k, shape, jnp.float32)
    params = {
        # conv weights kept in PyTorch Conv1d layout (out_ch, in_ch, kernel)
        "conv1_w": nrm(next(ks), (D_MODEL, N_MELS, 3)),
        "conv1_b": nrm(next(ks), (D_MODEL,)),
        "conv2_w": nrm(next(ks), (D_MODEL, D_MODEL, 3)),
        "conv2_b": nrm(next(ks), (D_MODEL,)),
        "pos_emb": sinusoid_positions(T_OUT, D_MODEL),
        "ln_f_g": jnp.ones((D_MODEL,), jnp.float32),
        "ln_f_b": jnp.zeros((D_MODEL,), jnp.float32),
        "layers": [],
    }
    for _ in range(N_LAYERS):
        params["layers"].append({
            "ln1_g": jnp.ones((D_MODEL,), jnp.float32),
            "ln1_b": jnp.zeros((D_MODEL,), jnp.float32),
            "q_w": nrm(next(ks), (D_MODEL, D_MODEL)), "q_b": nrm(next(ks), (D_MODEL,)),
            "k_w": nrm(next(ks), (D_MODEL, D_MODEL)),   # k_proj: bias=False in Whisper
            "v_w": nrm(next(ks), (D_MODEL, D_MODEL)), "v_b": nrm(next(ks), (D_MODEL,)),
            "o_w": nrm(next(ks), (D_MODEL, D_MODEL)), "o_b": nrm(next(ks), (D_MODEL,)),
            "ln2_g": jnp.ones((D_MODEL,), jnp.float32),
            "ln2_b": jnp.zeros((D_MODEL,), jnp.float32),
            "fc1_w": nrm(next(ks), (D_MODEL, FFN_DIM)), "fc1_b": nrm(next(ks), (FFN_DIM,)),
            "fc2_w": nrm(next(ks), (FFN_DIM, D_MODEL)), "fc2_b": nrm(next(ks), (D_MODEL,)),
        })
    return params


# ---------------- forward ----------------
def whisper_encoder_forward(x, params):
    """x: (B, N_MELS, T_IN) float32 -> (B, T_OUT, D_MODEL) last_hidden_state."""
    bsz = x.shape[0]

    # --- conv front-end, channels-last inside the kernels ---
    x_cl = jnp.transpose(x, (0, 2, 1))                       # (B, T_IN, N_MELS)
    x_pad = jnp.pad(x_cl, ((0, 0), (1, 1), (0, 0)))          # conv pad=1

    # conv1: k=3, stride=1, pad=1, GELU  (bias+GELU fused in kernel epilogue)
    w1t = jnp.transpose(params["conv1_w"], (2, 1, 0))        # (3, N_MELS, D)
    h = conv1d_gelu(x_pad, w1t, params["conv1_b"],
                    jnp.zeros((T_IN, D_MODEL), jnp.float32),
                    shifts=(0, 1, 2), l_out=T_IN)            # (B, T_IN, D)

    # conv2: k=3, stride=2, pad=1, GELU; sinusoidal positions fused in epilogue.
    # Stride-2 trick: pair-pack two frames into 2*D channels so taps become
    # contiguous shifted matmuls:
    #   out[t] = pairs[t]   @ [w0; w1]      (input rows 2t, 2t+1)
    #          + pairs[t+1] @ [w2; 0 ]      (input row  2t+2)
    h_pad = jnp.pad(h, ((0, 0), (1, 1), (0, 0)))             # (B, T_IN+2, D)
    h_pairs = h_pad.reshape(bsz, (T_IN + 2) // 2, 2 * D_MODEL)
    w2t = jnp.transpose(params["conv2_w"], (2, 1, 0))        # (3, D, D)
    w2_pair = jnp.stack(
        [jnp.concatenate([w2t[0], w2t[1]], axis=0),
         jnp.concatenate([w2t[2], jnp.zeros_like(w2t[2])], axis=0)],
        axis=0)                                              # (2, 2D, D)
    h = conv1d_gelu(h_pairs, w2_pair, params["conv2_b"], params["pos_emb"],
                    shifts=(0, 1), l_out=T_OUT)              # (B, T_OUT, D)

    # --- transformer encoder layers (dropout = identity in eval) ---
    rows = bsz * T_OUT
    hf = h.reshape(rows, D_MODEL)
    for lp in params["layers"]:
        q, k, v = ln_qkv(hf, lp["ln1_g"], lp["ln1_b"],
                         lp["q_w"], lp["q_b"], lp["k_w"], lp["v_w"], lp["v_b"])
        attn = mha_flash(q.reshape(bsz, T_OUT, D_MODEL),
                         k.reshape(bsz, T_OUT, D_MODEL),
                         v.reshape(bsz, T_OUT, D_MODEL))
        hf = oproj_residual(attn.reshape(rows, D_MODEL),
                            lp["o_w"], lp["o_b"], hf)
        hf = ln_ffn_residual(hf, lp["ln2_g"], lp["ln2_b"],
                             lp["fc1_w"], lp["fc1_b"], lp["fc2_w"], lp["fc2_b"])

    # final layer norm; layer=None path returns last_hidden_state
    hf = layer_norm(hf, params["ln_f_g"], params["ln_f_b"])
    return hf.reshape(bsz, T_OUT, D_MODEL)


if __name__ == "__main__":
    key = jax.random.PRNGKey(0)
    k_x, k_p = jax.random.split(key)
    x = jax.random.normal(k_x, (B, N_MELS, T_IN), jnp.float32)
    params = init_params(k_p)

    fwd = jax.jit(whisper_encoder_forward)
    out = fwd(x, params)
    jax.block_until_ready(out)

    assert out.shape == (B, T_OUT, D_MODEL), out.shape
    assert out.dtype == jnp.float32
    print("KERNEL_OK")
</pallas_src>

<mosaic_0001>
module attributes {stable_mosaic.version = 11 : i64} {
  func.func @_mha_kernel(%arg0: i32, %arg1: i32, %arg2: memref<1x8x32xf32, #tpu.memory_space<vmem>>, %arg3: memref<1x8x32xf32, #tpu.memory_space<vmem>>, %arg4: memref<1x8x32xf32, #tpu.memory_space<vmem>>, %arg5: memref<1x8x32xf32, #tpu.memory_space<vmem>>, %arg6: memref<4x8x1xf32, #tpu.memory_space<vmem>>, %arg7: memref<4x8x1xf32, #tpu.memory_space<vmem>>, %arg8: memref<4x8x8xf32, #tpu.memory_space<vmem>>) attributes {dimension_semantics = [#tpu.dimension_semantics<parallel>, #tpu.dimension_semantics<arbitrary>], iteration_bounds = array<i64: 2, 1>, scalar_prefetch = 0 : i64, scratch_operands = 3 : i64, tpu.core_type = #tpu.core_type<tc>, window_params = [{transform_indices = @transform_0, window_bounds = array<i64: 1, 8, 32>}, {transform_indices = @transform_1, window_bounds = array<i64: 1, 8, 32>}, {transform_indices = @transform_2, window_bounds = array<i64: 1, 8, 32>}, {transform_indices = @transform_3, window_bounds = array<i64: 1, 8, 32>}]} {
    %c0_i32 = arith.constant 0 : i32
    %0 = arith.cmpi eq, %arg1, %c0_i32 : i32
    %1 = arith.extui %0 : i1 to i32
    %c0_i32_0 = arith.constant 0 : i32
    %2 = arith.cmpi ne, %1, %c0_i32_0 : i32
    scf.if %2 {
      %cst_96 = arith.constant 0xFF800000 : f32
      %158 = vector.broadcast %cst_96 : f32 to vector<4x8x1xf32>
      %c0_97 = arith.constant 0 : index
      %c0_98 = arith.constant 0 : index
      %c0_99 = arith.constant 0 : index
      %159 = vector.load %arg6[%c0_97, %c0_98, %c0_99] : memref<4x8x1xf32, #tpu.memory_space<vmem>>, vector<4x8x1xf32>
      tpu.vector_store %arg6[%c0_97, %c0_98, %c0_99], %158 {strides = array<i32>} : memref<4x8x1xf32, #tpu.memory_space<vmem>>, vector<4x8x1xf32>,
      %cst_100 = arith.constant 0.000000e+00 : f32
      %160 = vector.broadcast %cst_100 : f32 to vector<4x8x1xf32>
      %c0_101 = arith.constant 0 : index
      %c0_102 = arith.constant 0 : index
      %c0_103 = arith.constant 0 : index
      %161 = vector.load %arg7[%c0_101, %c0_102, %c0_103] : memref<4x8x1xf32, #tpu.memory_space<vmem>>, vector<4x8x1xf32>
      tpu.vector_store %arg7[%c0_101, %c0_102, %c0_103], %160 {strides = array<i32>} : memref<4x8x1xf32, #tpu.memory_space<vmem>>, vector<4x8x1xf32>,
      %cst_104 = arith.constant 0.000000e+00 : f32
      %162 = vector.broadcast %cst_104 : f32 to vector<4x8x8xf32>
      %c0_105 = arith.constant 0 : index
      %c0_106 = arith.constant 0 : index
      %c0_107 = arith.constant 0 : index
      %163 = vector.load %arg8[%c0_105, %c0_106, %c0_107] : memref<4x8x8xf32, #tpu.memory_space<vmem>>, vector<4x8x8xf32>
      tpu.vector_store %arg8[%c0_105, %c0_106, %c0_107], %162 {strides = array<i32>} : memref<4x8x8xf32, #tpu.memory_space<vmem>>, vector<4x8x8xf32>,
    } else {
    }
    %c0 = arith.constant 0 : index
    %c0_1 = arith.constant 0 : index
    %c0_2 = arith.constant 0 : index
    %3 = vector.load %arg2[%c0, %c0_1, %c0_2] : memref<1x8x32xf32, #tpu.memory_space<vmem>>, vector<1x8x32xf32>
    %4 = vector.shape_cast %3 : vector<1x8x32xf32> to vector<8x32xf32>
    %cst = arith.constant 0.353553385 : f32
    %5 = vector.broadcast %cst : f32 to vector<8x32xf32>
    %6 = arith.mulf %4, %5 : vector<8x32xf32>
    %c0_3 = arith.constant 0 : index
    %c0_4 = arith.constant 0 : index
    %c0_5 = arith.constant 0 : index
    %7 = vector.load %arg3[%c0_3, %c0_4, %c0_5] : memref<1x8x32xf32, #tpu.memory_space<vmem>>, vector<1x8x32xf32>
    %8 = vector.shape_cast %7 : vector<1x8x32xf32> to vector<8x32xf32>
    %c0_6 = arith.constant 0 : index
    %c0_7 = arith.constant 0 : index
    %c0_8 = arith.constant 0 : index
    %9 = vector.load %arg4[%c0_6, %c0_7, %c0_8] : memref<1x8x32xf32, #tpu.memory_space<vmem>>, vector<1x8x32xf32>
    %10 = vector.shape_cast %9 : vector<1x8x32xf32> to vector<8x32xf32>
    %11 = vector.extract_strided_slice %6 {offsets = [0, 0], sizes = [8, 8], strides = [1, 1]} : vector<8x32xf32> to vector<8x8xf32>
    %12 = vector.extract_strided_slice %8 {offsets = [0, 0], sizes = [8, 8], strides = [1, 1]} : vector<8x32xf32> to vector<8x8xf32>
    %13 = tpu.transpose %12, [1, 0] : vector<8x8xf32> -> vector<8x8xf32>
    %cst_9 = arith.constant dense<0.000000e+00> : vector<8x8xf32>
    %14 = tpu.matmul %11, %13, %cst_9 {dimension_numbers = #tpu.dot_dimension_numbers<[1], [0], [0], [1], [0, 0, 1, 1], [], []>} : vector<8x8xf32>, vector<8x8xf32>, vector<8x8xf32> -> vector<8x8xf32>
    %c0_10 = arith.constant 0 : index
    %c0_11 = arith.constant 0 : index
    %c0_12 = arith.constant 0 : index
    %15 = vector.load %arg6[%c0_10, %c0_11, %c0_12] : memref<4x8x1xf32, #tpu.memory_space<vmem>>, vector<1x8x1xf32>
    %16 = vector.shape_cast %15 : vector<1x8x1xf32> to vector<8x1xf32>
    %cst_13 = arith.constant dense<0xFF800000> : vector<8xf32>
    %17 = vector.multi_reduction <maximumf>, %14, %cst_13 [1] : vector<8x8xf32> to vector<8xf32>
    %18 = vector.shape_cast %17 : vector<8xf32> to vector<8x1xf32>
    %19 = arith.maximumf %16, %18 : vector<8x1xf32>
    %20 = arith.subf %16, %19 : vector<8x1xf32>
    %21 = math.exp %20 : vector<8x1xf32>
    %22 = vector.broadcast %19 : vector<8x1xf32> to vector<8x8xf32>
    %23 = arith.subf %14, %22 : vector<8x8xf32>
    %24 = math.exp %23 : vector<8x8xf32>
    %c0_14 = arith.constant 0 : index
    %c0_15 = arith.constant 0 : index
    %c0_16 = arith.constant 0 : index
    %25 = vector.load %arg7[%c0_14, %c0_15, %c0_16] : memref<4x8x1xf32, #tpu.memory_space<vmem>>, vector<1x8x1xf32>
    %26 = vector.shape_cast %25 : vector<1x8x1xf32> to vector<8x1xf32>
    %27 = arith.mulf %21, %26 : vector<8x1xf32>
    %cst_17 = arith.constant dense<0.000000e+00> : vector<8xf32>
    %28 = vector.multi_reduction <add>, %24, %cst_17 [1] : vector<8x8xf32> to vector<8xf32>
    %29 = vector.shape_cast %28 : vector<8xf32> to vector<8x1xf32>
    %30 = arith.addf %27, %29 : vector<8x1xf32>
    %c0_18 = arith.constant 0 : index
    %c0_19 = arith.constant 0 : index
    %c0_20 = arith.constant 0 : index
    %31 = vector.load %arg7[%c0_18, %c0_19, %c0_20] : memref<4x8x1xf32, #tpu.memory_space<vmem>>, vector<1x8x1xf32>
    %32 = vector.shape_cast %31 : vector<1x8x1xf32> to vector<8x1xf32>
    %33 = vector.shape_cast %30 : vector<8x1xf32> to vector<1x8x1xf32>
    tpu.vector_store %arg7[%c0_18, %c0_19, %c0_20], %33 {strides = array<i32>} : memref<4x8x1xf32, #tpu.memory_space<vmem>>, vector<1x8x1xf32>,
    %c0_21 = arith.constant 0 : index
    %c0_22 = arith.constant 0 : index
    %c0_23 = arith.constant 0 : index
    %34 = vector.load %arg8[%c0_21, %c0_22, %c0_23] : memref<4x8x8xf32, #tpu.memory_space<vmem>>, vector<1x8x8xf32>
    %35 = vector.shape_cast %34 : vector<1x8x8xf32> to vector<8x8xf32>
    %36 = vector.broadcast %21 : vector<8x1xf32> to vector<8x8xf32>
    %37 = arith.mulf %36, %35 : vector<8x8xf32>
    %38 = vector.extract_strided_slice %10 {offsets = [0, 0], sizes = [8, 8], strides = [1, 1]} : vector<8x32xf32> to vector<8x8xf32>
    %cst_24 = arith.constant dense<0.000000e+00> : vector<8x8xf32>
    %39 = tpu.matmul %24, %38, %cst_24 {dimension_numbers = #tpu.dot_dimension_numbers<[1], [0], [0], [1], [0, 0, 1, 1], [], []>} : vector<8x8xf32>, vector<8x8xf32>, vector<8x8xf32> -> vector<8x8xf32>
    %40 = arith.addf %37, %39 : vector<8x8xf32>
    %c0_25 = arith.constant 0 : index
    %c0_26 = arith.constant 0 : index
    %c0_27 = arith.constant 0 : index
    %41 = vector.load %arg8[%c0_25, %c0_26, %c0_27] : memref<4x8x8xf32, #tpu.memory_space<vmem>>, vector<1x8x8xf32>
    %42 = vector.shape_cast %41 : vector<1x8x8xf32> to vector<8x8xf32>
    %43 = vector.shape_cast %40 : vector<8x8xf32> to vector<1x8x8xf32>
    tpu.vector_store %arg8[%c0_25, %c0_26, %c0_27], %43 {strides = array<i32>} : memref<4x8x8xf32, #tpu.memory_space<vmem>>, vector<1x8x8xf32>,
    %c0_28 = arith.constant 0 : index
    %c0_29 = arith.constant 0 : index
    %c0_30 = arith.constant 0 : index
    %44 = vector.load %arg6[%c0_28, %c0_29, %c0_30] : memref<4x8x1xf32, #tpu.memory_space<vmem>>, vector<1x8x1xf32>
    %45 = vector.shape_cast %44 : vector<1x8x1xf32> to vector<8x1xf32>
    %46 = vector.shape_cast %19 : vector<8x1xf32> to vector<1x8x1xf32>
    tpu.vector_store %arg6[%c0_28, %c0_29, %c0_30], %46 {strides = array<i32>} : memref<4x8x1xf32, #tpu.memory_space<vmem>>, vector<1x8x1xf32>,
    %47 = vector.extract_strided_slice %6 {offsets = [0, 8], sizes = [8, 8], strides = [1, 1]} : vector<8x32xf32> to vector<8x8xf32>
    %48 = vector.extract_strided_slice %8 {offsets = [0, 8], sizes = [8, 8], strides = [1, 1]} : vector<8x32xf32> to vector<8x8xf32>
    %49 = tpu.transpose %48, [1, 0] : vector<8x8xf32> -> vector<8x8xf32>
    %cst_31 = arith.constant dense<0.000000e+00> : vector<8x8xf32>
    %50 = tpu.matmul %47, %49, %cst_31 {dimension_numbers = #tpu.dot_dimension_numbers<[1], [0], [0], [1], [0, 0, 1, 1], [], []>} : vector<8x8xf32>, vector<8x8xf32>, vector<8x8xf32> -> vector<8x8xf32>
    %c1 = arith.constant 1 : index
    %c0_32 = arith.constant 0 : index
    %c0_33 = arith.constant 0 : index
    %51 = vector.load %arg6[%c1, %c0_32, %c0_33] : memref<4x8x1xf32, #tpu.memory_space<vmem>>, vector<1x8x1xf32>
    %52 = vector.shape_cast %51 : vector<1x8x1xf32> to vector<8x1xf32>
    %cst_34 = arith.constant dense<0xFF800000> : vector<8xf32>
    %53 = vector.multi_reduction <maximumf>, %50, %cst_34 [1] : vector<8x8xf32> to vector<8xf32>
    %54 = vector.shape_cast %53 : vector<8xf32> to vector<8x1xf32>
    %55 = arith.maximumf %52, %54 : vector<8x1xf32>
    %56 = arith.subf %52, %55 : vector<8x1xf32>
    %57 = math.exp %56 : vector<8x1xf32>
    %58 = vector.broadcast %55 : vector<8x1xf32> to vector<8x8xf32>
    %59 = arith.subf %50, %58 : vector<8x8xf32>
    %60 = math.exp %59 : vector<8x8xf32>
    %c1_35 = arith.constant 1 : index
    %c0_36 = arith.constant 0 : index
    %c0_37 = arith.constant 0 : index
    %61 = vector.load %arg7[%c1_35, %c0_36, %c0_37] : memref<4x8x1xf32, #tpu.memory_space<vmem>>, vector<1x8x1xf32>
    %62 = vector.shape_cast %61 : vector<1x8x1xf32> to vector<8x1xf32>
    %63 = arith.mulf %57, %62 : vector<8x1xf32>
    %cst_38 = arith.constant dense<0.000000e+00> : vector<8xf32>
    %64 = vector.multi_reduction <add>, %60, %cst_38 [1] : vector<8x8xf32> to vector<8xf32>
    %65 = vector.shape_cast %64 : vector<8xf32> to vector<8x1xf32>
    %66 = arith.addf %63, %65 : vector<8x1xf32>
    %c1_39 = arith.constant 1 : index
    %c0_40 = arith.constant 0 : index
    %c0_41 = arith.constant 0 : index
    %67 = vector.load %arg7[%c1_39, %c0_40, %c0_41] : memref<4x8x1xf32, #tpu.memory_space<vmem>>, vector<1x8x1xf32>
    %68 = vector.shape_cast %67 : vector<1x8x1xf32> to vector<8x1xf32>
    %69 = vector.shape_cast %66 : vector<8x1xf32> to vector<1x8x1xf32>
    tpu.vector_store %arg7[%c1_39, %c0_40, %c0_41], %69 {strides = array<i32>} : memref<4x8x1xf32, #tpu.memory_space<vmem>>, vector<1x8x1xf32>,
    %c1_42 = arith.constant 1 : index
    %c0_43 = arith.constant 0 : index
    %c0_44 = arith.constant 0 : index
    %70 = vector.load %arg8[%c1_42, %c0_43, %c0_44] : memref<4x8x8xf32, #tpu.memory_space<vmem>>, vector<1x8x8xf32>
    %71 = vector.shape_cast %70 : vector<1x8x8xf32> to vector<8x8xf32>
    %72 = vector.broadcast %57 : vector<8x1xf32> to vector<8x8xf32>
    %73 = arith.mulf %72, %71 : vector<8x8xf32>
    %74 = vector.extract_strided_slice %10 {offsets = [0, 8], sizes = [8, 8], strides = [1, 1]} : vector<8x32xf32> to vector<8x8xf32>
    %cst_45 = arith.constant dense<0.000000e+00> : vector<8x8xf32>
    %75 = tpu.matmul %60, %74, %cst_45 {dimension_numbers = #tpu.dot_dimension_numbers<[1], [0], [0], [1], [0, 0, 1, 1], [], []>} : vector<8x8xf32>, vector<8x8xf32>, vector<8x8xf32> -> vector<8x8xf32>
    %76 = arith.addf %73, %75 : vector<8x8xf32>
    %c1_46 = arith.constant 1 : index
    %c0_47 = arith.constant 0 : index
    %c0_48 = arith.constant 0 : index
    %77 = vector.load %arg8[%c1_46, %c0_47, %c0_48] : memref<4x8x8xf32, #tpu.memory_space<vmem>>, vector<1x8x8xf32>
    %78 = vector.shape_cast %77 : vector<1x8x8xf32> to vector<8x8xf32>
    %79 = vector.shape_cast %76 : vector<8x8xf32> to vector<1x8x8xf32>
    tpu.vector_store %arg8[%c1_46, %c0_47, %c0_48], %79 {strides = array<i32>} : memref<4x8x8xf32, #tpu.memory_space<vmem>>, vector<1x8x8xf32>,
    %c1_49 = arith.constant 1 : index
    %c0_50 = arith.constant 0 : index
    %c0_51 = arith.constant 0 : index
    %80 = vector.load %arg6[%c1_49, %c0_50, %c0_51] : memref<4x8x1xf32, #tpu.memory_space<vmem>>, vector<1x8x1xf32>
    %81 = vector.shape_cast %80 : vector<1x8x1xf32> to vector<8x1xf32>
    %82 = vector.shape_cast %55 : vector<8x1xf32> to vector<1x8x1xf32>
    tpu.vector_store %arg6[%c1_49, %c0_50, %c0_51], %82 {strides = array<i32>} : memref<4x8x1xf32, #tpu.memory_space<vmem>>, vector<1x8x1xf32>,
    %83 = vector.extract_strided_slice %6 {offsets = [0, 16], sizes = [8, 8], strides = [1, 1]} : vector<8x32xf32> to vector<8x8xf32>
    %84 = vector.extract_strided_slice %8 {offsets = [0, 16], sizes = [8, 8], strides = [1, 1]} : vector<8x32xf32> to vector<8x8xf32>
    %85 = tpu.transpose %84, [1, 0] : vector<8x8xf32> -> vector<8x8xf32>
    %cst_52 = arith.constant dense<0.000000e+00> : vector<8x8xf32>
    %86 = tpu.matmul %83, %85, %cst_52 {dimension_numbers = #tpu.dot_dimension_numbers<[1], [0], [0], [1], [0, 0, 1, 1], [], []>} : vector<8x8xf32>, vector<8x8xf32>, vector<8x8xf32> -> vector<8x8xf32>
    %c2 = arith.constant 2 : index
    %c0_53 = arith.constant 0 : index
    %c0_54 = arith.constant 0 : index
    %87 = vector.load %arg6[%c2, %c0_53, %c0_54] : memref<4x8x1xf32, #tpu.memory_space<vmem>>, vector<1x8x1xf32>
    %88 = vector.shape_cast %87 : vector<1x8x1xf32> to vector<8x1xf32>
    %cst_55 = arith.constant dense<0xFF800000> : vector<8xf32>
    %89 = vector.multi_reduction <maximumf>, %86, %cst_55 [1] : vector<8x8xf32> to vector<8xf32>
    %90 = vector.shape_cast %89 : vector<8xf32> to vector<8x1xf32>
    %91 = arith.maximumf %88, %90 : vector<8x1xf32>
    %92 = arith.subf %88, %91 : vector<8x1xf32>
    %93 = math.exp %92 : vector<8x1xf32>
    %94 = vector.broadcast %91 : vector<8x1xf32> to vector<8x8xf32>
    %95 = arith.subf %86, %94 : vector<8x8xf32>
    %96 = math.exp %95 : vector<8x8xf32>
    %c2_56 = arith.constant 2 : index
    %c0_57 = arith.constant 0 : index
    %c0_58 = arith.constant 0 : index
    %97 = vector.load %arg7[%c2_56, %c0_57, %c0_58] : memref<4x8x1xf32, #tpu.memory_space<vmem>>, vector<1x8x1xf32>
    %98 = vector.shape_cast %97 : vector<1x8x1xf32> to vector<8x1xf32>
    %99 = arith.mulf %93, %98 : vector<8x1xf32>
    %cst_59 = arith.constant dense<0.000000e+00> : vector<8xf32>
    %100 = vector.multi_reduction <add>, %96, %cst_59 [1] : vector<8x8xf32> to vector<8xf32>
    %101 = vector.shape_cast %100 : vector<8xf32> to vector<8x1xf32>
    %102 = arith.addf %99, %101 : vector<8x1xf32>
    %c2_60 = arith.constant 2 : index
    %c0_61 = arith.constant 0 : index
    %c0_62 = arith.constant 0 : index
    %103 = vector.load %arg7[%c2_60, %c0_61, %c0_62] : memref<4x8x1xf32, #tpu.memory_space<vmem>>, vector<1x8x1xf32>
    %104 = vector.shape_cast %103 : vector<1x8x1xf32> to vector<8x1xf32>
    %105 = vector.shape_cast %102 : vector<8x1xf32> to vector<1x8x1xf32>
    tpu.vector_store %arg7[%c2_60, %c0_61, %c0_62], %105 {strides = array<i32>} : memref<4x8x1xf32, #tpu.memory_space<vmem>>, vector<1x8x1xf32>,
    %c2_63 = arith.constant 2 : index
    %c0_64 = arith.constant 0 : index
    %c0_65 = arith.constant 0 : index
    %106 = vector.load %arg8[%c2_63, %c0_64, %c0_65] : memref<4x8x8xf32, #tpu.memory_space<vmem>>, vector<1x8x8xf32>
    %107 = vector.shape_cast %106 : vector<1x8x8xf32> to vector<8x8xf32>
    %108 = vector.broadcast %93 : vector<8x1xf32> to vector<8x8xf32>
    %109 = arith.mulf %108, %107 : vector<8x8xf32>
    %110 = vector.extract_strided_slice %10 {offsets = [0, 16], sizes = [8, 8], strides = [1, 1]} : vector<8x32xf32> to vector<8x8xf32>
    %cst_66 = arith.constant dense<0.000000e+00> : vector<8x8xf32>
    %111 = tpu.matmul %96, %110, %cst_66 {dimension_numbers = #tpu.dot_dimension_numbers<[1], [0], [0], [1], [0, 0, 1, 1], [], []>} : vector<8x8xf32>, vector<8x8xf32>, vector<8x8xf32> -> vector<8x8xf32>
    %112 = arith.addf %109, %111 : vector<8x8xf32>
    %c2_67 = arith.constant 2 : index
    %c0_68 = arith.constant 0 : index
    %c0_69 = arith.constant 0 : index
    %113 = vector.load %arg8[%c2_67, %c0_68, %c0_69] : memref<4x8x8xf32, #tpu.memory_space<vmem>>, vector<1x8x8xf32>
    %114 = vector.shape_cast %113 : vector<1x8x8xf32> to vector<8x8xf32>
    %115 = vector.shape_cast %112 : vector<8x8xf32> to vector<1x8x8xf32>
    tpu.vector_store %arg8[%c2_67, %c0_68, %c0_69], %115 {strides = array<i32>} : memref<4x8x8xf32, #tpu.memory_space<vmem>>, vector<1x8x8xf32>,
    %c2_70 = arith.constant 2 : index
    %c0_71 = arith.constant 0 : index
    %c0_72 = arith.constant 0 : index
    %116 = vector.load %arg6[%c2_70, %c0_71, %c0_72] : memref<4x8x1xf32, #tpu.memory_space<vmem>>, vector<1x8x1xf32>
    %117 = vector.shape_cast %116 : vector<1x8x1xf32> to vector<8x1xf32>
    %118 = vector.shape_cast %91 : vector<8x1xf32> to vector<1x8x1xf32>
    tpu.vector_store %arg6[%c2_70, %c0_71, %c0_72], %118 {strides = array<i32>} : memref<4x8x1xf32, #tpu.memory_space<vmem>>, vector<1x8x1xf32>,
    %119 = vector.extract_strided_slice %6 {offsets = [0, 24], sizes = [8, 8], strides = [1, 1]} : vector<8x32xf32> to vector<8x8xf32>
    %120 = vector.extract_strided_slice %8 {offsets = [0, 24], sizes = [8, 8], strides = [1, 1]} : vector<8x32xf32> to vector<8x8xf32>
    %121 = tpu.transpose %120, [1, 0] : vector<8x8xf32> -> vector<8x8xf32>
    %cst_73 = arith.constant dense<0.000000e+00> : vector<8x8xf32>
    %122 = tpu.matmul %119, %121, %cst_73 {dimension_numbers = #tpu.dot_dimension_numbers<[1], [0], [0], [1], [0, 0, 1, 1], [], []>} : vector<8x8xf32>, vector<8x8xf32>, vector<8x8xf32> -> vector<8x8xf32>
    %c3 = arith.constant 3 : index
    %c0_74 = arith.constant 0 : index
    %c0_75 = arith.constant 0 : index
    %123 = vector.load %arg6[%c3, %c0_74, %c0_75] : memref<4x8x1xf32, #tpu.memory_space<vmem>>, vector<1x8x1xf32>
    %124 = vector.shape_cast %123 : vector<1x8x1xf32> to vector<8x1xf32>
    %cst_76 = arith.constant dense<0xFF800000> : vector<8xf32>
    %125 = vector.multi_reduction <maximumf>, %122, %cst_76 [1] : vector<8x8xf32> to vector<8xf32>
    %126 = vector.shape_cast %125 : vector<8xf32> to vector<8x1xf32>
    %127 = arith.maximumf %124, %126 : vector<8x1xf32>
    %128 = arith.subf %124, %127 : vector<8x1xf32>
    %129 = math.exp %128 : vector<8x1xf32>
    %130 = vector.broadcast %127 : vector<8x1xf32> to vector<8x8xf32>
    %131 = arith.subf %122, %130 : vector<8x8xf32>
    %132 = math.exp %131 : vector<8x8xf32>
    %c3_77 = arith.constant 3 : index
    %c0_78 = arith.constant 0 : index
    %c0_79 = arith.constant 0 : index
    %133 = vector.load %arg7[%c3_77, %c0_78, %c0_79] : memref<4x8x1xf32, #tpu.memory_space<vmem>>, vector<1x8x1xf32>
    %134 = vector.shape_cast %133 : vector<1x8x1xf32> to vector<8x1xf32>
    %135 = arith.mulf %129, %134 : vector<8x1xf32>
    %cst_80 = arith.constant dense<0.000000e+00> : vector<8xf32>
    %136 = vector.multi_reduction <add>, %132, %cst_80 [1] : vector<8x8xf32> to vector<8xf32>
    %137 = vector.shape_cast %136 : vector<8xf32> to vector<8x1xf32>
    %138 = arith.addf %135, %137 : vector<8x1xf32>
    %c3_81 = arith.constant 3 : index
    %c0_82 = arith.constant 0 : index
    %c0_83 = arith.constant 0 : index
    %139 = vector.load %arg7[%c3_81, %c0_82, %c0_83] : memref<4x8x1xf32, #tpu.memory_space<vmem>>, vector<1x8x1xf32>
    %140 = vector.shape_cast %139 : vector<1x8x1xf32> to vector<8x1xf32>
    %141 = vector.shape_cast %138 : vector<8x1xf32> to vector<1x8x1xf32>
    tpu.vector_store %arg7[%c3_81, %c0_82, %c0_83], %141 {strides = array<i32>} : memref<4x8x1xf32, #tpu.memory_space<vmem>>, vector<1x8x1xf32>,
    %c3_84 = arith.constant 3 : index
    %c0_85 = arith.constant 0 : index
    %c0_86 = arith.constant 0 : index
    %142 = vector.load %arg8[%c3_84, %c0_85, %c0_86] : memref<4x8x8xf32, #tpu.memory_space<vmem>>, vector<1x8x8xf32>
    %143 = vector.shape_cast %142 : vector<1x8x8xf32> to vector<8x8xf32>
    %144 = vector.broadcast %129 : vector<8x1xf32> to vector<8x8xf32>
    %145 = arith.mulf %144, %143 : vector<8x8xf32>
    %146 = vector.extract_strided_slice %10 {offsets = [0, 24], sizes = [8, 8], strides = [1, 1]} : vector<8x32xf32> to vector<8x8xf32>
    %cst_87 = arith.constant dense<0.000000e+00> : vector<8x8xf32>
    %147 = tpu.matmul %132, %146, %cst_87 {dimension_numbers = #tpu.dot_dimension_numbers<[1], [0], [0], [1], [0, 0, 1, 1], [], []>} : vector<8x8xf32>, vector<8x8xf32>, vector<8x8xf32> -> vector<8x8xf32>
    %148 = arith.addf %145, %147 : vector<8x8xf32>
    %c3_88 = arith.constant 3 : index
    %c0_89 = arith.constant 0 : index
    %c0_90 = arith.constant 0 : index
    %149 = vector.load %arg8[%c3_88, %c0_89, %c0_90] : memref<4x8x8xf32, #tpu.memory_space<vmem>>, vector<1x8x8xf32>
    %150 = vector.shape_cast %149 : vector<1x8x8xf32> to vector<8x8xf32>
    %151 = vector.shape_cast %148 : vector<8x8xf32> to vector<1x8x8xf32>
    tpu.vector_store %arg8[%c3_88, %c0_89, %c0_90], %151 {strides = array<i32>} : memref<4x8x8xf32, #tpu.memory_space<vmem>>, vector<1x8x8xf32>,
    %c3_91 = arith.constant 3 : index
    %c0_92 = arith.constant 0 : index
    %c0_93 = arith.constant 0 : index
    %152 = vector.load %arg6[%c3_91, %c0_92, %c0_93] : memref<4x8x1xf32, #tpu.memory_space<vmem>>, vector<1x8x1xf32>
    %153 = vector.shape_cast %152 : vector<1x8x1xf32> to vector<8x1xf32>
    %154 = vector.shape_cast %127 : vector<8x1xf32> to vector<1x8x1xf32>
    tpu.vector_store %arg6[%c3_91, %c0_92, %c0_93], %154 {strides = array<i32>} : memref<4x8x1xf32, #tpu.memory_space<vmem>>, vector<1x8x1xf32>,
    %c0_i32_94 = arith.constant 0 : i32
    %155 = arith.cmpi eq, %arg1, %c0_i32_94 : i32
    %156 = arith.extui %155 : i1 to i32
    %c0_i32_95 = arith.constant 0 : i32
    %157 = arith.cmpi ne, %156, %c0_i32_95 : i32
    scf.if %157 {
      %c0_96 = arith.constant 0 : index
      %c0_97 = arith.constant 0 : index
      %c0_98 = arith.constant 0 : index
      %158 = vector.load %arg8[%c0_96, %c0_97, %c0_98] : memref<4x8x8xf32, #tpu.memory_space<vmem>>, vector<1x8x8xf32>
      %159 = vector.shape_cast %158 : vector<1x8x8xf32> to vector<8x8xf32>
      %c0_99 = arith.constant 0 : index
      %c0_100 = arith.constant 0 : index
      %c0_101 = arith.constant 0 : index
      %160 = vector.load %arg7[%c0_99, %c0_100, %c0_101] : memref<4x8x1xf32, #tpu.memory_space<vmem>>, vector<1x8x1xf32>
      %161 = vector.shape_cast %160 : vector<1x8x1xf32> to vector<8x1xf32>
      %162 = vector.broadcast %161 : vector<8x1xf32> to vector<8x8xf32>
      %163 = arith.divf %159, %162 : vector<8x8xf32>
      %c1_102 = arith.constant 1 : index
      %c0_103 = arith.constant 0 : index
      %c0_104 = arith.constant 0 : index
      %164 = vector.load %arg8[%c1_102, %c0_103, %c0_104] : memref<4x8x8xf32, #tpu.memory_space<vmem>>, vector<1x8x8xf32>
      %165 = vector.shape_cast %164 : vector<1x8x8xf32> to vector<8x8xf32>
      %c1_105 = arith.constant 1 : index
      %c0_106 = arith.constant 0 : index
      %c0_107 = arith.constant 0 : index
      %166 = vector.load %arg7[%c1_105, %c0_106, %c0_107] : memref<4x8x1xf32, #tpu.memory_space<vmem>>, vector<1x8x1xf32>
      %167 = vector.shape_cast %166 : vector<1x8x1xf32> to vector<8x1xf32>
      %168 = vector.broadcast %167 : vector<8x1xf32> to vector<8x8xf32>
      %169 = arith.divf %165, %168 : vector<8x8xf32>
      %c2_108 = arith.constant 2 : index
      %c0_109 = arith.constant 0 : index
      %c0_110 = arith.constant 0 : index
      %170 = vector.load %arg8[%c2_108, %c0_109, %c0_110] : memref<4x8x8xf32, #tpu.memory_space<vmem>>, vector<1x8x8xf32>
      %171 = vector.shape_cast %170 : vector<1x8x8xf32> to vector<8x8xf32>
      %c2_111 = arith.constant 2 : index
      %c0_112 = arith.constant 0 : index
      %c0_113 = arith.constant 0 : index
      %172 = vector.load %arg7[%c2_111, %c0_112, %c0_113] : memref<4x8x1xf32, #tpu.memory_space<vmem>>, vector<1x8x1xf32>
      %173 = vector.shape_cast %172 : vector<1x8x1xf32> to vector<8x1xf32>
      %174 = vector.broadcast %173 : vector<8x1xf32> to vector<8x8xf32>
      %175 = arith.divf %171, %174 : vector<8x8xf32>
      %c3_114 = arith.constant 3 : index
      %c0_115 = arith.constant 0 : index
      %c0_116 = arith.constant 0 : index
      %176 = vector.load %arg8[%c3_114, %c0_115, %c0_116] : memref<4x8x8xf32, #tpu.memory_space<vmem>>, vector<1x8x8xf32>
      %177 = vector.shape_cast %176 : vector<1x8x8xf32> to vector<8x8xf32>
      %c3_117 = arith.constant 3 : index
      %c0_118 = arith.constant 0 : index
      %c0_119 = arith.constant 0 : index
      %178 = vector.load %arg7[%c3_117, %c0_118, %c0_119] : memref<4x8x1xf32, #tpu.memory_space<vmem>>, vector<1x8x1xf32>
      %179 = vector.shape_cast %178 : vector<1x8x1xf32> to vector<8x1xf32>
      %180 = vector.broadcast %179 : vector<8x1xf32> to vector<8x8xf32>
      %181 = arith.divf %177, %180 : vector<8x8xf32>
      %182 = tpu.concatenate %163, %169, %175, %181 in 1 : vector<8x8xf32>, vector<8x8xf32>, vector<8x8xf32>, vector<8x8xf32> -> vector<8x32xf32>
      %c0_120 = arith.constant 0 : index
      %c0_121 = arith.constant 0 : index
      %c0_122 = arith.constant 0 : index
      %183 = vector.load %arg5[%c0_120, %c0_121, %c0_122] : memref<1x8x32xf32, #tpu.memory_space<vmem>>, vector<1x8x32xf32>
      %184 = vector.shape_cast %183 : vector<1x8x32xf32> to vector<8x32xf32>
      %185 = vector.shape_cast %182 : vector<8x32xf32> to vector<1x8x32xf32>
      tpu.vector_store %arg5[%c0_120, %c0_121, %c0_122], %185 {strides = array<i32>} : memref<1x8x32xf32, #tpu.memory_space<vmem>>, vector<1x8x32xf32>,
    } else {
    }
    return
  }
  func.func @transform_0(%arg0: i32, %arg1: i32) -> (i32, i32, i32) {
    %c0_i32 = arith.constant 0 : i32
    %c0_i32_0 = arith.constant 0 : i32
    %c0_i32_1 = arith.constant 0 : i32
    return %arg0, %c0_i32, %c0_i32_0 : i32, i32, i32
  }
  func.func @transform_1(%arg0: i32, %arg1: i32) -> (i32, i32, i32) {
    %c0_i32 = arith.constant 0 : i32
    %c0_i32_0 = arith.constant 0 : i32
    return %arg0, %arg1, %c0_i32 : i32, i32, i32
  }
  func.func @transform_2(%arg0: i32, %arg1: i32) -> (i32, i32, i32) {
    %c0_i32 = arith.constant 0 : i32
    %c0_i32_0 = arith.constant 0 : i32
    return %arg0, %arg1, %c0_i32 : i32, i32, i32
  }
  func.func @transform_3(%arg0: i32, %arg1: i32) -> (i32, i32, i32) {
    %c0_i32 = arith.constant 0 : i32
    %c0_i32_0 = arith.constant 0 : i32
    %c0_i32_1 = arith.constant 0 : i32
    return %arg0, %c0_i32, %c0_i32_0 : i32, i32, i32
  }
}

module attributes {stable_mosaic.version = 11 : i64} {
  func.func @_conv_kernel(%arg0: i32, %arg1: memref<1x18x8xf32, #tpu.memory_space<vmem>>, %arg2: memref<3x8x32xf32, #tpu.memory_space<vmem>>, %arg3: memref<1x32xf32, #tpu.memory_space<vmem>>, %arg4: memref<16x32xf32, #tpu.memory_space<vmem>>, %arg5: memref<1x16x32xf32, #tpu.memory_space<vmem>>) attributes {dimension_semantics = [#tpu.dimension_semantics<parallel>], iteration_bounds = array<i64: 2>, scalar_prefetch = 0 : i64, scratch_operands = 0 : i64, tpu.core_type = #tpu.core_type<tc>, window_params = [{transform_indices = @transform_0, window_bounds = array<i64: 1, 18, 8>}, {pipeline_mode = #tpu.pipeline_mode<synchronous>, transform_indices = @transform_1, window_bounds = array<i64: 3, 8, 32>}, {pipeline_mode = #tpu.pipeline_mode<synchronous>, transform_indices = @transform_2, window_bounds = array<i64: 1, 32>}, {pipeline_mode = #tpu.pipeline_mode<synchronous>, transform_indices = @transform_3, window_bounds = array<i64: 16, 32>}, {transform_indices = @transform_4, window_bounds = array<i64: 1, 16, 32>}]} {
    %c0 = arith.constant 0 : index
    %c0_0 = arith.constant 0 : index
    %c0_1 = arith.constant 0 : index
    %0 = vector.load %arg1[%c0, %c0_0, %c0_1] : memref<1x18x8xf32, #tpu.memory_space<vmem>>, vector<1x18x8xf32>
    %1 = vector.shape_cast %0 : vector<1x18x8xf32> to vector<18x8xf32>
    %cst = arith.constant 0.000000e+00 : f32
    %2 = vector.broadcast %cst : f32 to vector<16x32xf32>
    %3 = vector.extract_strided_slice %1 {offsets = [0, 0], sizes = [16, 8], strides = [1, 1]} : vector<18x8xf32> to vector<16x8xf32>
    %c0_2 = arith.constant 0 : index
    %c0_3 = arith.constant 0 : index
    %c0_4 = arith.constant 0 : index
    %4 = vector.load %arg2[%c0_2, %c0_3, %c0_4] : memref<3x8x32xf32, #tpu.memory_space<vmem>>, vector<1x8x32xf32>
    %5 = vector.shape_cast %4 : vector<1x8x32xf32> to vector<8x32xf32>
    %cst_5 = arith.constant dense<0.000000e+00> : vector<16x32xf32>
    %6 = tpu.matmul %3, %5, %cst_5 {dimension_numbers = #tpu.dot_dimension_numbers<[1], [0], [0], [1], [0, 0, 1, 1], [], []>} : vector<16x8xf32>, vector<8x32xf32>, vector<16x32xf32> -> vector<16x32xf32>
    %7 = arith.addf %2, %6 : vector<16x32xf32>
    %8 = vector.extract_strided_slice %1 {offsets = [1, 0], sizes = [16, 8], strides = [1, 1]} : vector<18x8xf32> to vector<16x8xf32>
    %c1 = arith.constant 1 : index
    %c0_6 = arith.constant 0 : index
    %c0_7 = arith.constant 0 : index
    %9 = vector.load %arg2[%c1, %c0_6, %c0_7] : memref<3x8x32xf32, #tpu.memory_space<vmem>>, vector<1x8x32xf32>
    %10 = vector.shape_cast %9 : vector<1x8x32xf32> to vector<8x32xf32>
    %cst_8 = arith.constant dense<0.000000e+00> : vector<16x32xf32>
    %11 = tpu.matmul %8, %10, %cst_8 {dimension_numbers = #tpu.dot_dimension_numbers<[1], [0], [0], [1], [0, 0, 1, 1], [], []>} : vector<16x8xf32>, vector<8x32xf32>, vector<16x32xf32> -> vector<16x32xf32>
    %12 = arith.addf %7, %11 : vector<16x32xf32>
    %13 = vector.extract_strided_slice %1 {offsets = [2, 0], sizes = [16, 8], strides = [1, 1]} : vector<18x8xf32> to vector<16x8xf32>
    %c2 = arith.constant 2 : index
    %c0_9 = arith.constant 0 : index
    %c0_10 = arith.constant 0 : index
    %14 = vector.load %arg2[%c2, %c0_9, %c0_10] : memref<3x8x32xf32, #tpu.memory_space<vmem>>, vector<1x8x32xf32>
    %15 = vector.shape_cast %14 : vector<1x8x32xf32> to vector<8x32xf32>
    %cst_11 = arith.constant dense<0.000000e+00> : vector<16x32xf32>
    %16 = tpu.matmul %13, %15, %cst_11 {dimension_numbers = #tpu.dot_dimension_numbers<[1], [0], [0], [1], [0, 0, 1, 1], [], []>} : vector<16x8xf32>, vector<8x32xf32>, vector<16x32xf32> -> vector<16x32xf32>
    %17 = arith.addf %12, %16 : vector<16x32xf32>
    %c0_12 = arith.constant 0 : index
    %c0_13 = arith.constant 0 : index
    %18 = vector.load %arg3[%c0_12, %c0_13] : memref<1x32xf32, #tpu.memory_space<vmem>>, vector<1x32xf32>
    %19 = vector.broadcast %18 : vector<1x32xf32> to vector<16x32xf32>
    %20 = arith.addf %17, %19 : vector<16x32xf32>
    %cst_14 = arith.constant 5.000000e-01 : f32
    %21 = vector.broadcast %cst_14 : f32 to vector<16x32xf32>
    %22 = arith.mulf %21, %20 : vector<16x32xf32>
    %cst_15 = arith.constant 0.707106769 : f32
    %23 = vector.broadcast %cst_15 : f32 to vector<16x32xf32>
    %24 = arith.mulf %20, %23 : vector<16x32xf32>
    %cst_16 = arith.constant 0.000000e+00 : f32
    %25 = vector.broadcast %cst_16 : f32 to vector<16x32xf32>
    %26 = arith.cmpf olt, %24, %25 : vector<16x32xf32>
    %cst_17 = arith.constant -1.000000e+00 : f32
    %cst_18 = arith.constant 1.000000e+00 : f32
    %27 = vector.broadcast %cst_17 : f32 to vector<16x32xf32>
    %28 = vector.broadcast %cst_18 : f32 to vector<16x32xf32>
    %29 = arith.select %26, %27, %28 : vector<16x32xi1>, vector<16x32xf32>
    %30 = math.absf %24 : vector<16x32xf32>
    %cst_19 = arith.constant 0.327591091 : f32
    %31 = vector.broadcast %cst_19 : f32 to vector<16x32xf32>
    %32 = arith.mulf %31, %30 : vector<16x32xf32>
    %cst_20 = arith.constant 1.000000e+00 : f32
    %33 = vector.broadcast %cst_20 : f32 to vector<16x32xf32>
    %34 = arith.addf %33, %32 : vector<16x32xf32>
    %cst_21 = arith.constant 1.000000e+00 : f32
    %35 = vector.broadcast %cst_21 : f32 to vector<16x32xf32>
    %36 = arith.divf %35, %34 : vector<16x32xf32>
    %cst_22 = arith.constant 1.06140542 : f32
    %37 = vector.broadcast %cst_22 : f32 to vector<16x32xf32>
    %38 = arith.mulf %37, %36 : vector<16x32xf32>
    %cst_23 = arith.constant -1.45315206 : f32
    %39 = vector.broadcast %cst_23 : f32 to vector<16x32xf32>
    %40 = arith.addf %38, %39 : vector<16x32xf32>
    %41 = arith.mulf %40, %36 : vector<16x32xf32>
    %cst_24 = arith.constant 1.42141378 : f32
    %42 = vector.broadcast %cst_24 : f32 to vector<16x32xf32>
    %43 = arith.addf %41, %42 : vector<16x32xf32>
    %44 = arith.mulf %43, %36 : vector<16x32xf32>
    %cst_25 = arith.constant -0.284496725 : f32
    %45 = vector.broadcast %cst_25 : f32 to vector<16x32xf32>
    %46 = arith.addf %44, %45 : vector<16x32xf32>
    %47 = arith.mulf %46, %36 : vector<16x32xf32>
    %cst_26 = arith.constant 0.254829586 : f32
    %48 = vector.broadcast %cst_26 : f32 to vector<16x32xf32>
    %49 = arith.addf %47, %48 : vector<16x32xf32>
    %50 = arith.mulf %49, %36 : vector<16x32xf32>
    %cst_27 = arith.constant 0.000000e+00 : f32
    %51 = vector.broadcast %cst_27 : f32 to vector<16x32xf32>
    %52 = arith.subf %51, %30 : vector<16x32xf32>
    %53 = arith.mulf %52, %30 : vector<16x32xf32>
    %54 = math.exp %53 : vector<16x32xf32>
    %55 = arith.mulf %50, %54 : vector<16x32xf32>
    %cst_28 = arith.constant 1.000000e+00 : f32
    %56 = vector.broadcast %cst_28 : f32 to vector<16x32xf32>
    %57 = arith.subf %56, %55 : vector<16x32xf32>
    %58 = arith.mulf %29, %57 : vector<16x32xf32>
    %cst_29 = arith.constant 1.000000e+00 : f32
    %59 = vector.broadcast %cst_29 : f32 to vector<16x32xf32>
    %60 = arith.addf %59, %58 : vector<16x32xf32>
    %61 = arith.mulf %22, %60 : vector<16x32xf32>
    %c0_30 = arith.constant 0 : index
    %c0_31 = arith.constant 0 : index
    %62 = vector.load %arg4[%c0_30, %c0_31] : memref<16x32xf32, #tpu.memory_space<vmem>>, vector<16x32xf32>
    %63 = arith.addf %61, %62 : vector<16x32xf32>
    %c0_32 = arith.constant 0 : index
    %c0_33 = arith.constant 0 : index
    %c0_34 = arith.constant 0 : index
    %64 = vector.load %arg5[%c0_32, %c0_33, %c0_34] : memref<1x16x32xf32, #tpu.memory_space<vmem>>, vector<1x16x32xf32>
    %65 = vector.shape_cast %64 : vector<1x16x32xf32> to vector<16x32xf32>
    %66 = vector.shape_cast %63 : vector<16x32xf32> to vector<1x16x32xf32>
    tpu.vector_store %arg5[%c0_32, %c0_33, %c0_34], %66 {strides = array<i32>} : memref<1x16x32xf32, #tpu.memory_space<vmem>>, vector<1x16x32xf32>,
    return
  }
  func.func @transform_0(%arg0: i32) -> (i32, i32, i32) {
    %c0_i32 = arith.constant 0 : i32
    %c0_i32_0 = arith.constant 0 : i32
    %c0_i32_1 = arith.constant 0 : i32
    return %arg0, %c0_i32, %c0_i32_0 : i32, i32, i32
  }
  func.func @transform_1(%arg0: i32) -> (i32, i32, i32) {
    %c0_i32 = arith.constant 0 : i32
    %c0_i32_0 = arith.constant 0 : i32
    %c0_i32_1 = arith.constant 0 : i32
    %c0_i32_2 = arith.constant 0 : i32
    return %c0_i32, %c0_i32_0, %c0_i32_1 : i32, i32, i32
  }
  func.func @transform_2(%arg0: i32) -> (i32, i32) {
    %c0_i32 = arith.constant 0 : i32
    %c0_i32_0 = arith.constant 0 : i32
    %c0_i32_1 = arith.constant 0 : i32
    return %c0_i32, %c0_i32_0 : i32, i32
  }
  func.func @transform_3(%arg0: i32) -> (i32, i32) {
    %c0_i32 = arith.constant 0 : i32
    %c0_i32_0 = arith.constant 0 : i32
    %c0_i32_1 = arith.constant 0 : i32
    return %c0_i32, %c0_i32_0 : i32, i32
  }
  func.func @transform_4(%arg0: i32) -> (i32, i32, i32) {
    %c0_i32 = arith.constant 0 : i32
    %c0_i32_0 = arith.constant 0 : i32
    %c0_i32_1 = arith.constant 0 : i32
    return %arg0, %c0_i32, %c0_i32_0 : i32, i32, i32
  }
}

module attributes {stable_mosaic.version = 11 : i64} {
  func.func @_ln_qkv_kernel(%arg0: i32, %arg1: memref<8x32xf32, #tpu.memory_space<vmem>>, %arg2: memref<1x32xf32, #tpu.memory_space<vmem>>, %arg3: memref<1x32xf32, #tpu.memory_space<vmem>>, %arg4: memref<32x32xf32, #tpu.memory_space<vmem>>, %arg5: memref<1x32xf32, #tpu.memory_space<vmem>>, %arg6: memref<32x32xf32, #tpu.memory_space<vmem>>, %arg7: memref<32x32xf32, #tpu.memory_space<vmem>>, %arg8: memref<1x32xf32, #tpu.memory_space<vmem>>, %arg9: memref<8x32xf32, #tpu.memory_space<vmem>>, %arg10: memref<8x32xf32, #tpu.memory_space<vmem>>, %arg11: memref<8x32xf32, #tpu.memory_space<vmem>>) attributes {dimension_semantics = [#tpu.dimension_semantics<parallel>], iteration_bounds = array<i64: 2>, scalar_prefetch = 0 : i64, scratch_operands = 0 : i64, tpu.core_type = #tpu.core_type<tc>, window_params = [{transform_indices = @transform_0, window_bounds = array<i64: 8, 32>}, {pipeline_mode = #tpu.pipeline_mode<synchronous>, transform_indices = @transform_1, window_bounds = array<i64: 1, 32>}, {pipeline_mode = #tpu.pipeline_mode<synchronous>, transform_indices = @transform_2, window_bounds = array<i64: 1, 32>}, {pipeline_mode = #tpu.pipeline_mode<synchronous>, transform_indices = @transform_3, window_bounds = array<i64: 32, 32>}, {pipeline_mode = #tpu.pipeline_mode<synchronous>, transform_indices = @transform_4, window_bounds = array<i64: 1, 32>}, {pipeline_mode = #tpu.pipeline_mode<synchronous>, transform_indices = @transform_5, window_bounds = array<i64: 32, 32>}, {pipeline_mode = #tpu.pipeline_mode<synchronous>, transform_indices = @transform_6, window_bounds = array<i64: 32, 32>}, {pipeline_mode = #tpu.pipeline_mode<synchronous>, transform_indices = @transform_7, window_bounds = array<i64: 1, 32>}, {transform_indices = @transform_8, window_bounds = array<i64: 8, 32>}, {transform_indices = @transform_9, window_bounds = array<i64: 8, 32>}, {transform_indices = @transform_10, window_bounds = array<i64: 8, 32>}]} {
    %c0 = arith.constant 0 : index
    %c0_0 = arith.constant 0 : index
    %0 = vector.load %arg1[%c0, %c0_0] : memref<8x32xf32, #tpu.memory_space<vmem>>, vector<8x32xf32>
    %c0_1 = arith.constant 0 : index
    %c0_2 = arith.constant 0 : index
    %1 = vector.load %arg2[%c0_1, %c0_2] : memref<1x32xf32, #tpu.memory_space<vmem>>, vector<1x32xf32>
    %c0_3 = arith.constant 0 : index
    %c0_4 = arith.constant 0 : index
    %2 = vector.load %arg3[%c0_3, %c0_4] : memref<1x32xf32, #tpu.memory_space<vmem>>, vector<1x32xf32>
    %cst = arith.constant dense<0.000000e+00> : vector<8xf32>
    %3 = vector.multi_reduction <add>, %0, %cst [1] : vector<8x32xf32> to vector<8xf32>
    %4 = vector.shape_cast %3 : vector<8xf32> to vector<8x1xf32>
    %cst_5 = arith.constant 3.200000e+01 : f32
    %5 = vector.broadcast %cst_5 : f32 to vector<8x1xf32>
    %6 = arith.divf %4, %5 : vector<8x1xf32>
    %7 = vector.broadcast %6 : vector<8x1xf32> to vector<8x32xf32>
    %8 = arith.subf %0, %7 : vector<8x32xf32>
    %9 = arith.mulf %8, %8 : vector<8x32xf32>
    %cst_6 = arith.constant dense<0.000000e+00> : vector<8xf32>
    %10 = vector.multi_reduction <add>, %9, %cst_6 [1] : vector<8x32xf32> to vector<8xf32>
    %11 = vector.shape_cast %10 : vector<8xf32> to vector<8x1xf32>
    %cst_7 = arith.constant 3.200000e+01 : f32
    %12 = vector.broadcast %cst_7 : f32 to vector<8x1xf32>
    %13 = arith.divf %11, %12 : vector<8x1xf32>
    %14 = vector.broadcast %6 : vector<8x1xf32> to vector<8x32xf32>
    %15 = arith.subf %0, %14 : vector<8x32xf32>
    %cst_8 = arith.constant 9.99999974E-6 : f32
    %16 = vector.broadcast %cst_8 : f32 to vector<8x1xf32>
    %17 = arith.addf %13, %16 : vector<8x1xf32>
    %18 = math.rsqrt %17 : vector<8x1xf32>
    %19 = vector.broadcast %18 : vector<8x1xf32> to vector<8x32xf32>
    %20 = arith.mulf %15, %19 : vector<8x32xf32>
    %21 = vector.broadcast %1 : vector<1x32xf32> to vector<8x32xf32>
    %22 = arith.mulf %20, %21 : vector<8x32xf32>
    %23 = vector.broadcast %2 : vector<1x32xf32> to vector<8x32xf32>
    %24 = arith.addf %22, %23 : vector<8x32xf32>
    %c0_9 = arith.constant 0 : index
    %c0_10 = arith.constant 0 : index
    %25 = vector.load %arg4[%c0_9, %c0_10] : memref<32x32xf32, #tpu.memory_space<vmem>>, vector<32x32xf32>
    %cst_11 = arith.constant dense<0.000000e+00> : vector<8x32xf32>
    %26 = tpu.matmul %24, %25, %cst_11 {dimension_numbers = #tpu.dot_dimension_numbers<[1], [0], [0], [1], [0, 0, 1, 1], [], []>} : vector<8x32xf32>, vector<32x32xf32>, vector<8x32xf32> -> vector<8x32xf32>
    %c0_12 = arith.constant 0 : index
    %c0_13 = arith.constant 0 : index
    %27 = vector.load %arg5[%c0_12, %c0_13] : memref<1x32xf32, #tpu.memory_space<vmem>>, vector<1x32xf32>
    %28 = vector.broadcast %27 : vector<1x32xf32> to vector<8x32xf32>
    %29 = arith.addf %26, %28 : vector<8x32xf32>
    %c0_14 = arith.constant 0 : index
    %c0_15 = arith.constant 0 : index
    %30 = vector.load %arg9[%c0_14, %c0_15] : memref<8x32xf32, #tpu.memory_space<vmem>>, vector<8x32xf32>
    tpu.vector_store %arg9[%c0_14, %c0_15], %29 {strides = array<i32>} : memref<8x32xf32, #tpu.memory_space<vmem>>, vector<8x32xf32>,
    %c0_16 = arith.constant 0 : index
    %c0_17 = arith.constant 0 : index
    %31 = vector.load %arg6[%c0_16, %c0_17] : memref<32x32xf32, #tpu.memory_space<vmem>>, vector<32x32xf32>
    %cst_18 = arith.constant dense<0.000000e+00> : vector<8x32xf32>
    %32 = tpu.matmul %24, %31, %cst_18 {dimension_numbers = #tpu.dot_dimension_numbers<[1], [0], [0], [1], [0, 0, 1, 1], [], []>} : vector<8x32xf32>, vector<32x32xf32>, vector<8x32xf32> -> vector<8x32xf32>
    %c0_19 = arith.constant 0 : index
    %c0_20 = arith.constant 0 : index
    %33 = vector.load %arg10[%c0_19, %c0_20] : memref<8x32xf32, #tpu.memory_space<vmem>>, vector<8x32xf32>
    tpu.vector_store %arg10[%c0_19, %c0_20], %32 {strides = array<i32>} : memref<8x32xf32, #tpu.memory_space<vmem>>, vector<8x32xf32>,
    %c0_21 = arith.constant 0 : index
    %c0_22 = arith.constant 0 : index
    %34 = vector.load %arg7[%c0_21, %c0_22] : memref<32x32xf32, #tpu.memory_space<vmem>>, vector<32x32xf32>
    %cst_23 = arith.constant dense<0.000000e+00> : vector<8x32xf32>
    %35 = tpu.matmul %24, %34, %cst_23 {dimension_numbers = #tpu.dot_dimension_numbers<[1], [0], [0], [1], [0, 0, 1, 1], [], []>} : vector<8x32xf32>, vector<32x32xf32>, vector<8x32xf32> -> vector<8x32xf32>
    %c0_24 = arith.constant 0 : index
    %c0_25 = arith.constant 0 : index
    %36 = vector.load %arg8[%c0_24, %c0_25] : memref<1x32xf32, #tpu.memory_space<vmem>>, vector<1x32xf32>
    %37 = vector.broadcast %36 : vector<1x32xf32> to vector<8x32xf32>
    %38 = arith.addf %35, %37 : vector<8x32xf32>
    %c0_26 = arith.constant 0 : index
    %c0_27 = arith.constant 0 : index
    %39 = vector.load %arg11[%c0_26, %c0_27] : memref<8x32xf32, #tpu.memory_space<vmem>>, vector<8x32xf32>
    tpu.vector_store %arg11[%c0_26, %c0_27], %38 {strides = array<i32>} : memref<8x32xf32, #tpu.memory_space<vmem>>, vector<8x32xf32>,
    return
  }
  func.func @transform_0(%arg0: i32) -> (i32, i32) {
    %c0_i32 = arith.constant 0 : i32
    %c0_i32_0 = arith.constant 0 : i32
    return %arg0, %c0_i32 : i32, i32
  }
  func.func @transform_1(%arg0: i32) -> (i32, i32) {
    %c0_i32 = arith.constant 0 : i32
    %c0_i32_0 = arith.constant 0 : i32
    %c0_i32_1 = arith.constant 0 : i32
    return %c0_i32, %c0_i32_0 : i32, i32
  }
  func.func @transform_2(%arg0: i32) -> (i32, i32) {
    %c0_i32 = arith.constant 0 : i32
    %c0_i32_0 = arith.constant 0 : i32
    %c0_i32_1 = arith.constant 0 : i32
    return %c0_i32, %c0_i32_0 : i32, i32
  }
  func.func @transform_3(%arg0: i32) -> (i32, i32) {
    %c0_i32 = arith.constant 0 : i32
    %c0_i32_0 = arith.constant 0 : i32
    %c0_i32_1 = arith.constant 0 : i32
    return %c0_i32, %c0_i32_0 : i32, i32
  }
  func.func @transform_4(%arg0: i32) -> (i32, i32) {
    %c0_i32 = arith.constant 0 : i32
    %c0_i32_0 = arith.constant 0 : i32
    %c0_i32_1 = arith.constant 0 : i32
    return %c0_i32, %c0_i32_0 : i32, i32
  }
  func.func @transform_5(%arg0: i32) -> (i32, i32) {
    %c0_i32 = arith.constant 0 : i32
    %c0_i32_0 = arith.constant 0 : i32
    %c0_i32_1 = arith.constant 0 : i32
    return %c0_i32, %c0_i32_0 : i32, i32
  }
  func.func @transform_6(%arg0: i32) -> (i32, i32) {
    %c0_i32 = arith.constant 0 : i32
    %c0_i32_0 = arith.constant 0 : i32
    %c0_i32_1 = arith.constant 0 : i32
    return %c0_i32, %c0_i32_0 : i32, i32
  }
  func.func @transform_7(%arg0: i32) -> (i32, i32) {
    %c0_i32 = arith.constant 0 : i32
    %c0_i32_0 = arith.constant 0 : i32
    %c0_i32_1 = arith.constant 0 : i32
    return %c0_i32, %c0_i32_0 : i32, i32
  }
  func.func @transform_8(%arg0: i32) -> (i32, i32) {
    %c0_i32 = arith.constant 0 : i32
    %c0_i32_0 = arith.constant 0 : i32
    return %arg0, %c0_i32 : i32, i32
  }
  func.func @transform_9(%arg0: i32) -> (i32, i32) {
    %c0_i32 = arith.constant 0 : i32
    %c0_i32_0 = arith.constant 0 : i32
    return %arg0, %c0_i32 : i32, i32
  }
  func.func @transform_10(%arg0: i32) -> (i32, i32) {
    %c0_i32 = arith.constant 0 : i32
    %c0_i32_0 = arith.constant 0 : i32
    return %arg0, %c0_i32 : i32, i32
  }
}

module attributes {stable_mosaic.version = 11 : i64} {
  func.func @_conv_kernel(%arg0: i32, %arg1: memref<1x9x64xf32, #tpu.memory_space<vmem>>, %arg2: memref<2x64x32xf32, #tpu.memory_space<vmem>>, %arg3: memref<1x32xf32, #tpu.memory_space<vmem>>, %arg4: memref<8x32xf32, #tpu.memory_space<vmem>>, %arg5: memref<1x8x32xf32, #tpu.memory_space<vmem>>) attributes {dimension_semantics = [#tpu.dimension_semantics<parallel>], iteration_bounds = array<i64: 2>, scalar_prefetch = 0 : i64, scratch_operands = 0 : i64, tpu.core_type = #tpu.core_type<tc>, window_params = [{transform_indices = @transform_0, window_bounds = array<i64: 1, 9, 64>}, {pipeline_mode = #tpu.pipeline_mode<synchronous>, transform_indices = @transform_1, window_bounds = array<i64: 2, 64, 32>}, {pipeline_mode = #tpu.pipeline_mode<synchronous>, transform_indices = @transform_2, window_bounds = array<i64: 1, 32>}, {pipeline_mode = #tpu.pipeline_mode<synchronous>, transform_indices = @transform_3, window_bounds = array<i64: 8, 32>}, {transform_indices = @transform_4, window_bounds = array<i64: 1, 8, 32>}]} {
    %c0 = arith.constant 0 : index
    %c0_0 = arith.constant 0 : index
    %c0_1 = arith.constant 0 : index
    %0 = vector.load %arg1[%c0, %c0_0, %c0_1] : memref<1x9x64xf32, #tpu.memory_space<vmem>>, vector<1x9x64xf32>
    %1 = vector.shape_cast %0 : vector<1x9x64xf32> to vector<9x64xf32>
    %cst = arith.constant 0.000000e+00 : f32
    %2 = vector.broadcast %cst : f32 to vector<8x32xf32>
    %3 = vector.extract_strided_slice %1 {offsets = [0, 0], sizes = [8, 64], strides = [1, 1]} : vector<9x64xf32> to vector<8x64xf32>
    %c0_2 = arith.constant 0 : index
    %c0_3 = arith.constant 0 : index
    %c0_4 = arith.constant 0 : index
    %4 = vector.load %arg2[%c0_2, %c0_3, %c0_4] : memref<2x64x32xf32, #tpu.memory_space<vmem>>, vector<1x64x32xf32>
    %5 = vector.shape_cast %4 : vector<1x64x32xf32> to vector<64x32xf32>
    %cst_5 = arith.constant dense<0.000000e+00> : vector<8x32xf32>
    %6 = tpu.matmul %3, %5, %cst_5 {dimension_numbers = #tpu.dot_dimension_numbers<[1], [0], [0], [1], [0, 0, 1, 1], [], []>} : vector<8x64xf32>, vector<64x32xf32>, vector<8x32xf32> -> vector<8x32xf32>
    %7 = arith.addf %2, %6 : vector<8x32xf32>
    %8 = vector.extract_strided_slice %1 {offsets = [1, 0], sizes = [8, 64], strides = [1, 1]} : vector<9x64xf32> to vector<8x64xf32>
    %c1 = arith.constant 1 : index
    %c0_6 = arith.constant 0 : index
    %c0_7 = arith.constant 0 : index
    %9 = vector.load %arg2[%c1, %c0_6, %c0_7] : memref<2x64x32xf32, #tpu.memory_space<vmem>>, vector<1x64x32xf32>
    %10 = vector.shape_cast %9 : vector<1x64x32xf32> to vector<64x32xf32>
    %cst_8 = arith.constant dense<0.000000e+00> : vector<8x32xf32>
    %11 = tpu.matmul %8, %10, %cst_8 {dimension_numbers = #tpu.dot_dimension_numbers<[1], [0], [0], [1], [0, 0, 1, 1], [], []>} : vector<8x64xf32>, vector<64x32xf32>, vector<8x32xf32> -> vector<8x32xf32>
    %12 = arith.addf %7, %11 : vector<8x32xf32>
    %c0_9 = arith.constant 0 : index
    %c0_10 = arith.constant 0 : index
    %13 = vector.load %arg3[%c0_9, %c0_10] : memref<1x32xf32, #tpu.memory_space<vmem>>, vector<1x32xf32>
    %14 = vector.broadcast %13 : vector<1x32xf32> to vector<8x32xf32>
    %15 = arith.addf %12, %14 : vector<8x32xf32>
    %cst_11 = arith.constant 5.000000e-01 : f32
    %16 = vector.broadcast %cst_11 : f32 to vector<8x32xf32>
    %17 = arith.mulf %16, %15 : vector<8x32xf32>
    %cst_12 = arith.constant 0.707106769 : f32
    %18 = vector.broadcast %cst_12 : f32 to vector<8x32xf32>
    %19 = arith.mulf %15, %18 : vector<8x32xf32>
    %cst_13 = arith.constant 0.000000e+00 : f32
    %20 = vector.broadcast %cst_13 : f32 to vector<8x32xf32>
    %21 = arith.cmpf olt, %19, %20 : vector<8x32xf32>
    %cst_14 = arith.constant -1.000000e+00 : f32
    %cst_15 = arith.constant 1.000000e+00 : f32
    %22 = vector.broadcast %cst_14 : f32 to vector<8x32xf32>
    %23 = vector.broadcast %cst_15 : f32 to vector<8x32xf32>
    %24 = arith.select %21, %22, %23 : vector<8x32xi1>, vector<8x32xf32>
    %25 = math.absf %19 : vector<8x32xf32>
    %cst_16 = arith.constant 0.327591091 : f32
    %26 = vector.broadcast %cst_16 : f32 to vector<8x32xf32>
    %27 = arith.mulf %26, %25 : vector<8x32xf32>
    %cst_17 = arith.constant 1.000000e+00 : f32
    %28 = vector.broadcast %cst_17 : f32 to vector<8x32xf32>
    %29 = arith.addf %28, %27 : vector<8x32xf32>
    %cst_18 = arith.constant 1.000000e+00 : f32
    %30 = vector.broadcast %cst_18 : f32 to vector<8x32xf32>
    %31 = arith.divf %30, %29 : vector<8x32xf32>
    %cst_19 = arith.constant 1.06140542 : f32
    %32 = vector.broadcast %cst_19 : f32 to vector<8x32xf32>
    %33 = arith.mulf %32, %31 : vector<8x32xf32>
    %cst_20 = arith.constant -1.45315206 : f32
    %34 = vector.broadcast %cst_20 : f32 to vector<8x32xf32>
    %35 = arith.addf %33, %34 : vector<8x32xf32>
    %36 = arith.mulf %35, %31 : vector<8x32xf32>
    %cst_21 = arith.constant 1.42141378 : f32
    %37 = vector.broadcast %cst_21 : f32 to vector<8x32xf32>
    %38 = arith.addf %36, %37 : vector<8x32xf32>
    %39 = arith.mulf %38, %31 : vector<8x32xf32>
    %cst_22 = arith.constant -0.284496725 : f32
    %40 = vector.broadcast %cst_22 : f32 to vector<8x32xf32>
    %41 = arith.addf %39, %40 : vector<8x32xf32>
    %42 = arith.mulf %41, %31 : vector<8x32xf32>
    %cst_23 = arith.constant 0.254829586 : f32
    %43 = vector.broadcast %cst_23 : f32 to vector<8x32xf32>
    %44 = arith.addf %42, %43 : vector<8x32xf32>
    %45 = arith.mulf %44, %31 : vector<8x32xf32>
    %cst_24 = arith.constant 0.000000e+00 : f32
    %46 = vector.broadcast %cst_24 : f32 to vector<8x32xf32>
    %47 = arith.subf %46, %25 : vector<8x32xf32>
    %48 = arith.mulf %47, %25 : vector<8x32xf32>
    %49 = math.exp %48 : vector<8x32xf32>
    %50 = arith.mulf %45, %49 : vector<8x32xf32>
    %cst_25 = arith.constant 1.000000e+00 : f32
    %51 = vector.broadcast %cst_25 : f32 to vector<8x32xf32>
    %52 = arith.subf %51, %50 : vector<8x32xf32>
    %53 = arith.mulf %24, %52 : vector<8x32xf32>
    %cst_26 = arith.constant 1.000000e+00 : f32
    %54 = vector.broadcast %cst_26 : f32 to vector<8x32xf32>
    %55 = arith.addf %54, %53 : vector<8x32xf32>
    %56 = arith.mulf %17, %55 : vector<8x32xf32>
    %c0_27 = arith.constant 0 : index
    %c0_28 = arith.constant 0 : index
    %57 = vector.load %arg4[%c0_27, %c0_28] : memref<8x32xf32, #tpu.memory_space<vmem>>, vector<8x32xf32>
    %58 = arith.addf %56, %57 : vector<8x32xf32>
    %c0_29 = arith.constant 0 : index
    %c0_30 = arith.constant 0 : index
    %c0_31 = arith.constant 0 : index
    %59 = vector.load %arg5[%c0_29, %c0_30, %c0_31] : memref<1x8x32xf32, #tpu.memory_space<vmem>>, vector<1x8x32xf32>
    %60 = vector.shape_cast %59 : vector<1x8x32xf32> to vector<8x32xf32>
    %61 = vector.shape_cast %58 : vector<8x32xf32> to vector<1x8x32xf32>
    tpu.vector_store %arg5[%c0_29, %c0_30, %c0_31], %61 {strides = array<i32>} : memref<1x8x32xf32, #tpu.memory_space<vmem>>, vector<1x8x32xf32>,
    return
  }
  func.func @transform_0(%arg0: i32) -> (i32, i32, i32) {
    %c0_i32 = arith.constant 0 : i32
    %c0_i32_0 = arith.constant 0 : i32
    %c0_i32_1 = arith.constant 0 : i32
    return %arg0, %c0_i32, %c0_i32_0 : i32, i32, i32
  }
  func.func @transform_1(%arg0: i32) -> (i32, i32, i32) {
    %c0_i32 = arith.constant 0 : i32
    %c0_i32_0 = arith.constant 0 : i32
    %c0_i32_1 = arith.constant 0 : i32
    %c0_i32_2 = arith.constant 0 : i32
    return %c0_i32, %c0_i32_0, %c0_i32_1 : i32, i32, i32
  }
  func.func @transform_2(%arg0: i32) -> (i32, i32) {
    %c0_i32 = arith.constant 0 : i32
    %c0_i32_0 = arith.constant 0 : i32
    %c0_i32_1 = arith.constant 0 : i32
    return %c0_i32, %c0_i32_0 : i32, i32
  }
  func.func @transform_3(%arg0: i32) -> (i32, i32) {
    %c0_i32 = arith.constant 0 : i32
    %c0_i32_0 = arith.constant 0 : i32
    %c0_i32_1 = arith.constant 0 : i32
    return %c0_i32, %c0_i32_0 : i32, i32
  }
  func.func @transform_4(%arg0: i32) -> (i32, i32, i32) {
    %c0_i32 = arith.constant 0 : i32
    %c0_i32_0 = arith.constant 0 : i32
    %c0_i32_1 = arith.constant 0 : i32
    return %arg0, %c0_i32, %c0_i32_0 : i32, i32, i32
  }
}

module attributes {stable_mosaic.version = 11 : i64} {
  func.func @_oproj_res_kernel(%arg0: i32, %arg1: memref<8x32xf32, #tpu.memory_space<vmem>>, %arg2: memref<32x32xf32, #tpu.memory_space<vmem>>, %arg3: memref<1x32xf32, #tpu.memory_space<vmem>>, %arg4: memref<8x32xf32, #tpu.memory_space<vmem>>, %arg5: memref<8x32xf32, #tpu.memory_space<vmem>>) attributes {dimension_semantics = [#tpu.dimension_semantics<parallel>], iteration_bounds = array<i64: 2>, scalar_prefetch = 0 : i64, scratch_operands = 0 : i64, tpu.core_type = #tpu.core_type<tc>, window_params = [{transform_indices = @transform_0, window_bounds = array<i64: 8, 32>}, {pipeline_mode = #tpu.pipeline_mode<synchronous>, transform_indices = @transform_1, window_bounds = array<i64: 32, 32>}, {pipeline_mode = #tpu.pipeline_mode<synchronous>, transform_indices = @transform_2, window_bounds = array<i64: 1, 32>}, {transform_indices = @transform_3, window_bounds = array<i64: 8, 32>}, {transform_indices = @transform_4, window_bounds = array<i64: 8, 32>}]} {
    %c0 = arith.constant 0 : index
    %c0_0 = arith.constant 0 : index
    %0 = vector.load %arg4[%c0, %c0_0] : memref<8x32xf32, #tpu.memory_space<vmem>>, vector<8x32xf32>
    %c0_1 = arith.constant 0 : index
    %c0_2 = arith.constant 0 : index
    %1 = vector.load %arg3[%c0_1, %c0_2] : memref<1x32xf32, #tpu.memory_space<vmem>>, vector<1x32xf32>
    %2 = vector.broadcast %1 : vector<1x32xf32> to vector<8x32xf32>
    %3 = arith.addf %0, %2 : vector<8x32xf32>
    %c0_3 = arith.constant 0 : index
    %c0_4 = arith.constant 0 : index
    %4 = vector.load %arg1[%c0_3, %c0_4] : memref<8x32xf32, #tpu.memory_space<vmem>>, vector<8x32xf32>
    %c0_5 = arith.constant 0 : index
    %c0_6 = arith.constant 0 : index
    %5 = vector.load %arg2[%c0_5, %c0_6] : memref<32x32xf32, #tpu.memory_space<vmem>>, vector<32x32xf32>
    %cst = arith.constant dense<0.000000e+00> : vector<8x32xf32>
    %6 = tpu.matmul %4, %5, %cst {dimension_numbers = #tpu.dot_dimension_numbers<[1], [0], [0], [1], [0, 0, 1, 1], [], []>} : vector<8x32xf32>, vector<32x32xf32>, vector<8x32xf32> -> vector<8x32xf32>
    %7 = arith.addf %3, %6 : vector<8x32xf32>
    %c0_7 = arith.constant 0 : index
    %c0_8 = arith.constant 0 : index
    %8 = vector.load %arg5[%c0_7, %c0_8] : memref<8x32xf32, #tpu.memory_space<vmem>>, vector<8x32xf32>
    tpu.vector_store %arg5[%c0_7, %c0_8], %7 {strides = array<i32>} : memref<8x32xf32, #tpu.memory_space<vmem>>, vector<8x32xf32>,
    return
  }
  func.func @transform_0(%arg0: i32) -> (i32, i32) {
    %c0_i32 = arith.constant 0 : i32
    %c0_i32_0 = arith.constant 0 : i32
    return %arg0, %c0_i32 : i32, i32
  }
  func.func @transform_1(%arg0: i32) -> (i32, i32) {
    %c0_i32 = arith.constant 0 : i32
    %c0_i32_0 = arith.constant 0 : i32
    %c0_i32_1 = arith.constant 0 : i32
    return %c0_i32, %c0_i32_0 : i32, i32
  }
  func.func @transform_2(%arg0: i32) -> (i32, i32) {
    %c0_i32 = arith.constant 0 : i32
    %c0_i32_0 = arith.constant 0 : i32
    %c0_i32_1 = arith.constant 0 : i32
    return %c0_i32, %c0_i32_0 : i32, i32
  }
  func.func @transform_3(%arg0: i32) -> (i32, i32) {
    %c0_i32 = arith.constant 0 : i32
    %c0_i32_0 = arith.constant 0 : i32
    return %arg0, %c0_i32 : i32, i32
  }
  func.func @transform_4(%arg0: i32) -> (i32, i32) {
    %c0_i32 = arith.constant 0 : i32
    %c0_i32_0 = arith.constant 0 : i32
    return %arg0, %c0_i32 : i32, i32
  }
}

module attributes {stable_mosaic.version = 11 : i64} {
  func.func @_ln_ffn_res_kernel(%arg0: i32, %arg1: memref<8x32xf32, #tpu.memory_space<vmem>>, %arg2: memref<1x32xf32, #tpu.memory_space<vmem>>, %arg3: memref<1x32xf32, #tpu.memory_space<vmem>>, %arg4: memref<32x64xf32, #tpu.memory_space<vmem>>, %arg5: memref<1x64xf32, #tpu.memory_space<vmem>>, %arg6: memref<64x32xf32, #tpu.memory_space<vmem>>, %arg7: memref<1x32xf32, #tpu.memory_space<vmem>>, %arg8: memref<8x32xf32, #tpu.memory_space<vmem>>) attributes {dimension_semantics = [#tpu.dimension_semantics<parallel>], iteration_bounds = array<i64: 2>, scalar_prefetch = 0 : i64, scratch_operands = 0 : i64, tpu.core_type = #tpu.core_type<tc>, window_params = [{transform_indices = @transform_0, window_bounds = array<i64: 8, 32>}, {pipeline_mode = #tpu.pipeline_mode<synchronous>, transform_indices = @transform_1, window_bounds = array<i64: 1, 32>}, {pipeline_mode = #tpu.pipeline_mode<synchronous>, transform_indices = @transform_2, window_bounds = array<i64: 1, 32>}, {pipeline_mode = #tpu.pipeline_mode<synchronous>, transform_indices = @transform_3, window_bounds = array<i64: 32, 64>}, {pipeline_mode = #tpu.pipeline_mode<synchronous>, transform_indices = @transform_4, window_bounds = array<i64: 1, 64>}, {pipeline_mode = #tpu.pipeline_mode<synchronous>, transform_indices = @transform_5, window_bounds = array<i64: 64, 32>}, {pipeline_mode = #tpu.pipeline_mode<synchronous>, transform_indices = @transform_6, window_bounds = array<i64: 1, 32>}, {transform_indices = @transform_7, window_bounds = array<i64: 8, 32>}]} {
    %c0 = arith.constant 0 : index
    %c0_0 = arith.constant 0 : index
    %0 = vector.load %arg1[%c0, %c0_0] : memref<8x32xf32, #tpu.memory_space<vmem>>, vector<8x32xf32>
    %c0_1 = arith.constant 0 : index
    %c0_2 = arith.constant 0 : index
    %1 = vector.load %arg2[%c0_1, %c0_2] : memref<1x32xf32, #tpu.memory_space<vmem>>, vector<1x32xf32>
    %c0_3 = arith.constant 0 : index
    %c0_4 = arith.constant 0 : index
    %2 = vector.load %arg3[%c0_3, %c0_4] : memref<1x32xf32, #tpu.memory_space<vmem>>, vector<1x32xf32>
    %cst = arith.constant dense<0.000000e+00> : vector<8xf32>
    %3 = vector.multi_reduction <add>, %0, %cst [1] : vector<8x32xf32> to vector<8xf32>
    %4 = vector.shape_cast %3 : vector<8xf32> to vector<8x1xf32>
    %cst_5 = arith.constant 3.200000e+01 : f32
    %5 = vector.broadcast %cst_5 : f32 to vector<8x1xf32>
    %6 = arith.divf %4, %5 : vector<8x1xf32>
    %7 = vector.broadcast %6 : vector<8x1xf32> to vector<8x32xf32>
    %8 = arith.subf %0, %7 : vector<8x32xf32>
    %9 = arith.mulf %8, %8 : vector<8x32xf32>
    %cst_6 = arith.constant dense<0.000000e+00> : vector<8xf32>
    %10 = vector.multi_reduction <add>, %9, %cst_6 [1] : vector<8x32xf32> to vector<8xf32>
    %11 = vector.shape_cast %10 : vector<8xf32> to vector<8x1xf32>
    %cst_7 = arith.constant 3.200000e+01 : f32
    %12 = vector.broadcast %cst_7 : f32 to vector<8x1xf32>
    %13 = arith.divf %11, %12 : vector<8x1xf32>
    %14 = vector.broadcast %6 : vector<8x1xf32> to vector<8x32xf32>
    %15 = arith.subf %0, %14 : vector<8x32xf32>
    %cst_8 = arith.constant 9.99999974E-6 : f32
    %16 = vector.broadcast %cst_8 : f32 to vector<8x1xf32>
    %17 = arith.addf %13, %16 : vector<8x1xf32>
    %18 = math.rsqrt %17 : vector<8x1xf32>
    %19 = vector.broadcast %18 : vector<8x1xf32> to vector<8x32xf32>
    %20 = arith.mulf %15, %19 : vector<8x32xf32>
    %21 = vector.broadcast %1 : vector<1x32xf32> to vector<8x32xf32>
    %22 = arith.mulf %20, %21 : vector<8x32xf32>
    %23 = vector.broadcast %2 : vector<1x32xf32> to vector<8x32xf32>
    %24 = arith.addf %22, %23 : vector<8x32xf32>
    %c0_9 = arith.constant 0 : index
    %c0_10 = arith.constant 0 : index
    %25 = vector.load %arg4[%c0_9, %c0_10] : memref<32x64xf32, #tpu.memory_space<vmem>>, vector<32x64xf32>
    %cst_11 = arith.constant dense<0.000000e+00> : vector<8x64xf32>
    %26 = tpu.matmul %24, %25, %cst_11 {dimension_numbers = #tpu.dot_dimension_numbers<[1], [0], [0], [1], [0, 0, 1, 1], [], []>} : vector<8x32xf32>, vector<32x64xf32>, vector<8x64xf32> -> vector<8x64xf32>
    %c0_12 = arith.constant 0 : index
    %c0_13 = arith.constant 0 : index
    %27 = vector.load %arg5[%c0_12, %c0_13] : memref<1x64xf32, #tpu.memory_space<vmem>>, vector<1x64xf32>
    %28 = vector.broadcast %27 : vector<1x64xf32> to vector<8x64xf32>
    %29 = arith.addf %26, %28 : vector<8x64xf32>
    %cst_14 = arith.constant 5.000000e-01 : f32
    %30 = vector.broadcast %cst_14 : f32 to vector<8x64xf32>
    %31 = arith.mulf %30, %29 : vector<8x64xf32>
    %cst_15 = arith.constant 0.707106769 : f32
    %32 = vector.broadcast %cst_15 : f32 to vector<8x64xf32>
    %33 = arith.mulf %29, %32 : vector<8x64xf32>
    %cst_16 = arith.constant 0.000000e+00 : f32
    %34 = vector.broadcast %cst_16 : f32 to vector<8x64xf32>
    %35 = arith.cmpf olt, %33, %34 : vector<8x64xf32>
    %cst_17 = arith.constant -1.000000e+00 : f32
    %cst_18 = arith.constant 1.000000e+00 : f32
    %36 = vector.broadcast %cst_17 : f32 to vector<8x64xf32>
    %37 = vector.broadcast %cst_18 : f32 to vector<8x64xf32>
    %38 = arith.select %35, %36, %37 : vector<8x64xi1>, vector<8x64xf32>
    %39 = math.absf %33 : vector<8x64xf32>
    %cst_19 = arith.constant 0.327591091 : f32
    %40 = vector.broadcast %cst_19 : f32 to vector<8x64xf32>
    %41 = arith.mulf %40, %39 : vector<8x64xf32>
    %cst_20 = arith.constant 1.000000e+00 : f32
    %42 = vector.broadcast %cst_20 : f32 to vector<8x64xf32>
    %43 = arith.addf %42, %41 : vector<8x64xf32>
    %cst_21 = arith.constant 1.000000e+00 : f32
    %44 = vector.broadcast %cst_21 : f32 to vector<8x64xf32>
    %45 = arith.divf %44, %43 : vector<8x64xf32>
    %cst_22 = arith.constant 1.06140542 : f32
    %46 = vector.broadcast %cst_22 : f32 to vector<8x64xf32>
    %47 = arith.mulf %46, %45 : vector<8x64xf32>
    %cst_23 = arith.constant -1.45315206 : f32
    %48 = vector.broadcast %cst_23 : f32 to vector<8x64xf32>
    %49 = arith.addf %47, %48 : vector<8x64xf32>
    %50 = arith.mulf %49, %45 : vector<8x64xf32>
    %cst_24 = arith.constant 1.42141378 : f32
    %51 = vector.broadcast %cst_24 : f32 to vector<8x64xf32>
    %52 = arith.addf %50, %51 : vector<8x64xf32>
    %53 = arith.mulf %52, %45 : vector<8x64xf32>
    %cst_25 = arith.constant -0.284496725 : f32
    %54 = vector.broadcast %cst_25 : f32 to vector<8x64xf32>
    %55 = arith.addf %53, %54 : vector<8x64xf32>
    %56 = arith.mulf %55, %45 : vector<8x64xf32>
    %cst_26 = arith.constant 0.254829586 : f32
    %57 = vector.broadcast %cst_26 : f32 to vector<8x64xf32>
    %58 = arith.addf %56, %57 : vector<8x64xf32>
    %59 = arith.mulf %58, %45 : vector<8x64xf32>
    %cst_27 = arith.constant 0.000000e+00 : f32
    %60 = vector.broadcast %cst_27 : f32 to vector<8x64xf32>
    %61 = arith.subf %60, %39 : vector<8x64xf32>
    %62 = arith.mulf %61, %39 : vector<8x64xf32>
    %63 = math.exp %62 : vector<8x64xf32>
    %64 = arith.mulf %59, %63 : vector<8x64xf32>
    %cst_28 = arith.constant 1.000000e+00 : f32
    %65 = vector.broadcast %cst_28 : f32 to vector<8x64xf32>
    %66 = arith.subf %65, %64 : vector<8x64xf32>
    %67 = arith.mulf %38, %66 : vector<8x64xf32>
    %cst_29 = arith.constant 1.000000e+00 : f32
    %68 = vector.broadcast %cst_29 : f32 to vector<8x64xf32>
    %69 = arith.addf %68, %67 : vector<8x64xf32>
    %70 = arith.mulf %31, %69 : vector<8x64xf32>
    %c0_30 = arith.constant 0 : index
    %c0_31 = arith.constant 0 : index
    %71 = vector.load %arg7[%c0_30, %c0_31] : memref<1x32xf32, #tpu.memory_space<vmem>>, vector<1x32xf32>
    %72 = vector.broadcast %71 : vector<1x32xf32> to vector<8x32xf32>
    %73 = arith.addf %0, %72 : vector<8x32xf32>
    %c0_32 = arith.constant 0 : index
    %c0_33 = arith.constant 0 : index
    %74 = vector.load %arg6[%c0_32, %c0_33] : memref<64x32xf32, #tpu.memory_space<vmem>>, vector<64x32xf32>
    %cst_34 = arith.constant dense<0.000000e+00> : vector<8x32xf32>
    %75 = tpu.matmul %70, %74, %cst_34 {dimension_numbers = #tpu.dot_dimension_numbers<[1], [0], [0], [1], [0, 0, 1, 1], [], []>} : vector<8x64xf32>, vector<64x32xf32>, vector<8x32xf32> -> vector<8x32xf32>
    %76 = arith.addf %73, %75 : vector<8x32xf32>
    %c0_35 = arith.constant 0 : index
    %c0_36 = arith.constant 0 : index
    %77 = vector.load %arg8[%c0_35, %c0_36] : memref<8x32xf32, #tpu.memory_space<vmem>>, vector<8x32xf32>
    tpu.vector_store %arg8[%c0_35, %c0_36], %76 {strides = array<i32>} : memref<8x32xf32, #tpu.memory_space<vmem>>, vector<8x32xf32>,
    return
  }
  func.func @transform_0(%arg0: i32) -> (i32, i32) {
    %c0_i32 = arith.constant 0 : i32
    %c0_i32_0 = arith.constant 0 : i32
    return %arg0, %c0_i32 : i32, i32
  }
  func.func @transform_1(%arg0: i32) -> (i32, i32) {
    %c0_i32 = arith.constant 0 : i32
    %c0_i32_0 = arith.constant 0 : i32
    %c0_i32_1 = arith.constant 0 : i32
    return %c0_i32, %c0_i32_0 : i32, i32
  }
  func.func @transform_2(%arg0: i32) -> (i32, i32) {
    %c0_i32 = arith.constant 0 : i32
    %c0_i32_0 = arith.constant 0 : i32
    %c0_i32_1 = arith.constant 0 : i32
    return %c0_i32, %c0_i32_0 : i32, i32
  }
  func.func @transform_3(%arg0: i32) -> (i32, i32) {
    %c0_i32 = arith.constant 0 : i32
    %c0_i32_0 = arith.constant 0 : i32
    %c0_i32_1 = arith.constant 0 : i32
    return %c0_i32, %c0_i32_0 : i32, i32
  }
  func.func @transform_4(%arg0: i32) -> (i32, i32) {
    %c0_i32 = arith.constant 0 : i32
    %c0_i32_0 = arith.constant 0 : i32
    %c0_i32_1 = arith.constant 0 : i32
    return %c0_i32, %c0_i32_0 : i32, i32
  }
  func.func @transform_5(%arg0: i32) -> (i32, i32) {
    %c0_i32 = arith.constant 0 : i32
    %c0_i32_0 = arith.constant 0 : i32
    %c0_i32_1 = arith.constant 0 : i32
    return %c0_i32, %c0_i32_0 : i32, i32
  }
  func.func @transform_6(%arg0: i32) -> (i32, i32) {
    %c0_i32 = arith.constant 0 : i32
    %c0_i32_0 = arith.constant 0 : i32
    %c0_i32_1 = arith.constant 0 : i32
    return %c0_i32, %c0_i32_0 : i32, i32
  }
  func.func @transform_7(%arg0: i32) -> (i32, i32) {
    %c0_i32 = arith.constant 0 : i32
    %c0_i32_0 = arith.constant 0 : i32
    return %arg0, %c0_i32 : i32, i32
  }
}

module attributes {stable_mosaic.version = 11 : i64} {
  func.func @_ln_kernel(%arg0: i32, %arg1: memref<8x32xf32, #tpu.memory_space<vmem>>, %arg2: memref<1x32xf32, #tpu.memory_space<vmem>>, %arg3: memref<1x32xf32, #tpu.memory_space<vmem>>, %arg4: memref<8x32xf32, #tpu.memory_space<vmem>>) attributes {dimension_semantics = [#tpu.dimension_semantics<parallel>], iteration_bounds = array<i64: 2>, scalar_prefetch = 0 : i64, scratch_operands = 0 : i64, tpu.core_type = #tpu.core_type<tc>, window_params = [{transform_indices = @transform_0, window_bounds = array<i64: 8, 32>}, {pipeline_mode = #tpu.pipeline_mode<synchronous>, transform_indices = @transform_1, window_bounds = array<i64: 1, 32>}, {pipeline_mode = #tpu.pipeline_mode<synchronous>, transform_indices = @transform_2, window_bounds = array<i64: 1, 32>}, {transform_indices = @transform_3, window_bounds = array<i64: 8, 32>}]} {
    %c0 = arith.constant 0 : index
    %c0_0 = arith.constant 0 : index
    %0 = vector.load %arg1[%c0, %c0_0] : memref<8x32xf32, #tpu.memory_space<vmem>>, vector<8x32xf32>
    %c0_1 = arith.constant 0 : index
    %c0_2 = arith.constant 0 : index
    %1 = vector.load %arg2[%c0_1, %c0_2] : memref<1x32xf32, #tpu.memory_space<vmem>>, vector<1x32xf32>
    %c0_3 = arith.constant 0 : index
    %c0_4 = arith.constant 0 : index
    %2 = vector.load %arg3[%c0_3, %c0_4] : memref<1x32xf32, #tpu.memory_space<vmem>>, vector<1x32xf32>
    %cst = arith.constant dense<0.000000e+00> : vector<8xf32>
    %3 = vector.multi_reduction <add>, %0, %cst [1] : vector<8x32xf32> to vector<8xf32>
    %4 = vector.shape_cast %3 : vector<8xf32> to vector<8x1xf32>
    %cst_5 = arith.constant 3.200000e+01 : f32
    %5 = vector.broadcast %cst_5 : f32 to vector<8x1xf32>
    %6 = arith.divf %4, %5 : vector<8x1xf32>
    %7 = vector.broadcast %6 : vector<8x1xf32> to vector<8x32xf32>
    %8 = arith.subf %0, %7 : vector<8x32xf32>
    %9 = arith.mulf %8, %8 : vector<8x32xf32>
    %cst_6 = arith.constant dense<0.000000e+00> : vector<8xf32>
    %10 = vector.multi_reduction <add>, %9, %cst_6 [1] : vector<8x32xf32> to vector<8xf32>
    %11 = vector.shape_cast %10 : vector<8xf32> to vector<8x1xf32>
    %cst_7 = arith.constant 3.200000e+01 : f32
    %12 = vector.broadcast %cst_7 : f32 to vector<8x1xf32>
    %13 = arith.divf %11, %12 : vector<8x1xf32>
    %14 = vector.broadcast %6 : vector<8x1xf32> to vector<8x32xf32>
    %15 = arith.subf %0, %14 : vector<8x32xf32>
    %cst_8 = arith.constant 9.99999974E-6 : f32
    %16 = vector.broadcast %cst_8 : f32 to vector<8x1xf32>
    %17 = arith.addf %13, %16 : vector<8x1xf32>
    %18 = math.rsqrt %17 : vector<8x1xf32>
    %19 = vector.broadcast %18 : vector<8x1xf32> to vector<8x32xf32>
    %20 = arith.mulf %15, %19 : vector<8x32xf32>
    %21 = vector.broadcast %1 : vector<1x32xf32> to vector<8x32xf32>
    %22 = arith.mulf %20, %21 : vector<8x32xf32>
    %23 = vector.broadcast %2 : vector<1x32xf32> to vector<8x32xf32>
    %24 = arith.addf %22, %23 : vector<8x32xf32>
    %c0_9 = arith.constant 0 : index
    %c0_10 = arith.constant 0 : index
    %25 = vector.load %arg4[%c0_9, %c0_10] : memref<8x32xf32, #tpu.memory_space<vmem>>, vector<8x32xf32>
    tpu.vector_store %arg4[%c0_9, %c0_10], %24 {strides = array<i32>} : memref<8x32xf32, #tpu.memory_space<vmem>>, vector<8x32xf32>,
    return
  }
  func.func @transform_0(%arg0: i32) -> (i32, i32) {
    %c0_i32 = arith.constant 0 : i32
    %c0_i32_0 = arith.constant 0 : i32
    return %arg0, %c0_i32 : i32, i32
  }
  func.func @transform_1(%arg0: i32) -> (i32, i32) {
    %c0_i32 = arith.constant 0 : i32
    %c0_i32_0 = arith.constant 0 : i32
    %c0_i32_1 = arith.constant 0 : i32
    return %c0_i32, %c0_i32_0 : i32, i32
  }
  func.func @transform_2(%arg0: i32) -> (i32, i32) {
    %c0_i32 = arith.constant 0 : i32
    %c0_i32_0 = arith.constant 0 : i32
    %c0_i32_1 = arith.constant 0 : i32
    return %c0_i32, %c0_i32_0 : i32, i32
  }
  func.func @transform_3(%arg0: i32) -> (i32, i32) {
    %c0_i32 = arith.constant 0 : i32
    %c0_i32_0 = arith.constant 0 : i32
    return %arg0, %c0_i32 : i32, i32
  }
}

</mosaic_0001>

<llo_original>
// kernel: whisper_encoder_forward.13
$region0: #{whisper_encoder_forward.13}
  #allocation0 [shape = 'u32[]', space=smem, size = 0x4, offset = 0x4, fixed_abs, tag = 'smem constant byte address 0x4 - core index']
  #allocation1 [shape = 'u32[72,128]{1,0:T(1,128)}', space=vmem, size = 0x9000, scoped, tag = 'internal scratch']
  %s0 = inlined_call_operand.vmem [shape: f32[16,32], index: 0, kind: input, shape index: {}]
  %s1 = inlined_call_operand.vmem [shape: f32[1,32], index: 1, kind: input, shape index: {}]
  %s2 = inlined_call_operand.vmem [shape: f32[1,32], index: 2, kind: input, shape index: {}]
  %s3 = inlined_call_operand.vmem [shape: f32[32,32], index: 3, kind: input, shape index: {}]
  %s4 = inlined_call_operand.vmem [shape: f32[1,32], index: 4, kind: input, shape index: {}]
  %s5 = inlined_call_operand.vmem [shape: f32[32,32], index: 5, kind: input, shape index: {}]
  %s6 = inlined_call_operand.vmem [shape: f32[32,32], index: 6, kind: input, shape index: {}]
  %s7 = inlined_call_operand.vmem [shape: f32[1,32], index: 7, kind: input, shape index: {}]
  %s8 = inlined_call_operand.vmem [shape: f32[16,32], index: 8, kind: output, shape index: {0}]
  %s9 = inlined_call_operand.vmem [shape: f32[16,32], index: 9, kind: output, shape index: {1}]
  %s10 = inlined_call_operand.vmem [shape: f32[16,32], index: 10, kind: output, shape index: {2}]
  %11 = xla_tuple %s8, %s9, %s10
  %s12 = sld [smem:[#allocation0]]
  $region81: #{whisper_encoder_forward.13} parent=0
    _
  %s14 = ssub.s32 1, %s12
  %s15 = scalar_select 0, %s14, %s12
  loop: start=0, step=1, limit=4
  $region2: #{whisper_encoder_forward.13} parent=0 // loop_pre_header
    _
  $region3: #{whisper_encoder_forward.13} parent=0 // loop_header
    %s17 = sphi 0, %s21
    %p18 = scmp.ge.s32.totalorder %s17, 4
    %s27 = sphi 0, %s29
    %s30 = sphi 0, %s27
    %s31 = sphi 0, %s30
    %s47 = sphi 0, %s31
    %s51 = sphi 0, %s51
    %s53 = sphi 0, %s51
    %s54 = sphi 0, %s53
    %s68 = sphi 0, %s54
    %s72 = sphi 0, %s72
    %s74 = sphi 0, %s72
    %s75 = sphi 0, %s74
    %s89 = sphi 0, %s75
    %s93 = sphi 0, %s93
    %s95 = sphi 0, %s93
    %s96 = sphi 0, %s95
    %s110 = sphi 0, %s96
    %s114 = sphi 0, %s114
    %s116 = sphi 0, %s114
    %s117 = sphi 0, %s116
    %s131 = sphi 0, %s117
    %s135 = sphi 0, %s135
    %s137 = sphi 0, %s135
    %s138 = sphi 0, %s137
    %s152 = sphi 0, %s138
    %s156 = sphi 0, %s156
    %s158 = sphi 0, %s156
    %s159 = sphi 0, %s158
    %s173 = sphi 0, %s159
    %s177 = sphi 0, %s177
    %s179 = sphi 0, %s177
    %s180 = sphi 0, %s179
    %s194 = sphi 0, %s180
    %s200 = sphi 0, %s202
    %s203 = sphi 0, %s200
    %s204 = sphi 0, %s203
    %s220 = sphi 0, %s204
    %s226 = sphi 0, %s228
    %s229 = sphi 0, %s226
    %s230 = sphi 0, %s229
    %s246 = sphi 0, %s230
    %s252 = sphi 0, %s254
    %s255 = sphi 0, %s252
    %s256 = sphi 0, %s255
    %s272 = sphi 0, %s256
  $region4: #{whisper_encoder_forward.13} parent=0 // loop_header_branch
    %20 = sbr.rel (%p18) target = $region8
  $region5: #{whisper_encoder_forward.13} parent=0 // loop_body
    %s22 = ssub.s32 %s17, 1
    %s23 = ssub.s32 %s17, 2
    %s24 = sadd.s32 %s17, 1
    %s25 = ssub.s32 %s17, %s24
    %p26 = scmp.eq.s32.totalorder %s25, 0
    %s28 = sadd.s32 %s27, 1
    %s29 = scalar_select %p26, %s27, %s28
    %p32 = pneg %p26
    %p33 = scmp.eq.s32.totalorder %s17, 1
    %p34 = por %p32, %p33
    %p35 = scmp.ne.s32.totalorder %s27, %s30
    %p36 = scmp.eq.s32.totalorder %s17, 0
    %p37 = por %p35, %p36
    %p38 = scmp.ne.s32.totalorder %s27, %s30
    %p39 = scmp.eq.s32.totalorder %s22, 1
    %p40 = por %p38, %p39
    %p41 = scmp.ne.s32.totalorder %s30, %s31
    %p42 = scmp.eq.s32.totalorder %s22, 0
    %p43 = por %p41, %p42
    %p44 = scmp.ne.s32.totalorder %s30, %s31
    %p45 = scmp.eq.s32.totalorder %s23, 1
    %p46 = por %p44, %p45
    %p48 = scmp.ne.s32.totalorder %s31, %s47
    %p49 = scmp.eq.s32.totalorder %s23, 0
    %p50 = por %p48, %p49
    %s52 = sadd.s32 %s51, 1
    %p55 = scmp.eq.s32.totalorder %s17, 1
    %p56 = scmp.ne.s32.totalorder %s51, %s53
    %p57 = scmp.eq.s32.totalorder %s17, 0
    %p58 = por %p56, %p57
    %p59 = scmp.ne.s32.totalorder %s51, %s53
    %p60 = scmp.eq.s32.totalorder %s22, 1
    %p61 = por %p59, %p60
    %p62 = scmp.ne.s32.totalorder %s53, %s54
    %p63 = scmp.eq.s32.totalorder %s22, 0
    %p64 = por %p62, %p63
    %p65 = scmp.ne.s32.totalorder %s53, %s54
    %p66 = scmp.eq.s32.totalorder %s23, 1
    %p67 = por %p65, %p66
    %p69 = scmp.ne.s32.totalorder %s54, %s68
    %p70 = scmp.eq.s32.totalorder %s23, 0
    %p71 = por %p69, %p70
    %s73 = sadd.s32 %s72, 1
    %p76 = scmp.eq.s32.totalorder %s17, 1
    %p77 = scmp.ne.s32.totalorder %s72, %s74
    %p78 = scmp.eq.s32.totalorder %s17, 0
    %p79 = por %p77, %p78
    %p80 = scmp.ne.s32.totalorder %s72, %s74
    %p81 = scmp.eq.s32.totalorder %s22, 1
    %p82 = por %p80, %p81
    %p83 = scmp.ne.s32.totalorder %s74, %s75
    %p84 = scmp.eq.s32.totalorder %s22, 0
    %p85 = por %p83, %p84
    %p86 = scmp.ne.s32.totalorder %s74, %s75
    %p87 = scmp.eq.s32.totalorder %s23, 1
    %p88 = por %p86, %p87
    %p90 = scmp.ne.s32.totalorder %s75, %s89
    %p91 = scmp.eq.s32.totalorder %s23, 0
    %p92 = por %p90, %p91
    %s94 = sadd.s32 %s93, 1
    %p97 = scmp.eq.s32.totalorder %s17, 1
    %p98 = scmp.ne.s32.totalorder %s93, %s95
    %p99 = scmp.eq.s32.totalorder %s17, 0
    %p100 = por %p98, %p99
    %p101 = scmp.ne.s32.totalorder %s93, %s95
    %p102 = scmp.eq.s32.totalorder %s22, 1
    %p103 = por %p101, %p102
    %p104 = scmp.ne.s32.totalorder %s95, %s96
    %p105 = scmp.eq.s32.totalorder %s22, 0
    %p106 = por %p104, %p105
    %p107 = scmp.ne.s32.totalorder %s95, %s96
    %p108 = scmp.eq.s32.totalorder %s23, 1
    %p109 = por %p107, %p108
    %p111 = scmp.ne.s32.totalorder %s96, %s110
    %p112 = scmp.eq.s32.totalorder %s23, 0
    %p113 = por %p111, %p112
    %s115 = sadd.s32 %s114, 1
    %p118 = scmp.eq.s32.totalorder %s17, 1
    %p119 = scmp.ne.s32.totalorder %s114, %s116
    %p120 = scmp.eq.s32.totalorder %s17, 0
    %p121 = por %p119, %p120
    %p122 = scmp.ne.s32.totalorder %s114, %s116
    %p123 = scmp.eq.s32.totalorder %s22, 1
    %p124 = por %p122, %p123
    %p125 = scmp.ne.s32.totalorder %s116, %s117
    %p126 = scmp.eq.s32.totalorder %s22, 0
    %p127 = por %p125, %p126
    %p128 = scmp.ne.s32.totalorder %s116, %s117
    %p129 = scmp.eq.s32.totalorder %s23, 1
    %p130 = por %p128, %p129
    %p132 = scmp.ne.s32.totalorder %s117, %s131
    %p133 = scmp.eq.s32.totalorder %s23, 0
    %p134 = por %p132, %p133
    %s136 = sadd.s32 %s135, 1
    %p139 = scmp.eq.s32.totalorder %s17, 1
    %p140 = scmp.ne.s32.totalorder %s135, %s137
    %p141 = scmp.eq.s32.totalorder %s17, 0
    %p142 = por %p140, %p141
    %p143 = scmp.ne.s32.totalorder %s135, %s137
    %p144 = scmp.eq.s32.totalorder %s22, 1
    %p145 = por %p143, %p144
    %p146 = scmp.ne.s32.totalorder %s137, %s138
    %p147 = scmp.eq.s32.totalorder %s22, 0
    %p148 = por %p146, %p147
    %p149 = scmp.ne.s32.totalorder %s137, %s138
    %p150 = scmp.eq.s32.totalorder %s23, 1
    %p151 = por %p149, %p150
    %p153 = scmp.ne.s32.totalorder %s138, %s152
    %p154 = scmp.eq.s32.totalorder %s23, 0
    %p155 = por %p153, %p154
    %s157 = sadd.s32 %s156, 1
    %p160 = scmp.eq.s32.totalorder %s17, 1
    %p161 = scmp.ne.s32.totalorder %s156, %s158
    %p162 = scmp.eq.s32.totalorder %s17, 0
    %p163 = por %p161, %p162
    %p164 = scmp.ne.s32.totalorder %s156, %s158
    %p165 = scmp.eq.s32.totalorder %s22, 1
    %p166 = por %p164, %p165
    %p167 = scmp.ne.s32.totalorder %s158, %s159
    %p168 = scmp.eq.s32.totalorder %s22, 0
    %p169 = por %p167, %p168
    %p170 = scmp.ne.s32.totalorder %s158, %s159
    %p171 = scmp.eq.s32.totalorder %s23, 1
    %p172 = por %p170, %p171
    %p174 = scmp.ne.s32.totalorder %s159, %s173
    %p175 = scmp.eq.s32.totalorder %s23, 0
    %p176 = por %p174, %p175
    %s178 = sadd.s32 %s177, 1
    %p181 = scmp.eq.s32.totalorder %s17, 1
    %p182 = scmp.ne.s32.totalorder %s177, %s179
    %p183 = scmp.eq.s32.totalorder %s17, 0
    %p184 = por %p182, %p183
    %p185 = scmp.ne.s32.totalorder %s177, %s179
    %p186 = scmp.eq.s32.totalorder %s22, 1
    %p187 = por %p185, %p186
    %p188 = scmp.ne.s32.totalorder %s179, %s180
    %p189 = scmp.eq.s32.totalorder %s22, 0
    %p190 = por %p188, %p189
    %p191 = scmp.ne.s32.totalorder %s179, %s180
    %p192 = scmp.eq.s32.totalorder %s23, 1
    %p193 = por %p191, %p192
    %p195 = scmp.ne.s32.totalorder %s180, %s194
    %p196 = scmp.eq.s32.totalorder %s23, 0
    %p197 = por %p195, %p196
    %s198 = ssub.s32 %s17, %s24
    %p199 = scmp.eq.s32.totalorder %s198, 0
    %s201 = sadd.s32 %s200, 1
    %s202 = scalar_select %p199, %s200, %s201
    %p205 = pneg %p199
    %p206 = scmp.eq.s32.totalorder %s17, 1
    %p207 = por %p205, %p206
    %p208 = scmp.ne.s32.totalorder %s200, %s203
    %p209 = scmp.eq.s32.totalorder %s17, 0
    %p210 = por %p208, %p209
    %p211 = scmp.ne.s32.totalorder %s200, %s203
    %p212 = scmp.eq.s32.totalorder %s22, 1
    %p213 = por %p211, %p212
    %p214 = scmp.ne.s32.totalorder %s203, %s204
    %p215 = scmp.eq.s32.totalorder %s22, 0
    %p216 = por %p214, %p215
    %p217 = scmp.ne.s32.totalorder %s203, %s204
    %p218 = scmp.eq.s32.totalorder %s23, 1
    %p219 = por %p217, %p218
    %p221 = scmp.ne.s32.totalorder %s204, %s220
    %p222 = scmp.eq.s32.totalorder %s23, 0
    %p223 = por %p221, %p222
    %s224 = ssub.s32 %s17, %s24
    %p225 = scmp.eq.s32.totalorder %s224, 0
    %s227 = sadd.s32 %s226, 1
    %s228 = scalar_select %p225, %s226, %s227
    %p231 = pneg %p225
    %p232 = scmp.eq.s32.totalorder %s17, 1
    %p233 = por %p231, %p232
    %p234 = scmp.ne.s32.totalorder %s226, %s229
    %p235 = scmp.eq.s32.totalorder %s17, 0
    %p236 = por %p234, %p235
    %p237 = scmp.ne.s32.totalorder %s226, %s229
    %p238 = scmp.eq.s32.totalorder %s22, 1
    %p239 = por %p237, %p238
    %p240 = scmp.ne.s32.totalorder %s229, %s230
    %p241 = scmp.eq.s32.totalorder %s22, 0
    %p242 = por %p240, %p241
    %p243 = scmp.ne.s32.totalorder %s229, %s230
    %p244 = scmp.eq.s32.totalorder %s23, 1
    %p245 = por %p243, %p244
    %p247 = scmp.ne.s32.totalorder %s230, %s246
    %p248 = scmp.eq.s32.totalorder %s23, 0
    %p249 = por %p247, %p248
    %s250 = ssub.s32 %s17, %s24
    %p251 = scmp.eq.s32.totalorder %s250, 0
    %s253 = sadd.s32 %s252, 1
    %s254 = scalar_select %p251, %s252, %s253
    %p257 = pneg %p251
    %p258 = scmp.eq.s32.totalorder %s17, 1
    %p259 = por %p257, %p258
    %p260 = scmp.ne.s32.totalorder %s252, %s255
    %p261 = scmp.eq.s32.totalorder %s17, 0
    %p262 = por %p260, %p261
    %p263 = scmp.ne.s32.totalorder %s252, %s255
    %p264 = scmp.eq.s32.totalorder %s22, 1
    %p265 = por %p263, %p264
    %p266 = scmp.ne.s32.totalorder %s255, %s256
    %p267 = scmp.eq.s32.totalorder %s22, 0
    %p268 = por %p266, %p267
    %p269 = scmp.ne.s32.totalorder %s255, %s256
    %p270 = scmp.eq.s32.totalorder %s23, 1
    %p271 = por %p269, %p270
    %p273 = scmp.ne.s32.totalorder %s256, %s272
    %p274 = scmp.eq.s32.totalorder %s23, 0
    %p275 = por %p273, %p274
    %p276 = scmp.le.s32.totalorder 1, %s17
    %p277 = scmp.lt.s32.totalorder %s17, 3
    %p278 = pnand %p276, %p277
    %p279 = pneg %p278
    // Predicated region
    $region9: #{whisper_encoder_forward.13} parent=5 // pred_check
      _
    $region10: #{whisper_encoder_forward.13} parent=5 // pred_check_branch
      %281 = sbr.rel (%p278) target = $region12
    $region11: #{whisper_encoder_forward.13} parent=5 // pred_region
      %s282 = ssub.s32 %s17, 1
      // Predicated region
      $region13: #{whisper_encoder_forward.13} parent=11 // pred_check
        %p283 = pneg %p64
      $region14: #{whisper_encoder_forward.13} parent=11 // pred_check_branch
        %285 = sbr.rel (%p283) target = $region16
      $region15: #{whisper_encoder_forward.13} parent=11 // pred_region
        _
      $region16: #{whisper_encoder_forward.13} parent=11 // pred_fallthru
        _
      // Predicated region
      $region17: #{whisper_encoder_forward.13} parent=11 // pred_check
        %p286 = pneg %p85
      $region18: #{whisper_encoder_forward.13} parent=11 // pred_check_branch
        %288 = sbr.rel (%p286) target = $region20
      $region19: #{whisper_encoder_forward.13} parent=11 // pred_region
        _
      $region20: #{whisper_encoder_forward.13} parent=11 // pred_fallthru
        _
      // Predicated region
      $region21: #{whisper_encoder_forward.13} parent=11 // pred_check
        %p289 = pneg %p106
      $region22: #{whisper_encoder_forward.13} parent=11 // pred_check_branch
        %291 = sbr.rel (%p289) target = $region24
      $region23: #{whisper_encoder_forward.13} parent=11 // pred_region
        _
      $region24: #{whisper_encoder_forward.13} parent=11 // pred_fallthru
        _
      // Predicated region
      $region25: #{whisper_encoder_forward.13} parent=11 // pred_check
        %p292 = pneg %p127
      $region26: #{whisper_encoder_forward.13} parent=11 // pred_check_branch
        %294 = sbr.rel (%p292) target = $region28
      $region27: #{whisper_encoder_forward.13} parent=11 // pred_region
        _
      $region28: #{whisper_encoder_forward.13} parent=11 // pred_fallthru
        _
      // Predicated region
      $region29: #{whisper_encoder_forward.13} parent=11 // pred_check
        %p295 = pneg %p148
      $region30: #{whisper_encoder_forward.13} parent=11 // pred_check_branch
        %297 = sbr.rel (%p295) target = $region32
      $region31: #{whisper_encoder_forward.13} parent=11 // pred_region
        _
      $region32: #{whisper_encoder_forward.13} parent=11 // pred_fallthru
        _
      // Predicated region
      $region33: #{whisper_encoder_forward.13} parent=11 // pred_check
        %p298 = pneg %p169
      $region34: #{whisper_encoder_forward.13} parent=11 // pred_check_branch
        %300 = sbr.rel (%p298) target = $region36
      $region35: #{whisper_encoder_forward.13} parent=11 // pred_region
        _
      $region36: #{whisper_encoder_forward.13} parent=11 // pred_fallthru
        _
      // Predicated region
      $region37: #{whisper_encoder_forward.13} parent=11 // pred_check
        %p301 = pneg %p190
      $region38: #{whisper_encoder_forward.13} parent=11 // pred_check_branch
        %303 = sbr.rel (%p301) target = $region40
      $region39: #{whisper_encoder_forward.13} parent=11 // pred_region
        _
      $region40: #{whisper_encoder_forward.13} parent=11 // pred_fallthru
        _
    $region12: #{whisper_encoder_forward.13} parent=5 // pred_fallthru
      _
    %p304 = scmp.lt.s32.totalorder %s17, 2
    // Predicated region
    $region41: #{whisper_encoder_forward.13} parent=5 // pred_check
      %p305 = pneg %p304
    $region42: #{whisper_encoder_forward.13} parent=5 // pred_check_branch
      %307 = sbr.rel (%p305) target = $region44
    $region43: #{whisper_encoder_forward.13} parent=5 // pred_region
      // Predicated region
      $region45: #{whisper_encoder_forward.13} parent=43 // pred_check
        %p308 = pneg %p37
      $region46: #{whisper_encoder_forward.13} parent=43 // pred_check_branch
        %310 = sbr.rel (%p308) target = $region48
      $region47: #{whisper_encoder_forward.13} parent=43 // pred_region
        %p311 = scmp.lt.s32.totalorder %s17, 1
        %s312 = scalar_select %p311, %s17, 1
        %s313 = smul.addr %s312, 8
        %s314 = scalar_lea.vmem %s0, %s313
      $region48: #{whisper_encoder_forward.13} parent=43 // pred_fallthru
        _
    $region44: #{whisper_encoder_forward.13} parent=5 // pred_fallthru
      _
    %p315 = scmp.le.s32.totalorder 1, %s17
    %p316 = scmp.lt.s32.totalorder %s17, 3
    %p317 = pnand %p315, %p316
    %p318 = pneg %p317
    // Predicated region
    $region49: #{whisper_encoder_forward.13} parent=5 // pred_check
      _
    $region50: #{whisper_encoder_forward.13} parent=5 // pred_check_branch
      %320 = sbr.rel (%p317) target = $region52
    $region51: #{whisper_encoder_forward.13} parent=5 // pred_region
      %s321 = ssub.s32 %s17, 1
      %p322 = scmp.lt.s32.totalorder %s22, 1
      %s323 = scalar_select %p322, %s22, 1
      %s324 = smul.addr %s323, 8
      %s325 = scalar_lea.vmem %s0, %s324
      %p326 = pneg %p43
      %p327 = pneg %p40
      %p328 = pneg %p64
      %p329 = pneg %p61
      %p330 = pneg %p85
      %p331 = pneg %p82
      %p332 = pneg %p106
      %p333 = pneg %p103
      %p334 = pneg %p127
      %p335 = pneg %p124
      %p336 = pneg %p148
      %p337 = pneg %p145
      %p338 = pneg %p169
      %p339 = pneg %p166
      %p340 = pneg %p190
      %p341 = pneg %p187
      %p342 = pneg %p216
      %p343 = pneg %p213
      %p344 = scmp.lt.s32.totalorder %s22, 1
      %s345 = scalar_select %p344, %s22, 1
      %s346 = smul.addr %s345, 8
      %s347 = scalar_lea.vmem %s8, %s346
      %p348 = pneg %p242
      %p349 = pneg %p239
      %p350 = scmp.lt.s32.totalorder %s22, 1
      %s351 = scalar_select %p350, %s22, 1
      %s352 = smul.addr %s351, 8
      %s353 = scalar_lea.vmem %s9, %s352
      %p354 = pneg %p268
      %p355 = pneg %p265
      %p356 = scmp.lt.s32.totalorder %s22, 1
      %s357 = scalar_select %p356, %s22, 1
      %s358 = smul.addr %s357, 8
      %s359 = scalar_lea.vmem %s10, %s358
      %p360 = scmp.lt.s32.totalorder %s22, 1
      %s361 = scalar_select %p360, %s22, 1
      %s362 = smul.addr %s361, 8
      %s363 = scalar_lea.vmem %s0, %s362
      %p364 = scmp.lt.s32.totalorder %s22, 1
      %s365 = scalar_select %p364, %s22, 1
      %s366 = smul.addr %s365, 8
      %s367 = scalar_lea.vmem %s8, %s366
      %p368 = scmp.lt.s32.totalorder %s22, 1
      %s369 = scalar_select %p368, %s22, 1
      %s370 = smul.addr %s369, 8
      %s371 = scalar_lea.vmem %s9, %s370
      %p372 = scmp.lt.s32.totalorder %s22, 1
      %s373 = scalar_select %p372, %s22, 1
      %s374 = smul.addr %s373, 8
      %s375 = scalar_lea.vmem %s10, %s374
      %v376 = vld [vmem:[%s363] sm:$0xff]
      %v377 = vld [vmem:[%s1] sm:$0x1]
      %v378 = vld [vmem:[%s2] sm:$0x1]
      %vm379 = vcmask 261120
      %v380 = vsel %vm379, %v376, 0.0
      %381 = vadd.xlane.f32.xlu0 %v380
      %v382 = vpop.xlane.xlu0 %381
      %v383 = vrcp.pop 32.0
      %v384 = vmul.f32 32.0, %v383
      %v385 = vsub.f32 1.0, %v384
      %v386 = vmul.f32 %v383, %v385
      %v387 = vadd.f32 %v383, %v386
      %vm388 = vweird.f32 %v383
      %v389 = vsel %vm388, %v383, %v387
      %v390 = vmul.f32 %v382, %v389
      %v391 = vsub.f32 %v376, %v390
      %v392 = vmul.f32 %v391, %v391
      %v393 = vsel %vm379, %v392, 0.0
      %394 = vadd.xlane.f32.xlu0 %v393
      %v395 = vpop.xlane.xlu0 %394
      %v396 = vmul.f32 %v395, %v389
      %v397 = vadd.f32 %v396, 1e-05
      %v398 = vrsqrt.pop %v397
      %v399 = vmul.f32 %v398, %v397
      %v400 = vmul.f32 %v399, %v398
      %v401 = vmul.f32 0.5, %v400
      %v402 = vsub.f32 1.5, %v401
      %v403 = vmul.f32 %v398, %v402
      %vm404 = vweird.f32 %v397
      %vm405 = vweird.f32 %v398
      %vm406 = vmor %vm404, %vm405
      %v407 = vsel %vm406, %v398, %v403
      %v408 = vmul.f32 %v391, %v407
      %v410 = vperm.slane %v377, 0
      %v412 = vmul.f32 %v408, %v410
      %v414 = vperm.slane %v378, 0
      %v416 = vadd.f32 %v412, %v414
      %v417 = vld [vmem:[%s3] sm:$0xff]
      %v418 = vld [vmem:[%s3 + $0x8] sm:$0xff]
      %v419 = vld [vmem:[%s3 + $0x10] sm:$0xff]
      %v420 = vld [vmem:[%s3 + $0x18] sm:$0xff]
      %v421 = vld [vmem:[%s4] sm:$0x1]
      %v423 = vperm.slane %v421, 0
      %v426 = vsel %vm379, %v416, 0
      %428 = vmatpush.msra.mxu0 0.0
      %429 = vmatpush.msra.mxu0 0.0
      %430 = vmatpush.msra.mxu0 0.0
      %431 = vmatpush.msra.mxu0 0.0
      %432 = vmatpush.msra.mxu0 0.0
      %433 = vmatpush.msra.mxu0 0.0
      %434 = vmatpush.msra.mxu0 0.0
      %435 = vmatpush.msra.mxu0 0.0
      %436 = vmatpush.msra.mxu0 0.0
      %437 = vmatpush.msra.mxu0 0.0
      %438 = vmatpush.msra.mxu0 0.0
      %439 = vmatpush.msra.mxu0 0.0
      %440 = vmatpush.msra.mxu0 %v420
      %441 = vmatpush.msra.mxu0 %v419
      %442 = vmatpush.msra.mxu0 %v418
      %443 = vmatpush.msra.mxu0 %v417
      %444 = vmatmul.f32.gmra.mxu0 %v426
      %v445 = vpop.f32.mrf.mxu0
      %v446 = vadd.f32 %v423, %v445
      %447 = vdwg.mxu0
      %448 = vst.msk [vmem:[%s367] sm:$0xff] %vm379, %v446
      %v449 = vld [vmem:[%s5] sm:$0xff]
      %v450 = vld [vmem:[%s5 + $0x8] sm:$0xff]
      %v451 = vld [vmem:[%s5 + $0x10] sm:$0xff]
      %v452 = vld [vmem:[%s5 + $0x18] sm:$0xff]
      %453 = vmatpush.msra.mxu0 0.0
      %454 = vmatpush.msra.mxu0 0.0
      %455 = vmatpush.msra.mxu0 0.0
      %456 = vmatpush.msra.mxu0 0.0
      %457 = vmatpush.msra.mxu0 0.0
      %458 = vmatpush.msra.mxu0 0.0
      %459 = vmatpush.msra.mxu0 0.0
      %460 = vmatpush.msra.mxu0 0.0
      %461 = vmatpush.msra.mxu0 0.0
      %462 = vmatpush.msra.mxu0 0.0
      %463 = vmatpush.msra.mxu0 0.0
      %464 = vmatpush.msra.mxu0 0.0
      %465 = vmatpush.msra.mxu0 %v452
      %466 = vmatpush.msra.mxu0 %v451
      %467 = vmatpush.msra.mxu0 %v450
      %468 = vmatpush.msra.mxu0 %v449
      %469 = vmatmul.f32.gmra.mxu0 %v426
      %v470 = vpop.f32.mrf.mxu0
      %v471 = vadd.f32 0.0, %v470
      %472 = vdwg.mxu0
      %473 = vst.msk [vmem:[%s371] sm:$0xff] %vm379, %v471
      %v474 = vld [vmem:[%s6] sm:$0xff]
      %v475 = vld [vmem:[%s6 + $0x8] sm:$0xff]
      %v476 = vld [vmem:[%s6 + $0x10] sm:$0xff]
      %v477 = vld [vmem:[%s6 + $0x18] sm:$0xff]
      %v478 = vld [vmem:[%s7] sm:$0x1]
      %v480 = vperm.slane %v478, 0
      %482 = vmatpush.msra.mxu0 0.0
      %483 = vmatpush.msra.mxu0 0.0
      %484 = vmatpush.msra.mxu0 0.0
      %485 = vmatpush.msra.mxu0 0.0
      %486 = vmatpush.msra.mxu0 0.0
      %487 = vmatpush.msra.mxu0 0.0
      %488 = vmatpush.msra.mxu0 0.0
      %489 = vmatpush.msra.mxu0 0.0
      %490 = vmatpush.msra.mxu0 0.0
      %491 = vmatpush.msra.mxu0 0.0
      %492 = vmatpush.msra.mxu0 0.0
      %493 = vmatpush.msra.mxu0 0.0
      %494 = vmatpush.msra.mxu0 %v477
      %495 = vmatpush.msra.mxu0 %v476
      %496 = vmatpush.msra.mxu0 %v475
      %497 = vmatpush.msra.mxu0 %v474
      %498 = vmatmul.f32.gmra.mxu0 %v426
      %v499 = vpop.f32.mrf.mxu0
      %v500 = vadd.f32 %v480, %v499
      %501 = vdwg.mxu0
      %502 = vst.msk [vmem:[%s375] sm:$0xff] %vm379, %v500
      %p503 = scmp.lt.s32.totalorder %s22, 1
      %s504 = scalar_select %p503, %s22, 1
      %s505 = smul.addr %s504, 8
      %s506 = scalar_lea.vmem %s8, %s505
      %p507 = scmp.lt.s32.totalorder %s22, 1
      %s508 = scalar_select %p507, %s22, 1
      %s509 = smul.addr %s508, 8
      %s510 = scalar_lea.vmem %s9, %s509
      %p511 = scmp.lt.s32.totalorder %s22, 1
      %s512 = scalar_select %p511, %s22, 1
      %s513 = smul.addr %s512, 8
      %s514 = scalar_lea.vmem %s10, %s513
      // Predicated region
      $region53: #{whisper_encoder_forward.13} parent=51 // pred_check
        %p515 = pneg %p213
      $region54: #{whisper_encoder_forward.13} parent=51 // pred_check_branch
        %517 = sbr.rel (%p515) target = $region56
      $region55: #{whisper_encoder_forward.13} parent=51 // pred_region
        _
      $region56: #{whisper_encoder_forward.13} parent=51 // pred_fallthru
        _
      // Predicated region
      $region57: #{whisper_encoder_forward.13} parent=51 // pred_check
        %p518 = pneg %p239
      $region58: #{whisper_encoder_forward.13} parent=51 // pred_check_branch
        %520 = sbr.rel (%p518) target = $region60
      $region59: #{whisper_encoder_forward.13} parent=51 // pred_region
        _
      $region60: #{whisper_encoder_forward.13} parent=51 // pred_fallthru
        _
      // Predicated region
      $region61: #{whisper_encoder_forward.13} parent=51 // pred_check
        %p521 = pneg %p265
      $region62: #{whisper_encoder_forward.13} parent=51 // pred_check_branch
        %523 = sbr.rel (%p521) target = $region64
      $region63: #{whisper_encoder_forward.13} parent=51 // pred_region
        _
      $region64: #{whisper_encoder_forward.13} parent=51 // pred_fallthru
        _
    $region52: #{whisper_encoder_forward.13} parent=5 // pred_fallthru
      _
    %p524 = scmp.le.s32.totalorder 2, %s17
    // Predicated region
    $region65: #{whisper_encoder_forward.13} parent=5 // pred_check
      %p525 = pneg %p524
    $region66: #{whisper_encoder_forward.13} parent=5 // pred_check_branch
      %527 = sbr.rel (%p525) target = $region68
    $region67: #{whisper_encoder_forward.13} parent=5 // pred_region
      %s528 = ssub.s32 %s17, 2
      // Predicated region
      $region69: #{whisper_encoder_forward.13} parent=67 // pred_check
        %p529 = pneg %p219
      $region70: #{whisper_encoder_forward.13} parent=67 // pred_check_branch
        %531 = sbr.rel (%p529) target = $region72
      $region71: #{whisper_encoder_forward.13} parent=67 // pred_region
        %p532 = scmp.lt.s32.totalorder %s23, 1
        %s533 = scalar_select %p532, %s23, 1
        %s534 = smul.addr %s533, 8
        %s535 = scalar_lea.vmem %s8, %s534
      $region72: #{whisper_encoder_forward.13} parent=67 // pred_fallthru
        _
      // Predicated region
      $region73: #{whisper_encoder_forward.13} parent=67 // pred_check
        %p536 = pneg %p245
      $region74: #{whisper_encoder_forward.13} parent=67 // pred_check_branch
        %538 = sbr.rel (%p536) target = $region76
      $region75: #{whisper_encoder_forward.13} parent=67 // pred_region
        %p539 = scmp.lt.s32.totalorder %s23, 1
        %s540 = scalar_select %p539, %s23, 1
        %s541 = smul.addr %s540, 8
        %s542 = scalar_lea.vmem %s9, %s541
      $region76: #{whisper_encoder_forward.13} parent=67 // pred_fallthru
        _
      // Predicated region
      $region77: #{whisper_encoder_forward.13} parent=67 // pred_check
        %p543 = pneg %p271
      $region78: #{whisper_encoder_forward.13} parent=67 // pred_check_branch
        %545 = sbr.rel (%p543) target = $region80
      $region79: #{whisper_encoder_forward.13} parent=67 // pred_region
        %p546 = scmp.lt.s32.totalorder %s23, 1
        %s547 = scalar_select %p546, %s23, 1
        %s548 = smul.addr %s547, 8
        %s549 = scalar_lea.vmem %s10, %s548
      $region80: #{whisper_encoder_forward.13} parent=67 // pred_fallthru
        _
    $region68: #{whisper_encoder_forward.13} parent=5 // pred_fallthru
      _
  $region6: #{whisper_encoder_forward.13} parent=0 // loop_footer
    %s21 = sadd.s32 1, %s17
  $region7: #{whisper_encoder_forward.13} parent=0 // loop_footer_branch
    %16 = sbr.rel target = $region3
  $region8: #{whisper_encoder_forward.13} parent=0 // loop_exit
    _

// kernel: whisper_encoder_forward.12
$region0: #{whisper_encoder_forward.12}
  #allocation0 [shape = 'u32[]', space=smem, size = 0x4, offset = 0x4, fixed_abs, tag = 'smem constant byte address 0x4 - core index']
  #allocation1 [shape = 'u32[72,128]{1,0:T(1,128)}', space=vmem, size = 0x9000, scoped, tag = 'internal scratch']
  %s0 = inlined_call_operand.vmem [shape: f32[2,9,64], index: 0, kind: input, shape index: {}]
  %s1 = inlined_call_operand.vmem [shape: f32[2,64,32], index: 1, kind: input, shape index: {}]
  %s2 = inlined_call_operand.vmem [shape: f32[1,32], index: 2, kind: input, shape index: {}]
  %s3 = inlined_call_operand.vmem [shape: f32[8,32], index: 3, kind: input, shape index: {}]
  %s4 = inlined_call_operand.vmem [shape: f32[2,8,32], index: 4, kind: output, shape index: {}]
  %s5 = sld [smem:[#allocation0]]
  $region49: #{whisper_encoder_forward.12} parent=0
    _
  %s7 = ssub.s32 1, %s5
  %s8 = scalar_select 0, %s7, %s5
  loop: start=0, step=1, limit=4
  $region2: #{whisper_encoder_forward.12} parent=0 // loop_pre_header
    _
  $region3: #{whisper_encoder_forward.12} parent=0 // loop_header
    %s10 = sphi 0, %s14
    %p11 = scmp.ge.s32.totalorder %s10, 4
    %s20 = sphi 0, %s22
    %s23 = sphi 0, %s20
    %s24 = sphi 0, %s23
    %s40 = sphi 0, %s24
    %s44 = sphi 0, %s44
    %s46 = sphi 0, %s44
    %s47 = sphi 0, %s46
    %s61 = sphi 0, %s47
    %s65 = sphi 0, %s65
    %s67 = sphi 0, %s65
    %s68 = sphi 0, %s67
    %s82 = sphi 0, %s68
    %s86 = sphi 0, %s86
    %s88 = sphi 0, %s86
    %s89 = sphi 0, %s88
    %s103 = sphi 0, %s89
    %s109 = sphi 0, %s111
    %s112 = sphi 0, %s109
    %s113 = sphi 0, %s112
    %s129 = sphi 0, %s113
  $region4: #{whisper_encoder_forward.12} parent=0 // loop_header_branch
    %13 = sbr.rel (%p11) target = $region8
  $region5: #{whisper_encoder_forward.12} parent=0 // loop_body
    %s15 = ssub.s32 %s10, 1
    %s16 = ssub.s32 %s10, 2
    %s17 = sadd.s32 %s10, 1
    %s18 = ssub.s32 %s10, %s17
    %p19 = scmp.eq.s32.totalorder %s18, 0
    %s21 = sadd.s32 %s20, 1
    %s22 = scalar_select %p19, %s20, %s21
    %p25 = pneg %p19
    %p26 = scmp.eq.s32.totalorder %s10, 1
    %p27 = por %p25, %p26
    %p28 = scmp.ne.s32.totalorder %s20, %s23
    %p29 = scmp.eq.s32.totalorder %s10, 0
    %p30 = por %p28, %p29
    %p31 = scmp.ne.s32.totalorder %s20, %s23
    %p32 = scmp.eq.s32.totalorder %s15, 1
    %p33 = por %p31, %p32
    %p34 = scmp.ne.s32.totalorder %s23, %s24
    %p35 = scmp.eq.s32.totalorder %s15, 0
    %p36 = por %p34, %p35
    %p37 = scmp.ne.s32.totalorder %s23, %s24
    %p38 = scmp.eq.s32.totalorder %s16, 1
    %p39 = por %p37, %p38
    %p41 = scmp.ne.s32.totalorder %s24, %s40
    %p42 = scmp.eq.s32.totalorder %s16, 0
    %p43 = por %p41, %p42
    %s45 = sadd.s32 %s44, 1
    %p48 = scmp.eq.s32.totalorder %s10, 1
    %p49 = scmp.ne.s32.totalorder %s44, %s46
    %p50 = scmp.eq.s32.totalorder %s10, 0
    %p51 = por %p49, %p50
    %p52 = scmp.ne.s32.totalorder %s44, %s46
    %p53 = scmp.eq.s32.totalorder %s15, 1
    %p54 = por %p52, %p53
    %p55 = scmp.ne.s32.totalorder %s46, %s47
    %p56 = scmp.eq.s32.totalorder %s15, 0
    %p57 = por %p55, %p56
    %p58 = scmp.ne.s32.totalorder %s46, %s47
    %p59 = scmp.eq.s32.totalorder %s16, 1
    %p60 = por %p58, %p59
    %p62 = scmp.ne.s32.totalorder %s47, %s61
    %p63 = scmp.eq.s32.totalorder %s16, 0
    %p64 = por %p62, %p63
    %s66 = sadd.s32 %s65, 1
    %p69 = scmp.eq.s32.totalorder %s10, 1
    %p70 = scmp.ne.s32.totalorder %s65, %s67
    %p71 = scmp.eq.s32.totalorder %s10, 0
    %p72 = por %p70, %p71
    %p73 = scmp.ne.s32.totalorder %s65, %s67
    %p74 = scmp.eq.s32.totalorder %s15, 1
    %p75 = por %p73, %p74
    %p76 = scmp.ne.s32.totalorder %s67, %s68
    %p77 = scmp.eq.s32.totalorder %s15, 0
    %p78 = por %p76, %p77
    %p79 = scmp.ne.s32.totalorder %s67, %s68
    %p80 = scmp.eq.s32.totalorder %s16, 1
    %p81 = por %p79, %p80
    %p83 = scmp.ne.s32.totalorder %s68, %s82
    %p84 = scmp.eq.s32.totalorder %s16, 0
    %p85 = por %p83, %p84
    %s87 = sadd.s32 %s86, 1
    %p90 = scmp.eq.s32.totalorder %s10, 1
    %p91 = scmp.ne.s32.totalorder %s86, %s88
    %p92 = scmp.eq.s32.totalorder %s10, 0
    %p93 = por %p91, %p92
    %p94 = scmp.ne.s32.totalorder %s86, %s88
    %p95 = scmp.eq.s32.totalorder %s15, 1
    %p96 = por %p94, %p95
    %p97 = scmp.ne.s32.totalorder %s88, %s89
    %p98 = scmp.eq.s32.totalorder %s15, 0
    %p99 = por %p97, %p98
    %p100 = scmp.ne.s32.totalorder %s88, %s89
    %p101 = scmp.eq.s32.totalorder %s16, 1
    %p102 = por %p100, %p101
    %p104 = scmp.ne.s32.totalorder %s89, %s103
    %p105 = scmp.eq.s32.totalorder %s16, 0
    %p106 = por %p104, %p105
    %s107 = ssub.s32 %s10, %s17
    %p108 = scmp.eq.s32.totalorder %s107, 0
    %s110 = sadd.s32 %s109, 1
    %s111 = scalar_select %p108, %s109, %s110
    %p114 = pneg %p108
    %p115 = scmp.eq.s32.totalorder %s10, 1
    %p116 = por %p114, %p115
    %p117 = scmp.ne.s32.totalorder %s109, %s112
    %p118 = scmp.eq.s32.totalorder %s10, 0
    %p119 = por %p117, %p118
    %p120 = scmp.ne.s32.totalorder %s109, %s112
    %p121 = scmp.eq.s32.totalorder %s15, 1
    %p122 = por %p120, %p121
    %p123 = scmp.ne.s32.totalorder %s112, %s113
    %p124 = scmp.eq.s32.totalorder %s15, 0
    %p125 = por %p123, %p124
    %p126 = scmp.ne.s32.totalorder %s112, %s113
    %p127 = scmp.eq.s32.totalorder %s16, 1
    %p128 = por %p126, %p127
    %p130 = scmp.ne.s32.totalorder %s113, %s129
    %p131 = scmp.eq.s32.totalorder %s16, 0
    %p132 = por %p130, %p131
    %p133 = scmp.le.s32.totalorder 1, %s10
    %p134 = scmp.lt.s32.totalorder %s10, 3
    %p135 = pnand %p133, %p134
    %p136 = pneg %p135
    // Predicated region
    $region9: #{whisper_encoder_forward.12} parent=5 // pred_check
      _
    $region10: #{whisper_encoder_forward.12} parent=5 // pred_check_branch
      %138 = sbr.rel (%p135) target = $region12
    $region11: #{whisper_encoder_forward.12} parent=5 // pred_region
      %s139 = ssub.s32 %s10, 1
      // Predicated region
      $region13: #{whisper_encoder_forward.12} parent=11 // pred_check
        %p140 = pneg %p57
      $region14: #{whisper_encoder_forward.12} parent=11 // pred_check_branch
        %142 = sbr.rel (%p140) target = $region16
      $region15: #{whisper_encoder_forward.12} parent=11 // pred_region
        _
      $region16: #{whisper_encoder_forward.12} parent=11 // pred_fallthru
        _
      // Predicated region
      $region17: #{whisper_encoder_forward.12} parent=11 // pred_check
        %p143 = pneg %p78
      $region18: #{whisper_encoder_forward.12} parent=11 // pred_check_branch
        %145 = sbr.rel (%p143) target = $region20
      $region19: #{whisper_encoder_forward.12} parent=11 // pred_region
        _
      $region20: #{whisper_encoder_forward.12} parent=11 // pred_fallthru
        _
      // Predicated region
      $region21: #{whisper_encoder_forward.12} parent=11 // pred_check
        %p146 = pneg %p99
      $region22: #{whisper_encoder_forward.12} parent=11 // pred_check_branch
        %148 = sbr.rel (%p146) target = $region24
      $region23: #{whisper_encoder_forward.12} parent=11 // pred_region
        _
      $region24: #{whisper_encoder_forward.12} parent=11 // pred_fallthru
        _
    $region12: #{whisper_encoder_forward.12} parent=5 // pred_fallthru
      _
    %p149 = scmp.lt.s32.totalorder %s10, 2
    // Predicated region
    $region25: #{whisper_encoder_forward.12} parent=5 // pred_check
      %p150 = pneg %p149
    $region26: #{whisper_encoder_forward.12} parent=5 // pred_check_branch
      %152 = sbr.rel (%p150) target = $region28
    $region27: #{whisper_encoder_forward.12} parent=5 // pred_region
      // Predicated region
      $region29: #{whisper_encoder_forward.12} parent=27 // pred_check
        %p153 = pneg %p30
      $region30: #{whisper_encoder_forward.12} parent=27 // pred_check_branch
        %155 = sbr.rel (%p153) target = $region32
      $region31: #{whisper_encoder_forward.12} parent=27 // pred_region
        %p156 = scmp.lt.s32.totalorder %s10, 1
        %s157 = scalar_select %p156, %s10, 1
        %s158 = smul.addr %s157, 2
        %s159 = smul.addr %s158, 8
        %s160 = scalar_lea.vmem %s0, %s159
      $region32: #{whisper_encoder_forward.12} parent=27 // pred_fallthru
        _
    $region28: #{whisper_encoder_forward.12} parent=5 // pred_fallthru
      _
    %p161 = scmp.le.s32.totalorder 1, %s10
    %p162 = scmp.lt.s32.totalorder %s10, 3
    %p163 = pnand %p161, %p162
    %p164 = pneg %p163
    // Predicated region
    $region33: #{whisper_encoder_forward.12} parent=5 // pred_check
      _
    $region34: #{whisper_encoder_forward.12} parent=5 // pred_check_branch
      %166 = sbr.rel (%p163) target = $region36
    $region35: #{whisper_encoder_forward.12} parent=5 // pred_region
      %s167 = ssub.s32 %s10, 1
      %p168 = scmp.lt.s32.totalorder %s15, 1
      %s169 = scalar_select %p168, %s15, 1
      %s170 = smul.addr %s169, 2
      %s171 = smul.addr %s170, 8
      %s172 = scalar_lea.vmem %s0, %s171
      %p173 = pneg %p36
      %p174 = pneg %p33
      %p175 = pneg %p57
      %p176 = pneg %p54
      %p177 = pneg %p78
      %p178 = pneg %p75
      %p179 = pneg %p99
      %p180 = pneg %p96
      %p181 = pneg %p125
      %p182 = pneg %p122
      %p183 = scmp.lt.s32.totalorder %s15, 1
      %s184 = scalar_select %p183, %s15, 1
      %s185 = smul.addr %s184, 8
      %s186 = scalar_lea.vmem %s4, %s185
      %p187 = scmp.lt.s32.totalorder %s15, 1
      %s188 = scalar_select %p187, %s15, 1
      %s189 = smul.addr %s188, 2
      %s190 = smul.addr %s189, 8
      %s191 = scalar_lea.vmem %s0, %s190
      %p192 = scmp.lt.s32.totalorder %s15, 1
      %s193 = scalar_select %p192, %s15, 1
      %s194 = smul.addr %s193, 8
      %s195 = scalar_lea.vmem %s4, %s194
      %v196 = vld [vmem:[%s191] sm:$0xff]
      %v197 = vld [vmem:[%s191 + $0x8] sm:$0x1]
      %v198 = vld [vmem:[%s1] sm:$0xff]
      %v199 = vld [vmem:[%s1 + $0x8] sm:$0xff]
      %v200 = vld [vmem:[%s1 + $0x10] sm:$0xff]
      %v201 = vld [vmem:[%s1 + $0x18] sm:$0xff]
      %v202 = vld [vmem:[%s1 + $0x20] sm:$0xff]
      %v203 = vld [vmem:[%s1 + $0x28] sm:$0xff]
      %v204 = vld [vmem:[%s1 + $0x30] sm:$0xff]
      %v205 = vld [vmem:[%s1 + $0x38] sm:$0xff]
      %s206 = scalar_lea.vmem %s1, 64
      %v207 = vld [vmem:[%s206] sm:$0xff]
      %v208 = vld [vmem:[%s206 + $0x8] sm:$0xff]
      %v209 = vld [vmem:[%s206 + $0x10] sm:$0xff]
      %v210 = vld [vmem:[%s206 + $0x18] sm:$0xff]
      %v211 = vld [vmem:[%s206 + $0x20] sm:$0xff]
      %v212 = vld [vmem:[%s206 + $0x28] sm:$0xff]
      %v213 = vld [vmem:[%s206 + $0x30] sm:$0xff]
      %v214 = vld [vmem:[%s206 + $0x38] sm:$0xff]
      %vm217 = vcmask 1046528
      %v218 = vrot.slane %v196, 1
      %v219 = vrot.slane %v197, 1
      %v220 = vsel %vm217, %v218, %v219
      %vm221 = vcmask 523264
      %v222 = vsel %vm221, %v220, 0
      %224 = vmatpush.msra.mxu0 0.0
      %225 = vmatpush.msra.mxu0 0.0
      %226 = vmatpush.msra.mxu0 0.0
      %227 = vmatpush.msra.mxu0 0.0
      %228 = vmatpush.msra.mxu0 0.0
      %229 = vmatpush.msra.mxu0 0.0
      %230 = vmatpush.msra.mxu0 0.0
      %231 = vmatpush.msra.mxu0 0.0
      %232 = vmatpush.msra.mxu0 %v214
      %233 = vmatpush.msra.mxu0 %v213
      %234 = vmatpush.msra.mxu0 %v212
      %235 = vmatpush.msra.mxu0 %v211
      %236 = vmatpush.msra.mxu0 %v210
      %237 = vmatpush.msra.mxu0 %v209
      %238 = vmatpush.msra.mxu0 %v208
      %239 = vmatpush.msra.mxu0 %v207
      %240 = vmatmul.f32.gmra.mxu0 %v222
      %v241 = vpop.f32.mrf.mxu0
      %v242 = vadd.f32 0.0, %v241
      %243 = vdwg.mxu0
      %v244 = vsel %vm221, %v196, 0
      %246 = vmatpush.msra.mxu0 0.0
      %247 = vmatpush.msra.mxu0 0.0
      %248 = vmatpush.msra.mxu0 0.0
      %249 = vmatpush.msra.mxu0 0.0
      %250 = vmatpush.msra.mxu0 0.0
      %251 = vmatpush.msra.mxu0 0.0
      %252 = vmatpush.msra.mxu0 0.0
      %253 = vmatpush.msra.mxu0 0.0
      %254 = vmatpush.msra.mxu0 %v205
      %255 = vmatpush.msra.mxu0 %v204
      %256 = vmatpush.msra.mxu0 %v203
      %257 = vmatpush.msra.mxu0 %v202
      %258 = vmatpush.msra.mxu0 %v201
      %259 = vmatpush.msra.mxu0 %v200
      %260 = vmatpush.msra.mxu0 %v199
      %261 = vmatpush.msra.mxu0 %v198
      %262 = vmatmul.f32.gmra.mxu0 %v244
      %v263 = vpop.f32.mrf.mxu0
      %v264 = vadd.f32 %v242, %v263
      %265 = vdwg.mxu0
      %v266 = vld [vmem:[%s2] sm:$0x1]
      %v268 = vperm.slane %v266, 0
      %v270 = vadd.f32 %v264, %v268
      %v271 = vmul.f32 %v270, 0.5
      %v272 = vmul.f32 %v270, 0.70710677
      %vm273 = vcmp.lt.f32.partialorder %v272, 0.0
      %v274 = vsel %vm273, -1.0, 1.0
      %v275 = vand.u32 2147483647, %v272
      %v276 = vmul.f32 %v275, 0.3275911
      %v277 = vadd.f32 %v276, 1.0
      %v278 = vrcp.pop %v277
      %v279 = vmul.f32 %v277, %v278
      %v280 = vsub.f32 1.0, %v279
      %v281 = vmul.f32 %v278, %v280
      %v282 = vadd.f32 %v278, %v281
      %vm283 = vweird.f32 %v277
      %vm284 = vweird.f32 %v278
      %vm285 = vmor %vm283, %vm284
      %v286 = vsel %vm285, %v278, %v282
      %v287 = vand.u32 2147483647, %v277
      %vm288 = vcmp.eq.f32.partialorder %v287, 8.507059e+37
      %v289 = vand.u32 %v277, 2147483648
      %v290 = vor.u32 1.1754944e-38, %v289
      %v291 = vsel %vm288, %v290, %v286
      %v292 = vmul.f32 1.0, %v291
      %v293 = vmul.f32 %v292, 1.0614054
      %v294 = vadd.f32 %v293, -1.4531521
      %v295 = vmul.f32 %v294, %v292
      %v296 = vadd.f32 %v295, 1.4214138
      %v297 = vmul.f32 %v296, %v292
      %v298 = vadd.f32 %v297, -0.28449672
      %v299 = vmul.f32 %v298, %v292
      %v300 = vadd.f32 %v299, 0.2548296
      %v301 = vmul.f32 %v300, %v292
      %v302 = vsub.f32 0.0, %v275
      %v303 = vmul.f32 %v302, %v275
      %v304 = vmul.f32 %v303, 1.442695
      %v305 = vpow.pop %v304
      %v306 = vmul.f32 %v301, %v305
      %v307 = vsub.f32 1.0, %v306
      %v308 = vmul.f32 %v274, %v307
      %v309 = vadd.f32 %v308, 1.0
      %v310 = vmul.f32 %v271, %v309
      %v311 = vld [vmem:[%s3] sm:$0xff]
      %v312 = vadd.f32 %v310, %v311
      %vm313 = vcmask 261120
      %314 = vst.msk [vmem:[%s195] sm:$0xff] %vm313, %v312
      %p315 = scmp.lt.s32.totalorder %s15, 1
      %s316 = scalar_select %p315, %s15, 1
      %s317 = smul.addr %s316, 8
      %s318 = scalar_lea.vmem %s4, %s317
      // Predicated region
      $region37: #{whisper_encoder_forward.12} parent=35 // pred_check
        %p319 = pneg %p122
      $region38: #{whisper_encoder_forward.12} parent=35 // pred_check_branch
        %321 = sbr.rel (%p319) target = $region40
      $region39: #{whisper_encoder_forward.12} parent=35 // pred_region
        _
      $region40: #{whisper_encoder_forward.12} parent=35 // pred_fallthru
        _
    $region36: #{whisper_encoder_forward.12} parent=5 // pred_fallthru
      _
    %p322 = scmp.le.s32.totalorder 2, %s10
    // Predicated region
    $region41: #{whisper_encoder_forward.12} parent=5 // pred_check
      %p323 = pneg %p322
    $region42: #{whisper_encoder_forward.12} parent=5 // pred_check_branch
      %325 = sbr.rel (%p323) target = $region44
    $region43: #{whisper_encoder_forward.12} parent=5 // pred_region
      %s326 = ssub.s32 %s10, 2
      // Predicated region
      $region45: #{whisper_encoder_forward.12} parent=43 // pred_check
        %p327 = pneg %p128
      $region46: #{whisper_encoder_forward.12} parent=43 // pred_check_branch
        %329 = sbr.rel (%p327) target = $region48
      $region47: #{whisper_encoder_forward.12} parent=43 // pred_region
        %p330 = scmp.lt.s32.totalorder %s16, 1
        %s331 = scalar_select %p330, %s16, 1
        %s332 = smul.addr %s331, 8
        %s333 = scalar_lea.vmem %s4, %s332
      $region48: #{whisper_encoder_forward.12} parent=43 // pred_fallthru
        _
    $region44: #{whisper_encoder_forward.12} parent=5 // pred_fallthru
      _
  $region6: #{whisper_encoder_forward.12} parent=0 // loop_footer
    %s14 = sadd.s32 1, %s10
  $region7: #{whisper_encoder_forward.12} parent=0 // loop_footer_branch
    %9 = sbr.rel target = $region3
  $region8: #{whisper_encoder_forward.12} parent=0 // loop_exit
    _

// kernel: whisper_encoder_forward.11
$region0: #{whisper_encoder_forward.11}
  #allocation0 [shape = 'u32[]', space=smem, size = 0x4, offset = 0x4, fixed_abs, tag = 'smem constant byte address 0x4 - core index']
  #allocation1 [shape = 'u32[72,128]{1,0:T(1,128)}', space=vmem, size = 0x9000, scoped, tag = 'internal scratch']
  %s0 = inlined_call_operand.vmem [shape: f32[2,18,8], index: 0, kind: input, shape index: {}]
  %s1 = inlined_call_operand.vmem [shape: f32[3,8,32], index: 1, kind: input, shape index: {}]
  %s2 = inlined_call_operand.vmem [shape: f32[1,32], index: 2, kind: input, shape index: {}]
  %s3 = inlined_call_operand.vmem [shape: f32[16,32], index: 3, kind: input, shape index: {}]
  %s4 = inlined_call_operand.vmem [shape: f32[2,16,32], index: 4, kind: output, shape index: {}]
  %s5 = sld [smem:[#allocation0]]
  $region49: #{whisper_encoder_forward.11} parent=0
    _
  %s7 = ssub.s32 1, %s5
  %s8 = scalar_select 0, %s7, %s5
  loop: start=0, step=1, limit=4
  $region2: #{whisper_encoder_forward.11} parent=0 // loop_pre_header
    _
  $region3: #{whisper_encoder_forward.11} parent=0 // loop_header
    %s10 = sphi 0, %s14
    %p11 = scmp.ge.s32.totalorder %s10, 4
    %s20 = sphi 0, %s22
    %s23 = sphi 0, %s20
    %s24 = sphi 0, %s23
    %s40 = sphi 0, %s24
    %s44 = sphi 0, %s44
    %s46 = sphi 0, %s44
    %s47 = sphi 0, %s46
    %s61 = sphi 0, %s47
    %s65 = sphi 0, %s65
    %s67 = sphi 0, %s65
    %s68 = sphi 0, %s67
    %s82 = sphi 0, %s68
    %s86 = sphi 0, %s86
    %s88 = sphi 0, %s86
    %s89 = sphi 0, %s88
    %s103 = sphi 0, %s89
    %s109 = sphi 0, %s111
    %s112 = sphi 0, %s109
    %s113 = sphi 0, %s112
    %s129 = sphi 0, %s113
  $region4: #{whisper_encoder_forward.11} parent=0 // loop_header_branch
    %13 = sbr.rel (%p11) target = $region8
  $region5: #{whisper_encoder_forward.11} parent=0 // loop_body
    %s15 = ssub.s32 %s10, 1
    %s16 = ssub.s32 %s10, 2
    %s17 = sadd.s32 %s10, 1
    %s18 = ssub.s32 %s10, %s17
    %p19 = scmp.eq.s32.totalorder %s18, 0
    %s21 = sadd.s32 %s20, 1
    %s22 = scalar_select %p19, %s20, %s21
    %p25 = pneg %p19
    %p26 = scmp.eq.s32.totalorder %s10, 1
    %p27 = por %p25, %p26
    %p28 = scmp.ne.s32.totalorder %s20, %s23
    %p29 = scmp.eq.s32.totalorder %s10, 0
    %p30 = por %p28, %p29
    %p31 = scmp.ne.s32.totalorder %s20, %s23
    %p32 = scmp.eq.s32.totalorder %s15, 1
    %p33 = por %p31, %p32
    %p34 = scmp.ne.s32.totalorder %s23, %s24
    %p35 = scmp.eq.s32.totalorder %s15, 0
    %p36 = por %p34, %p35
    %p37 = scmp.ne.s32.totalorder %s23, %s24
    %p38 = scmp.eq.s32.totalorder %s16, 1
    %p39 = por %p37, %p38
    %p41 = scmp.ne.s32.totalorder %s24, %s40
    %p42 = scmp.eq.s32.totalorder %s16, 0
    %p43 = por %p41, %p42
    %s45 = sadd.s32 %s44, 1
    %p48 = scmp.eq.s32.totalorder %s10, 1
    %p49 = scmp.ne.s32.totalorder %s44, %s46
    %p50 = scmp.eq.s32.totalorder %s10, 0
    %p51 = por %p49, %p50
    %p52 = scmp.ne.s32.totalorder %s44, %s46
    %p53 = scmp.eq.s32.totalorder %s15, 1
    %p54 = por %p52, %p53
    %p55 = scmp.ne.s32.totalorder %s46, %s47
    %p56 = scmp.eq.s32.totalorder %s15, 0
    %p57 = por %p55, %p56
    %p58 = scmp.ne.s32.totalorder %s46, %s47
    %p59 = scmp.eq.s32.totalorder %s16, 1
    %p60 = por %p58, %p59
    %p62 = scmp.ne.s32.totalorder %s47, %s61
    %p63 = scmp.eq.s32.totalorder %s16, 0
    %p64 = por %p62, %p63
    %s66 = sadd.s32 %s65, 1
    %p69 = scmp.eq.s32.totalorder %s10, 1
    %p70 = scmp.ne.s32.totalorder %s65, %s67
    %p71 = scmp.eq.s32.totalorder %s10, 0
    %p72 = por %p70, %p71
    %p73 = scmp.ne.s32.totalorder %s65, %s67
    %p74 = scmp.eq.s32.totalorder %s15, 1
    %p75 = por %p73, %p74
    %p76 = scmp.ne.s32.totalorder %s67, %s68
    %p77 = scmp.eq.s32.totalorder %s15, 0
    %p78 = por %p76, %p77
    %p79 = scmp.ne.s32.totalorder %s67, %s68
    %p80 = scmp.eq.s32.totalorder %s16, 1
    %p81 = por %p79, %p80
    %p83 = scmp.ne.s32.totalorder %s68, %s82
    %p84 = scmp.eq.s32.totalorder %s16, 0
    %p85 = por %p83, %p84
    %s87 = sadd.s32 %s86, 1
    %p90 = scmp.eq.s32.totalorder %s10, 1
    %p91 = scmp.ne.s32.totalorder %s86, %s88
    %p92 = scmp.eq.s32.totalorder %s10, 0
    %p93 = por %p91, %p92
    %p94 = scmp.ne.s32.totalorder %s86, %s88
    %p95 = scmp.eq.s32.totalorder %s15, 1
    %p96 = por %p94, %p95
    %p97 = scmp.ne.s32.totalorder %s88, %s89
    %p98 = scmp.eq.s32.totalorder %s15, 0
    %p99 = por %p97, %p98
    %p100 = scmp.ne.s32.totalorder %s88, %s89
    %p101 = scmp.eq.s32.totalorder %s16, 1
    %p102 = por %p100, %p101
    %p104 = scmp.ne.s32.totalorder %s89, %s103
    %p105 = scmp.eq.s32.totalorder %s16, 0
    %p106 = por %p104, %p105
    %s107 = ssub.s32 %s10, %s17
    %p108 = scmp.eq.s32.totalorder %s107, 0
    %s110 = sadd.s32 %s109, 1
    %s111 = scalar_select %p108, %s109, %s110
    %p114 = pneg %p108
    %p115 = scmp.eq.s32.totalorder %s10, 1
    %p116 = por %p114, %p115
    %p117 = scmp.ne.s32.totalorder %s109, %s112
    %p118 = scmp.eq.s32.totalorder %s10, 0
    %p119 = por %p117, %p118
    %p120 = scmp.ne.s32.totalorder %s109, %s112
    %p121 = scmp.eq.s32.totalorder %s15, 1
    %p122 = por %p120, %p121
    %p123 = scmp.ne.s32.totalorder %s112, %s113
    %p124 = scmp.eq.s32.totalorder %s15, 0
    %p125 = por %p123, %p124
    %p126 = scmp.ne.s32.totalorder %s112, %s113
    %p127 = scmp.eq.s32.totalorder %s16, 1
    %p128 = por %p126, %p127
    %p130 = scmp.ne.s32.totalorder %s113, %s129
    %p131 = scmp.eq.s32.totalorder %s16, 0
    %p132 = por %p130, %p131
    %p133 = scmp.le.s32.totalorder 1, %s10
    %p134 = scmp.lt.s32.totalorder %s10, 3
    %p135 = pnand %p133, %p134
    %p136 = pneg %p135
    // Predicated region
    $region9: #{whisper_encoder_forward.11} parent=5 // pred_check
      _
    $region10: #{whisper_encoder_forward.11} parent=5 // pred_check_branch
      %138 = sbr.rel (%p135) target = $region12
    $region11: #{whisper_encoder_forward.11} parent=5 // pred_region
      %s139 = ssub.s32 %s10, 1
      // Predicated region
      $region13: #{whisper_encoder_forward.11} parent=11 // pred_check
        %p140 = pneg %p57
      $region14: #{whisper_encoder_forward.11} parent=11 // pred_check_branch
        %142 = sbr.rel (%p140) target = $region16
      $region15: #{whisper_encoder_forward.11} parent=11 // pred_region
        _
      $region16: #{whisper_encoder_forward.11} parent=11 // pred_fallthru
        _
      // Predicated region
      $region17: #{whisper_encoder_forward.11} parent=11 // pred_check
        %p143 = pneg %p78
      $region18: #{whisper_encoder_forward.11} parent=11 // pred_check_branch
        %145 = sbr.rel (%p143) target = $region20
      $region19: #{whisper_encoder_forward.11} parent=11 // pred_region
        _
      $region20: #{whisper_encoder_forward.11} parent=11 // pred_fallthru
        _
      // Predicated region
      $region21: #{whisper_encoder_forward.11} parent=11 // pred_check
        %p146 = pneg %p99
      $region22: #{whisper_encoder_forward.11} parent=11 // pred_check_branch
        %148 = sbr.rel (%p146) target = $region24
      $region23: #{whisper_encoder_forward.11} parent=11 // pred_region
        _
      $region24: #{whisper_encoder_forward.11} parent=11 // pred_fallthru
        _
    $region12: #{whisper_encoder_forward.11} parent=5 // pred_fallthru
      _
    %p149 = scmp.lt.s32.totalorder %s10, 2
    // Predicated region
    $region25: #{whisper_encoder_forward.11} parent=5 // pred_check
      %p150 = pneg %p149
    $region26: #{whisper_encoder_forward.11} parent=5 // pred_check_branch
      %152 = sbr.rel (%p150) target = $region28
    $region27: #{whisper_encoder_forward.11} parent=5 // pred_region
      // Predicated region
      $region29: #{whisper_encoder_forward.11} parent=27 // pred_check
        %p153 = pneg %p30
      $region30: #{whisper_encoder_forward.11} parent=27 // pred_check_branch
        %155 = sbr.rel (%p153) target = $region32
      $region31: #{whisper_encoder_forward.11} parent=27 // pred_region
        %p156 = scmp.lt.s32.totalorder %s10, 1
        %s157 = scalar_select %p156, %s10, 1
        %s158 = smul.addr %s157, 3
        %s159 = smul.addr %s158, 8
        %s160 = scalar_lea.vmem %s0, %s159
      $region32: #{whisper_encoder_forward.11} parent=27 // pred_fallthru
        _
    $region28: #{whisper_encoder_forward.11} parent=5 // pred_fallthru
      _
    %p161 = scmp.le.s32.totalorder 1, %s10
    %p162 = scmp.lt.s32.totalorder %s10, 3
    %p163 = pnand %p161, %p162
    %p164 = pneg %p163
    // Predicated region
    $region33: #{whisper_encoder_forward.11} parent=5 // pred_check
      _
    $region34: #{whisper_encoder_forward.11} parent=5 // pred_check_branch
      %166 = sbr.rel (%p163) target = $region36
    $region35: #{whisper_encoder_forward.11} parent=5 // pred_region
      %s167 = ssub.s32 %s10, 1
      %p168 = scmp.lt.s32.totalorder %s15, 1
      %s169 = scalar_select %p168, %s15, 1
      %s170 = smul.addr %s169, 3
      %s171 = smul.addr %s170, 8
      %s172 = scalar_lea.vmem %s0, %s171
      %p173 = pneg %p36
      %p174 = pneg %p33
      %p175 = pneg %p57
      %p176 = pneg %p54
      %p177 = pneg %p78
      %p178 = pneg %p75
      %p179 = pneg %p99
      %p180 = pneg %p96
      %p181 = pneg %p125
      %p182 = pneg %p122
      %p183 = scmp.lt.s32.totalorder %s15, 1
      %s184 = scalar_select %p183, %s15, 1
      %s185 = smul.addr %s184, 2
      %s186 = smul.addr %s185, 8
      %s187 = scalar_lea.vmem %s4, %s186
      %p188 = scmp.lt.s32.totalorder %s15, 1
      %s189 = scalar_select %p188, %s15, 1
      %s190 = smul.addr %s189, 3
      %s191 = smul.addr %s190, 8
      %s192 = scalar_lea.vmem %s0, %s191
      %p193 = scmp.lt.s32.totalorder %s15, 1
      %s194 = scalar_select %p193, %s15, 1
      %s195 = smul.addr %s194, 2
      %s196 = smul.addr %s195, 8
      %s197 = scalar_lea.vmem %s4, %s196
      %v198 = vld [vmem:[%s192] sm:$0xff]
      %v199 = vld [vmem:[%s192 + $0x8] sm:$0xff]
      %v200 = vld [vmem:[%s192 + $0x10] sm:$0x3]
      %v201 = vld [vmem:[%s1] sm:$0xff]
      %s202 = scalar_lea.vmem %s1, 8
      %v203 = vld [vmem:[%s202] sm:$0xff]
      %vm207 = vcmask 1046528
      %v208 = vrot.slane %v198, 1
      %v209 = vrot.slane %v199, 1
      %v210 = vsel %vm207, %v208, %v209
      %v211 = vrot.slane %v200, 1
      %v212 = vsel %vm207, %v209, %v211
      %vm213 = vcmask 64512
      %v214 = vsel %vm213, %v210, 0
      %v216 = vsel %vm213, %v212, 0
      %218 = vmatpush.msra.mxu0 0.0
      %219 = vmatpush.msra.mxu0 0.0
      %220 = vmatpush.msra.mxu0 0.0
      %221 = vmatpush.msra.mxu0 0.0
      %222 = vmatpush.msra.mxu0 0.0
      %223 = vmatpush.msra.mxu0 0.0
      %224 = vmatpush.msra.mxu0 0.0
      %225 = vmatpush.msra.mxu0 0.0
      %226 = vmatpush.msra.mxu0 0.0
      %227 = vmatpush.msra.mxu0 0.0
      %228 = vmatpush.msra.mxu0 0.0
      %229 = vmatpush.msra.mxu0 0.0
      %230 = vmatpush.msra.mxu0 0.0
      %231 = vmatpush.msra.mxu0 0.0
      %232 = vmatpush.msra.mxu0 0.0
      %233 = vmatpush.msra.mxu0 %v203
      %234 = vmatmul.f32.gmra.mxu0 %v214
      %v235 = vpop.f32.mrf.mxu0
      %v236 = vadd.f32 0.0, %v235
      %237 = vmatmul.f32.gmra.mxu0 %v216
      %v238 = vpop.f32.mrf.mxu0
      %v239 = vadd.f32 0.0, %v238
      %240 = vdwg.mxu0
      %v241 = vsel %vm213, %v198, 0
      %v243 = vsel %vm213, %v199, 0
      %245 = vmatpush.msra.mxu0 0.0
      %246 = vmatpush.msra.mxu0 0.0
      %247 = vmatpush.msra.mxu0 0.0
      %248 = vmatpush.msra.mxu0 0.0
      %249 = vmatpush.msra.mxu0 0.0
      %250 = vmatpush.msra.mxu0 0.0
      %251 = vmatpush.msra.mxu0 0.0
      %252 = vmatpush.msra.mxu0 0.0
      %253 = vmatpush.msra.mxu0 0.0
      %254 = vmatpush.msra.mxu0 0.0
      %255 = vmatpush.msra.mxu0 0.0
      %256 = vmatpush.msra.mxu0 0.0
      %257 = vmatpush.msra.mxu0 0.0
      %258 = vmatpush.msra.mxu0 0.0
      %259 = vmatpush.msra.mxu0 0.0
      %260 = vmatpush.msra.mxu0 %v201
      %261 = vmatmul.f32.gmra.mxu0 %v241
      %v262 = vpop.f32.mrf.mxu0
      %v263 = vadd.f32 %v236, %v262
      %264 = vmatmul.f32.gmra.mxu0 %v243
      %v265 = vpop.f32.mrf.mxu0
      %v266 = vadd.f32 %v239, %v265
      %267 = vdwg.mxu0
      %s268 = scalar_lea.vmem %s1, 16
      %v269 = vld [vmem:[%s268] sm:$0xff]
      %vm270 = vcmask 1045504
      %v271 = vrot.slane %v198, 2
      %v272 = vrot.slane %v199, 2
      %v273 = vsel %vm270, %v271, %v272
      %v274 = vrot.slane %v200, 2
      %v275 = vsel %vm270, %v272, %v274
      %v276 = vsel %vm213, %v273, 0
      %v278 = vsel %vm213, %v275, 0
      %280 = vmatpush.msra.mxu0 0.0
      %281 = vmatpush.msra.mxu0 0.0
      %282 = vmatpush.msra.mxu0 0.0
      %283 = vmatpush.msra.mxu0 0.0
      %284 = vmatpush.msra.mxu0 0.0
      %285 = vmatpush.msra.mxu0 0.0
      %286 = vmatpush.msra.mxu0 0.0
      %287 = vmatpush.msra.mxu0 0.0
      %288 = vmatpush.msra.mxu0 0.0
      %289 = vmatpush.msra.mxu0 0.0
      %290 = vmatpush.msra.mxu0 0.0
      %291 = vmatpush.msra.mxu0 0.0
      %292 = vmatpush.msra.mxu0 0.0
      %293 = vmatpush.msra.mxu0 0.0
      %294 = vmatpush.msra.mxu0 0.0
      %295 = vmatpush.msra.mxu0 %v269
      %296 = vmatmul.f32.gmra.mxu0 %v276
      %v297 = vpop.f32.mrf.mxu0
      %v298 = vadd.f32 0.0, %v297
      %299 = vmatmul.f32.gmra.mxu0 %v278
      %v300 = vpop.f32.mrf.mxu0
      %v301 = vadd.f32 0.0, %v300
      %302 = vdwg.mxu0
      %v303 = vadd.f32 %v263, %v298
      %v304 = vadd.f32 %v266, %v301
      %v305 = vld [vmem:[%s2] sm:$0x1]
      %v307 = vperm.slane %v305, 0
      %v309 = vadd.f32 %v303, %v307
      %v310 = vadd.f32 %v304, %v307
      %v311 = vmul.f32 %v309, 0.5
      %v312 = vmul.f32 %v310, 0.5
      %v313 = vmul.f32 %v309, 0.70710677
      %v314 = vmul.f32 %v310, 0.70710677
      %vm315 = vcmp.lt.f32.partialorder %v313, 0.0
      %vm316 = vcmp.lt.f32.partialorder %v314, 0.0
      %v317 = vsel %vm315, -1.0, 1.0
      %v318 = vsel %vm316, -1.0, 1.0
      %v319 = vand.u32 2147483647, %v313
      %v320 = vand.u32 2147483647, %v314
      %v321 = vmul.f32 %v319, 0.3275911
      %v322 = vmul.f32 %v320, 0.3275911
      %v323 = vadd.f32 %v321, 1.0
      %v324 = vadd.f32 %v322, 1.0
      %v325 = vrcp.pop %v323
      %v326 = vmul.f32 %v323, %v325
      %v327 = vsub.f32 1.0, %v326
      %v328 = vmul.f32 %v325, %v327
      %v329 = vadd.f32 %v325, %v328
      %vm330 = vweird.f32 %v323
      %vm331 = vweird.f32 %v325
      %vm332 = vmor %vm330, %vm331
      %v333 = vsel %vm332, %v325, %v329
      %v334 = vand.u32 2147483647, %v323
      %vm335 = vcmp.eq.f32.partialorder %v334, 8.507059e+37
      %v336 = vand.u32 %v323, 2147483648
      %v337 = vor.u32 1.1754944e-38, %v336
      %v338 = vsel %vm335, %v337, %v333
      %v339 = vmul.f32 1.0, %v338
      %v340 = vrcp.pop %v324
      %v341 = vmul.f32 %v324, %v340
      %v342 = vsub.f32 1.0, %v341
      %v343 = vmul.f32 %v340, %v342
      %v344 = vadd.f32 %v340, %v343
      %vm345 = vweird.f32 %v324
      %vm346 = vweird.f32 %v340
      %vm347 = vmor %vm345, %vm346
      %v348 = vsel %vm347, %v340, %v344
      %v349 = vand.u32 2147483647, %v324
      %vm350 = vcmp.eq.f32.partialorder %v349, 8.507059e+37
      %v351 = vand.u32 %v324, 2147483648
      %v352 = vor.u32 1.1754944e-38, %v351
      %v353 = vsel %vm350, %v352, %v348
      %v354 = vmul.f32 1.0, %v353
      %v355 = vmul.f32 %v339, 1.0614054
      %v356 = vmul.f32 %v354, 1.0614054
      %v357 = vadd.f32 %v355, -1.4531521
      %v358 = vadd.f32 %v356, -1.4531521
      %v359 = vmul.f32 %v357, %v339
      %v360 = vmul.f32 %v358, %v354
      %v361 = vadd.f32 %v359, 1.4214138
      %v362 = vadd.f32 %v360, 1.4214138
      %v363 = vmul.f32 %v361, %v339
      %v364 = vmul.f32 %v362, %v354
      %v365 = vadd.f32 %v363, -0.28449672
      %v366 = vadd.f32 %v364, -0.28449672
      %v367 = vmul.f32 %v365, %v339
      %v368 = vmul.f32 %v366, %v354
      %v369 = vadd.f32 %v367, 0.2548296
      %v370 = vadd.f32 %v368, 0.2548296
      %v371 = vmul.f32 %v369, %v339
      %v372 = vmul.f32 %v370, %v354
      %v373 = vsub.f32 0.0, %v319
      %v374 = vsub.f32 0.0, %v320
      %v375 = vmul.f32 %v373, %v319
      %v376 = vmul.f32 %v374, %v320
      %v377 = vmul.f32 %v375, 1.442695
      %v378 = vpow.pop %v377
      %v379 = vmul.f32 %v376, 1.442695
      %v380 = vpow.pop %v379
      %v381 = vmul.f32 %v371, %v378
      %v382 = vmul.f32 %v372, %v380
      %v383 = vsub.f32 1.0, %v381
      %v384 = vsub.f32 1.0, %v382
      %v385 = vmul.f32 %v317, %v383
      %v386 = vmul.f32 %v318, %v384
      %v387 = vadd.f32 %v385, 1.0
      %v388 = vadd.f32 %v386, 1.0
      %v389 = vmul.f32 %v311, %v387
      %v390 = vmul.f32 %v312, %v388
      %v391 = vld [vmem:[%s3] sm:$0xff]
      %v392 = vld [vmem:[%s3 + $0x8] sm:$0xff]
      %v393 = vadd.f32 %v389, %v391
      %v394 = vadd.f32 %v390, %v392
      %vm395 = vcmask 261120
      %396 = vst.msk [vmem:[%s197] sm:$0xff] %vm395, %v393
      %397 = vst.msk [vmem:[%s197 + $0x8] sm:$0xff] %vm395, %v394
      %p398 = scmp.lt.s32.totalorder %s15, 1
      %s399 = scalar_select %p398, %s15, 1
      %s400 = smul.addr %s399, 2
      %s401 = smul.addr %s400, 8
      %s402 = scalar_lea.vmem %s4, %s401
      // Predicated region
      $region37: #{whisper_encoder_forward.11} parent=35 // pred_check
        %p403 = pneg %p122
      $region38: #{whisper_encoder_forward.11} parent=35 // pred_check_branch
        %405 = sbr.rel (%p403) target = $region40
      $region39: #{whisper_encoder_forward.11} parent=35 // pred_region
        _
      $region40: #{whisper_encoder_forward.11} parent=35 // pred_fallthru
        _
    $region36: #{whisper_encoder_forward.11} parent=5 // pred_fallthru
      _
    %p406 = scmp.le.s32.totalorder 2, %s10
    // Predicated region
    $region41: #{whisper_encoder_forward.11} parent=5 // pred_check
      %p407 = pneg %p406
    $region42: #{whisper_encoder_forward.11} parent=5 // pred_check_branch
      %409 = sbr.rel (%p407) target = $region44
    $region43: #{whisper_encoder_forward.11} parent=5 // pred_region
      %s410 = ssub.s32 %s10, 2
      // Predicated region
      $region45: #{whisper_encoder_forward.11} parent=43 // pred_check
        %p411 = pneg %p128
      $region46: #{whisper_encoder_forward.11} parent=43 // pred_check_branch
        %413 = sbr.rel (%p411) target = $region48
      $region47: #{whisper_encoder_forward.11} parent=43 // pred_region
        %p414 = scmp.lt.s32.totalorder %s16, 1
        %s415 = scalar_select %p414, %s16, 1
        %s416 = smul.addr %s415, 2
        %s417 = smul.addr %s416, 8
        %s418 = scalar_lea.vmem %s4, %s417
      $region48: #{whisper_encoder_forward.11} parent=43 // pred_fallthru
        _
    $region44: #{whisper_encoder_forward.11} parent=5 // pred_fallthru
      _
  $region6: #{whisper_encoder_forward.11} parent=0 // loop_footer
    %s14 = sadd.s32 1, %s10
  $region7: #{whisper_encoder_forward.11} parent=0 // loop_footer_branch
    %9 = sbr.rel target = $region3
  $region8: #{whisper_encoder_forward.11} parent=0 // loop_exit
    _

// kernel: whisper_encoder_forward.14
$region0: #{whisper_encoder_forward.14}
  #allocation0 [shape = 'u32[]', space=smem, size = 0x4, offset = 0x4, fixed_abs, tag = 'smem constant byte address 0x4 - core index']
  #allocation1 [shape = 'u32[72,128]{1,0:T(1,128)}', space=vmem, size = 0x9000, scoped, tag = 'internal scratch']
  #allocation2 [shape = 'f32[4,8,1]{2,1,0:T(8,128)}', space=vmem, size = 0x4000, scoped, tag = 'scratch operand']
  #allocation3 [shape = 'f32[4,8,1]{2,1,0:T(8,128)}', space=vmem, size = 0x4000, scoped, tag = 'scratch operand']
  #allocation4 [shape = 'f32[4,8,8]{2,1,0:T(8,128)}', space=vmem, size = 0x4000, scoped, tag = 'scratch operand']
  %s0 = inlined_call_operand.vmem [shape: f32[2,8,32], index: 0, kind: input, shape index: {}]
  %s1 = inlined_call_operand.vmem [shape: f32[2,8,32], index: 1, kind: input, shape index: {}]
  %s2 = inlined_call_operand.vmem [shape: f32[2,8,32], index: 2, kind: input, shape index: {}]
  %s3 = inlined_call_operand.vmem [shape: f32[2,8,32], index: 3, kind: output, shape index: {}]
  %s4 = sld [smem:[#allocation0]]
  $region53: #{whisper_encoder_forward.14} parent=0
    _
  %s6 = ssub.s32 1, %s4
  %s7 = scalar_select 0, %s6, %s4
  loop: start=0, step=1, limit=4
  $region2: #{whisper_encoder_forward.14} parent=0 // loop_pre_header
    _
  $region3: #{whisper_encoder_forward.14} parent=0 // loop_header
    %s9 = sphi 0, %s13
    %p10 = scmp.ge.s32.totalorder %s9, 4
    %s16 = sphi 0, %s28
    %s17 = sphi 0, %s24
    %s18 = sphi 0, %s16
    %s19 = sphi 0, %s17
    %s20 = sphi 0, %s18
    %s21 = sphi 0, %s19
    %s31 = sphi 0, %s33
    %s34 = sphi 0, %s31
    %s35 = sphi 0, %s34
    %s51 = sphi 0, %s35
    %s59 = sphi 0, %s61
    %s62 = sphi 0, %s59
    %s63 = sphi 0, %s62
    %s79 = sphi 0, %s63
    %s87 = sphi 0, %s89
    %s90 = sphi 0, %s87
    %s91 = sphi 0, %s90
    %s107 = sphi 0, %s91
    %s113 = sphi 0, %s115
    %s116 = sphi 0, %s113
    %s117 = sphi 0, %s116
    %s133 = sphi 0, %s117
  $region4: #{whisper_encoder_forward.14} parent=0 // loop_header_branch
    %12 = sbr.rel (%p10) target = $region8
  $region5: #{whisper_encoder_forward.14} parent=0 // loop_body
    %s14 = ssub.s32 %s9, 1
    %s15 = ssub.s32 %s9, 2
    %s22 = sadd.s32 1, %s17
    %p23 = scmp.ge.s32.totalorder %s22, 1
    %s24 = scalar_select %p23, 0, %s22
    %s25 = sadd.s32 1, %s16
    %s26 = scalar_select %p23, %s25, %s16
    %p27 = scmp.ge.s32.totalorder %s26, 2
    %s28 = scalar_select %p27, 0, %s26
    %s29 = ssub.s32 %s16, %s28
    %p30 = scmp.eq.s32.totalorder %s29, 0
    %s32 = sadd.s32 %s31, 1
    %s33 = scalar_select %p30, %s31, %s32
    %p36 = pneg %p30
    %p37 = scmp.eq.s32.totalorder %s9, 1
    %p38 = por %p36, %p37
    %p39 = scmp.ne.s32.totalorder %s31, %s34
    %p40 = scmp.eq.s32.totalorder %s9, 0
    %p41 = por %p39, %p40
    %p42 = scmp.ne.s32.totalorder %s31, %s34
    %p43 = scmp.eq.s32.totalorder %s14, 1
    %p44 = por %p42, %p43
    %p45 = scmp.ne.s32.totalorder %s34, %s35
    %p46 = scmp.eq.s32.totalorder %s14, 0
    %p47 = por %p45, %p46
    %p48 = scmp.ne.s32.totalorder %s34, %s35
    %p49 = scmp.eq.s32.totalorder %s15, 1
    %p50 = por %p48, %p49
    %p52 = scmp.ne.s32.totalorder %s35, %s51
    %p53 = scmp.eq.s32.totalorder %s15, 0
    %p54 = por %p52, %p53
    %s55 = ssub.s32 %s16, %s28
    %s56 = ssub.s32 %s17, %s24
    %s57 = sor.u32 %s55, %s56
    %p58 = scmp.eq.s32.totalorder %s57, 0
    %s60 = sadd.s32 %s59, 1
    %s61 = scalar_select %p58, %s59, %s60
    %p64 = pneg %p58
    %p65 = scmp.eq.s32.totalorder %s9, 1
    %p66 = por %p64, %p65
    %p67 = scmp.ne.s32.totalorder %s59, %s62
    %p68 = scmp.eq.s32.totalorder %s9, 0
    %p69 = por %p67, %p68
    %p70 = scmp.ne.s32.totalorder %s59, %s62
    %p71 = scmp.eq.s32.totalorder %s14, 1
    %p72 = por %p70, %p71
    %p73 = scmp.ne.s32.totalorder %s62, %s63
    %p74 = scmp.eq.s32.totalorder %s14, 0
    %p75 = por %p73, %p74
    %p76 = scmp.ne.s32.totalorder %s62, %s63
    %p77 = scmp.eq.s32.totalorder %s15, 1
    %p78 = por %p76, %p77
    %p80 = scmp.ne.s32.totalorder %s63, %s79
    %p81 = scmp.eq.s32.totalorder %s15, 0
    %p82 = por %p80, %p81
    %s83 = ssub.s32 %s16, %s28
    %s84 = ssub.s32 %s17, %s24
    %s85 = sor.u32 %s83, %s84
    %p86 = scmp.eq.s32.totalorder %s85, 0
    %s88 = sadd.s32 %s87, 1
    %s89 = scalar_select %p86, %s87, %s88
    %p92 = pneg %p86
    %p93 = scmp.eq.s32.totalorder %s9, 1
    %p94 = por %p92, %p93
    %p95 = scmp.ne.s32.totalorder %s87, %s90
    %p96 = scmp.eq.s32.totalorder %s9, 0
    %p97 = por %p95, %p96
    %p98 = scmp.ne.s32.totalorder %s87, %s90
    %p99 = scmp.eq.s32.totalorder %s14, 1
    %p100 = por %p98, %p99
    %p101 = scmp.ne.s32.totalorder %s90, %s91
    %p102 = scmp.eq.s32.totalorder %s14, 0
    %p103 = por %p101, %p102
    %p104 = scmp.ne.s32.totalorder %s90, %s91
    %p105 = scmp.eq.s32.totalorder %s15, 1
    %p106 = por %p104, %p105
    %p108 = scmp.ne.s32.totalorder %s91, %s107
    %p109 = scmp.eq.s32.totalorder %s15, 0
    %p110 = por %p108, %p109
    %s111 = ssub.s32 %s16, %s28
    %p112 = scmp.eq.s32.totalorder %s111, 0
    %s114 = sadd.s32 %s113, 1
    %s115 = scalar_select %p112, %s113, %s114
    %p118 = pneg %p112
    %p119 = scmp.eq.s32.totalorder %s9, 1
    %p120 = por %p118, %p119
    %p121 = scmp.ne.s32.totalorder %s113, %s116
    %p122 = scmp.eq.s32.totalorder %s9, 0
    %p123 = por %p121, %p122
    %p124 = scmp.ne.s32.totalorder %s113, %s116
    %p125 = scmp.eq.s32.totalorder %s14, 1
    %p126 = por %p124, %p125
    %p127 = scmp.ne.s32.totalorder %s116, %s117
    %p128 = scmp.eq.s32.totalorder %s14, 0
    %p129 = por %p127, %p128
    %p130 = scmp.ne.s32.totalorder %s116, %s117
    %p131 = scmp.eq.s32.totalorder %s15, 1
    %p132 = por %p130, %p131
    %p134 = scmp.ne.s32.totalorder %s117, %s133
    %p135 = scmp.eq.s32.totalorder %s15, 0
    %p136 = por %p134, %p135
    %p137 = scmp.le.s32.totalorder 1, %s9
    %p138 = scmp.lt.s32.totalorder %s9, 3
    %p139 = pnand %p137, %p138
    %p140 = pneg %p139
    // Predicated region
    $region9: #{whisper_encoder_forward.14} parent=5 // pred_check
      _
    $region10: #{whisper_encoder_forward.14} parent=5 // pred_check_branch
      %142 = sbr.rel (%p139) target = $region12
    $region11: #{whisper_encoder_forward.14} parent=5 // pred_region
      %s143 = ssub.s32 %s9, 1
    $region12: #{whisper_encoder_forward.14} parent=5 // pred_fallthru
      _
    %p144 = scmp.lt.s32.totalorder %s9, 2
    // Predicated region
    $region13: #{whisper_encoder_forward.14} parent=5 // pred_check
      %p145 = pneg %p144
    $region14: #{whisper_encoder_forward.14} parent=5 // pred_check_branch
      %147 = sbr.rel (%p145) target = $region16
    $region15: #{whisper_encoder_forward.14} parent=5 // pred_region
      // Predicated region
      $region17: #{whisper_encoder_forward.14} parent=15 // pred_check
        %p148 = pneg %p41
      $region18: #{whisper_encoder_forward.14} parent=15 // pred_check_branch
        %150 = sbr.rel (%p148) target = $region20
      $region19: #{whisper_encoder_forward.14} parent=15 // pred_region
        %p151 = scmp.lt.s32.totalorder %s16, 1
        %s152 = scalar_select %p151, %s16, 1
        %s153 = smul.addr %s152, 8
        %s154 = scalar_lea.vmem %s0, %s153
      $region20: #{whisper_encoder_forward.14} parent=15 // pred_fallthru
        _
      // Predicated region
      $region21: #{whisper_encoder_forward.14} parent=15 // pred_check
        %p155 = pneg %p69
      $region22: #{whisper_encoder_forward.14} parent=15 // pred_check_branch
        %157 = sbr.rel (%p155) target = $region24
      $region23: #{whisper_encoder_forward.14} parent=15 // pred_region
        %p158 = scmp.lt.s32.totalorder %s16, 1
        %s159 = scalar_select %p158, %s16, 1
        %p160 = scmp.lt.s32.totalorder %s17, 0
        %s161 = scalar_select %p160, %s17, 0
        %s162 = sadd.s32 %s161, %s159
        %s163 = smul.addr %s162, 8
        %s164 = scalar_lea.vmem %s1, %s163
      $region24: #{whisper_encoder_forward.14} parent=15 // pred_fallthru
        _
      // Predicated region
      $region25: #{whisper_encoder_forward.14} parent=15 // pred_check
        %p165 = pneg %p97
      $region26: #{whisper_encoder_forward.14} parent=15 // pred_check_branch
        %167 = sbr.rel (%p165) target = $region28
      $region27: #{whisper_encoder_forward.14} parent=15 // pred_region
        %p168 = scmp.lt.s32.totalorder %s16, 1
        %s169 = scalar_select %p168, %s16, 1
        %p170 = scmp.lt.s32.totalorder %s17, 0
        %s171 = scalar_select %p170, %s17, 0
        %s172 = sadd.s32 %s171, %s169
        %s173 = smul.addr %s172, 8
        %s174 = scalar_lea.vmem %s2, %s173
      $region28: #{whisper_encoder_forward.14} parent=15 // pred_fallthru
        _
    $region16: #{whisper_encoder_forward.14} parent=5 // pred_fallthru
      _
    %p175 = scmp.le.s32.totalorder 1, %s9
    %p176 = scmp.lt.s32.totalorder %s9, 3
    %p177 = pnand %p175, %p176
    %p178 = pneg %p177
    // Predicated region
    $region29: #{whisper_encoder_forward.14} parent=5 // pred_check
      _
    $region30: #{whisper_encoder_forward.14} parent=5 // pred_check_branch
      %180 = sbr.rel (%p177) target = $region32
    $region31: #{whisper_encoder_forward.14} parent=5 // pred_region
      %s181 = ssub.s32 %s9, 1
      %p182 = scmp.lt.s32.totalorder %s18, 1
      %s183 = scalar_select %p182, %s18, 1
      %s184 = smul.addr %s183, 8
      %s185 = scalar_lea.vmem %s0, %s184
      %p186 = pneg %p47
      %p187 = pneg %p44
      %p188 = scmp.lt.s32.totalorder %s18, 1
      %s189 = scalar_select %p188, %s18, 1
      %p190 = scmp.lt.s32.totalorder %s19, 0
      %s191 = scalar_select %p190, %s19, 0
      %s192 = sadd.s32 %s191, %s189
      %s193 = smul.addr %s192, 8
      %s194 = scalar_lea.vmem %s1, %s193
      %p195 = pneg %p75
      %p196 = pneg %p72
      %p197 = scmp.lt.s32.totalorder %s18, 1
      %s198 = scalar_select %p197, %s18, 1
      %p199 = scmp.lt.s32.totalorder %s19, 0
      %s200 = scalar_select %p199, %s19, 0
      %s201 = sadd.s32 %s200, %s198
      %s202 = smul.addr %s201, 8
      %s203 = scalar_lea.vmem %s2, %s202
      %p204 = pneg %p103
      %p205 = pneg %p100
      %p206 = pneg %p129
      %p207 = pneg %p126
      %p208 = scmp.lt.s32.totalorder %s18, 1
      %s209 = scalar_select %p208, %s18, 1
      %s210 = smul.addr %s209, 8
      %s211 = scalar_lea.vmem %s3, %s210
      %p212 = scmp.lt.s32.totalorder %s18, 1
      %s213 = scalar_select %p212, %s18, 1
      %s214 = smul.addr %s213, 8
      %s215 = scalar_lea.vmem %s0, %s214
      %p216 = scmp.lt.s32.totalorder %s18, 1
      %s217 = scalar_select %p216, %s18, 1
      %p218 = scmp.lt.s32.totalorder %s19, 0
      %s219 = scalar_select %p218, %s19, 0
      %s220 = sadd.s32 %s219, %s217
      %s221 = smul.addr %s220, 8
      %s222 = scalar_lea.vmem %s1, %s221
      %p223 = scmp.lt.s32.totalorder %s18, 1
      %s224 = scalar_select %p223, %s18, 1
      %p225 = scmp.lt.s32.totalorder %s19, 0
      %s226 = scalar_select %p225, %s19, 0
      %s227 = sadd.s32 %s226, %s224
      %s228 = smul.addr %s227, 8
      %s229 = scalar_lea.vmem %s2, %s228
      %p230 = scmp.lt.s32.totalorder %s18, 1
      %s231 = scalar_select %p230, %s18, 1
      %s232 = smul.addr %s231, 8
      %s233 = scalar_lea.vmem %s3, %s232
      %p234 = scmp.eq.s32.totalorder %s19, 0
      // Predicated region
      $region33: #{whisper_encoder_forward.14} parent=31 // pred_check
        %p235 = pneg %p234
      $region34: #{whisper_encoder_forward.14} parent=31 // pred_check_branch
        %237 = sbr.rel (%p235) target = $region36
      $region35: #{whisper_encoder_forward.14} parent=31 // pred_region
        %vm238 = vcmask 7168
        %239 = vst.msk [vmem:[#allocation2] sm:$0xff] %vm238, -inf
        %240 = vst.msk [vmem:[#allocation2 + $0x8] sm:$0xff] %vm238, -inf
        %241 = vst.msk [vmem:[#allocation2 + $0x10] sm:$0xff] %vm238, -inf
        %242 = vst.msk [vmem:[#allocation2 + $0x18] sm:$0xff] %vm238, -inf
        %243 = vst.msk [vmem:[#allocation3] sm:$0xff] %vm238, 0.0
        %244 = vst.msk [vmem:[#allocation3 + $0x8] sm:$0xff] %vm238, 0.0
        %245 = vst.msk [vmem:[#allocation3 + $0x10] sm:$0xff] %vm238, 0.0
        %246 = vst.msk [vmem:[#allocation3 + $0x18] sm:$0xff] %vm238, 0.0
        %vm247 = vcmask 64512
        %248 = vst.msk [vmem:[#allocation4] sm:$0xff] %vm247, 0.0
        %249 = vst.msk [vmem:[#allocation4 + $0x8] sm:$0xff] %vm247, 0.0
        %250 = vst.msk [vmem:[#allocation4 + $0x10] sm:$0xff] %vm247, 0.0
        %251 = vst.msk [vmem:[#allocation4 + $0x18] sm:$0xff] %vm247, 0.0
      $region36: #{whisper_encoder_forward.14} parent=31 // pred_fallthru
        _
      %v252 = vld [vmem:[%s215] sm:$0xff]
      %v253 = vmul.f32 %v252, 0.35355338
      %v254 = vld [vmem:[%s222] sm:$0xff]
      %v255 = vld [vmem:[%s229] sm:$0xff]
      %vm256 = vcmask 64512
      %v258 = vsel %vm256, %v253, 0
      %v261 = vsel %vm256, %v254, 0
      %263 = vmatpush.xpose.msra.mxu0 0.0
      %264 = vmatpush.xpose.msra.mxu0 0.0
      %265 = vmatpush.xpose.msra.mxu0 0.0
      %266 = vmatpush.xpose.msra.mxu0 0.0
      %267 = vmatpush.xpose.msra.mxu0 0.0
      %268 = vmatpush.xpose.msra.mxu0 0.0
      %269 = vmatpush.xpose.msra.mxu0 0.0
      %270 = vmatpush.xpose.msra.mxu0 0.0
      %271 = vmatpush.xpose.msra.mxu0 0.0
      %272 = vmatpush.xpose.msra.mxu0 0.0
      %273 = vmatpush.xpose.msra.mxu0 0.0
      %274 = vmatpush.xpose.msra.mxu0 0.0
      %275 = vmatpush.xpose.msra.mxu0 0.0
      %276 = vmatpush.xpose.msra.mxu0 0.0
      %277 = vmatpush.xpose.msra.mxu0 0.0
      %278 = vmatpush.xpose.msra.mxu0 %v261
      %279 = vmatmul.f32.gmra.mxu0 %v258
      %v280 = vpop.f32.mrf.mxu0
      %v281 = vadd.f32 0.0, %v280
      %282 = vdwg.mxu0
      %v283 = vld [vmem:[#allocation2] sm:$0xff]
      %v284 = vsel %vm256, %v281, -inf
      %285 = vmax.xlane.f32.xlu0 %v284
      %v286 = vpop.xlane.xlu0 %285
      %v287 = vmax.f32 %v283, %v286
      %v288 = vsub.f32 %v283, %v287
      %v289 = vmul.f32 %v288, 1.442695
      %v290 = vpow.pop %v289
      %292 = vset.pattern.permute.xlu0 0
      %293 = vperm.xlu0 %292, %v287
      %v294 = vpop.permute.xlu0 %293
      %v296 = vsub.f32 %v281, %v294
      %v297 = vmul.f32 %v296, 1.442695
      %v298 = vpow.pop %v297
      %v299 = vld [vmem:[#allocation3] sm:$0xff]
      %v300 = vmul.f32 %v290, %v299
      %v301 = vsel %vm256, %v298, 0.0
      %302 = vadd.xlane.f32.xlu0 %v301
      %v303 = vpop.xlane.xlu0 %302
      %v304 = vadd.f32 %v300, %v303
      %vm305 = vcmask 7168
      %306 = vst.msk [vmem:[#allocation3] sm:$0xff] %vm305, %v304
      %v307 = vld [vmem:[#allocation4] sm:$0xff]
      %309 = vset.pattern.permute.xlu0 0
      %310 = vperm.xlu0 %309, %v290
      %v311 = vpop.permute.xlu0 %310
      %v313 = vmul.f32 %v311, %v307
      %v315 = vsel %vm256, %v298, 0
      %317 = vmatpush.msra.mxu0 0.0
      %318 = vmatpush.msra.mxu0 0.0
      %319 = vmatpush.msra.mxu0 0.0
      %320 = vmatpush.msra.mxu0 0.0
      %321 = vmatpush.msra.mxu0 0.0
      %322 = vmatpush.msra.mxu0 0.0
      %323 = vmatpush.msra.mxu0 0.0
      %324 = vmatpush.msra.mxu0 0.0
      %325 = vmatpush.msra.mxu0 0.0
      %326 = vmatpush.msra.mxu0 0.0
      %327 = vmatpush.msra.mxu0 0.0
      %328 = vmatpush.msra.mxu0 0.0
      %329 = vmatpush.msra.mxu0 0.0
      %330 = vmatpush.msra.mxu0 0.0
      %331 = vmatpush.msra.mxu0 0.0
      %332 = vmatpush.msra.mxu0 %v255
      %333 = vmatmul.f32.gmra.mxu0 %v315
      %v334 = vpop.f32.mrf.mxu0
      %v335 = vadd.f32 0.0, %v334
      %336 = vdwg.mxu0
      %v337 = vadd.f32 %v313, %v335
      %338 = vst.msk [vmem:[#allocation4] sm:$0xff] %vm256, %v337
      %339 = vst.msk [vmem:[#allocation2] sm:$0xff] %vm305, %v287
      %340 = vrot.lane.b32.xlu0 %v253, 120
      %v341 = vpop.permute.xlu0 %340
      %342 = vrot.lane.b32.xlu0 %v254, 120
      %v343 = vpop.permute.xlu0 %342
      %v344 = vsel %vm256, %v341, 0
      %v346 = vsel %vm256, %v343, 0
      %348 = vmatpush.xpose.msra.mxu0 0.0
      %349 = vmatpush.xpose.msra.mxu0 0.0
      %350 = vmatpush.xpose.msra.mxu0 0.0
      %351 = vmatpush.xpose.msra.mxu0 0.0
      %352 = vmatpush.xpose.msra.mxu0 0.0
      %353 = vmatpush.xpose.msra.mxu0 0.0
      %354 = vmatpush.xpose.msra.mxu0 0.0
      %355 = vmatpush.xpose.msra.mxu0 0.0
      %356 = vmatpush.xpose.msra.mxu0 0.0
      %357 = vmatpush.xpose.msra.mxu0 0.0
      %358 = vmatpush.xpose.msra.mxu0 0.0
      %359 = vmatpush.xpose.msra.mxu0 0.0
      %360 = vmatpush.xpose.msra.mxu0 0.0
      %361 = vmatpush.xpose.msra.mxu0 0.0
      %362 = vmatpush.xpose.msra.mxu0 0.0
      %363 = vmatpush.xpose.msra.mxu0 %v346
      %364 = vmatmul.f32.gmra.mxu0 %v344
      %v365 = vpop.f32.mrf.mxu0
      %v366 = vadd.f32 0.0, %v365
      %367 = vdwg.mxu0
      %s368 = scalar_lea.vmem [#allocation2], 8
      %v369 = vld [vmem:[%s368] sm:$0xff]
      %v370 = vsel %vm256, %v366, -inf
      %371 = vmax.xlane.f32.xlu0 %v370
      %v372 = vpop.xlane.xlu0 %371
      %v373 = vmax.f32 %v369, %v372
      %v374 = vsub.f32 %v369, %v373
      %v375 = vmul.f32 %v374, 1.442695
      %v376 = vpow.pop %v375
      %378 = vset.pattern.permute.xlu0 0
      %379 = vperm.xlu0 %378, %v373
      %v380 = vpop.permute.xlu0 %379
      %v382 = vsub.f32 %v366, %v380
      %v383 = vmul.f32 %v382, 1.442695
      %v384 = vpow.pop %v383
      %s385 = scalar_lea.vmem [#allocation3], 8
      %v386 = vld [vmem:[%s385] sm:$0xff]
      %v387 = vmul.f32 %v376, %v386
      %v388 = vsel %vm256, %v384, 0.0
      %389 = vadd.xlane.f32.xlu0 %v388
      %v390 = vpop.xlane.xlu0 %389
      %v391 = vadd.f32 %v387, %v390
      %392 = vst.msk [vmem:[%s385] sm:$0xff] %vm305, %v391
      %s393 = scalar_lea.vmem [#allocation4], 8
      %v394 = vld [vmem:[%s393] sm:$0xff]
      %396 = vset.pattern.permute.xlu0 0
      %397 = vperm.xlu0 %396, %v376
      %v398 = vpop.permute.xlu0 %397
      %v400 = vmul.f32 %v398, %v394
      %402 = vrot.lane.b32.xlu0 %v255, 120
      %v403 = vpop.permute.xlu0 %402
      %v406 = vsel %vm256, %v384, 0
      %408 = vmatpush.msra.mxu0 0.0
      %409 = vmatpush.msra.mxu0 0.0
      %410 = vmatpush.msra.mxu0 0.0
      %411 = vmatpush.msra.mxu0 0.0
      %412 = vmatpush.msra.mxu0 0.0
      %413 = vmatpush.msra.mxu0 0.0
      %414 = vmatpush.msra.mxu0 0.0
      %415 = vmatpush.msra.mxu0 0.0
      %416 = vmatpush.msra.mxu0 0.0
      %417 = vmatpush.msra.mxu0 0.0
      %418 = vmatpush.msra.mxu0 0.0
      %419 = vmatpush.msra.mxu0 0.0
      %420 = vmatpush.msra.mxu0 0.0
      %421 = vmatpush.msra.mxu0 0.0
      %422 = vmatpush.msra.mxu0 0.0
      %423 = vmatpush.msra.mxu0 %v403
      %424 = vmatmul.f32.gmra.mxu0 %v406
      %v425 = vpop.f32.mrf.mxu0
      %v426 = vadd.f32 0.0, %v425
      %427 = vdwg.mxu0
      %v428 = vadd.f32 %v400, %v426
      %429 = vst.msk [vmem:[%s393] sm:$0xff] %vm256, %v428
      %430 = vst.msk [vmem:[%s368] sm:$0xff] %vm305, %v373
      %431 = vrot.lane.b32.xlu0 %v253, 112
      %v432 = vpop.permute.xlu0 %431
      %433 = vrot.lane.b32.xlu0 %v254, 112
      %v434 = vpop.permute.xlu0 %433
      %v435 = vsel %vm256, %v432, 0
      %v437 = vsel %vm256, %v434, 0
      %439 = vmatpush.xpose.msra.mxu0 0.0
      %440 = vmatpush.xpose.msra.mxu0 0.0
      %441 = vmatpush.xpose.msra.mxu0 0.0
      %442 = vmatpush.xpose.msra.mxu0 0.0
      %443 = vmatpush.xpose.msra.mxu0 0.0
      %444 = vmatpush.xpose.msra.mxu0 0.0
      %445 = vmatpush.xpose.msra.mxu0 0.0
      %446 = vmatpush.xpose.msra.mxu0 0.0
      %447 = vmatpush.xpose.msra.mxu0 0.0
      %448 = vmatpush.xpose.msra.mxu0 0.0
      %449 = vmatpush.xpose.msra.mxu0 0.0
      %450 = vmatpush.xpose.msra.mxu0 0.0
      %451 = vmatpush.xpose.msra.mxu0 0.0
      %452 = vmatpush.xpose.msra.mxu0 0.0
      %453 = vmatpush.xpose.msra.mxu0 0.0
      %454 = vmatpush.xpose.msra.mxu0 %v437
      %455 = vmatmul.f32.gmra.mxu0 %v435
      %v456 = vpop.f32.mrf.mxu0
      %v457 = vadd.f32 0.0, %v456
      %458 = vdwg.mxu0
      %s459 = scalar_lea.vmem [#allocation2], 16
      %v460 = vld [vmem:[%s459] sm:$0xff]
      %v461 = vsel %vm256, %v457, -inf
      %462 = vmax.xlane.f32.xlu0 %v461
      %v463 = vpop.xlane.xlu0 %462
      %v464 = vmax.f32 %v460, %v463
      %v465 = vsub.f32 %v460, %v464
      %v466 = vmul.f32 %v465, 1.442695
      %v467 = vpow.pop %v466
      %469 = vset.pattern.permute.xlu0 0
      %470 = vperm.xlu0 %469, %v464
      %v471 = vpop.permute.xlu0 %470
      %v473 = vsub.f32 %v457, %v471
      %v474 = vmul.f32 %v473, 1.442695
      %v475 = vpow.pop %v474
      %s476 = scalar_lea.vmem [#allocation3], 16
      %v477 = vld [vmem:[%s476] sm:$0xff]
      %v478 = vmul.f32 %v467, %v477
      %v479 = vsel %vm256, %v475, 0.0
      %480 = vadd.xlane.f32.xlu0 %v479
      %v481 = vpop.xlane.xlu0 %480
      %v482 = vadd.f32 %v478, %v481
      %483 = vst.msk [vmem:[%s476] sm:$0xff] %vm305, %v482
      %s484 = scalar_lea.vmem [#allocation4], 16
      %v485 = vld [vmem:[%s484] sm:$0xff]
      %487 = vset.pattern.permute.xlu0 0
      %488 = vperm.xlu0 %487, %v467
      %v489 = vpop.permute.xlu0 %488
      %v491 = vmul.f32 %v489, %v485
      %492 = vrot.lane.b32.xlu0 %v255, 112
      %v493 = vpop.permute.xlu0 %492
      %v496 = vsel %vm256, %v475, 0
      %498 = vmatpush.msra.mxu0 0.0
      %499 = vmatpush.msra.mxu0 0.0
      %500 = vmatpush.msra.mxu0 0.0
      %501 = vmatpush.msra.mxu0 0.0
      %502 = vmatpush.msra.mxu0 0.0
      %503 = vmatpush.msra.mxu0 0.0
      %504 = vmatpush.msra.mxu0 0.0
      %505 = vmatpush.msra.mxu0 0.0
      %506 = vmatpush.msra.mxu0 0.0
      %507 = vmatpush.msra.mxu0 0.0
      %508 = vmatpush.msra.mxu0 0.0
      %509 = vmatpush.msra.mxu0 0.0
      %510 = vmatpush.msra.mxu0 0.0
      %511 = vmatpush.msra.mxu0 0.0
      %512 = vmatpush.msra.mxu0 0.0
      %513 = vmatpush.msra.mxu0 %v493
      %514 = vmatmul.f32.gmra.mxu0 %v496
      %v515 = vpop.f32.mrf.mxu0
      %v516 = vadd.f32 0.0, %v515
      %517 = vdwg.mxu0
      %v518 = vadd.f32 %v491, %v516
      %519 = vst.msk [vmem:[%s484] sm:$0xff] %vm256, %v518
      %520 = vst.msk [vmem:[%s459] sm:$0xff] %vm305, %v464
      %521 = vrot.lane.b32.xlu0 %v253, 104
      %v522 = vpop.permute.xlu0 %521
      %523 = vrot.lane.b32.xlu0 %v254, 104
      %v524 = vpop.permute.xlu0 %523
      %v525 = vsel %vm256, %v522, 0
      %v527 = vsel %vm256, %v524, 0
      %529 = vmatpush.xpose.msra.mxu0 0.0
      %530 = vmatpush.xpose.msra.mxu0 0.0
      %531 = vmatpush.xpose.msra.mxu0 0.0
      %532 = vmatpush.xpose.msra.mxu0 0.0
      %533 = vmatpush.xpose.msra.mxu0 0.0
      %534 = vmatpush.xpose.msra.mxu0 0.0
      %535 = vmatpush.xpose.msra.mxu0 0.0
      %536 = vmatpush.xpose.msra.mxu0 0.0
      %537 = vmatpush.xpose.msra.mxu0 0.0
      %538 = vmatpush.xpose.msra.mxu0 0.0
      %539 = vmatpush.xpose.msra.mxu0 0.0
      %540 = vmatpush.xpose.msra.mxu0 0.0
      %541 = vmatpush.xpose.msra.mxu0 0.0
      %542 = vmatpush.xpose.msra.mxu0 0.0
      %543 = vmatpush.xpose.msra.mxu0 0.0
      %544 = vmatpush.xpose.msra.mxu0 %v527
      %545 = vmatmul.f32.gmra.mxu0 %v525
      %v546 = vpop.f32.mrf.mxu0
      %v547 = vadd.f32 0.0, %v546
      %548 = vdwg.mxu0
      %s549 = scalar_lea.vmem [#allocation2], 24
      %v550 = vld [vmem:[%s549] sm:$0xff]
      %v551 = vsel %vm256, %v547, -inf
      %552 = vmax.xlane.f32.xlu0 %v551
      %v553 = vpop.xlane.xlu0 %552
      %v554 = vmax.f32 %v550, %v553
      %v555 = vsub.f32 %v550, %v554
      %v556 = vmul.f32 %v555, 1.442695
      %v557 = vpow.pop %v556
      %559 = vset.pattern.permute.xlu0 0
      %560 = vperm.xlu0 %559, %v554
      %v561 = vpop.permute.xlu0 %560
      %v563 = vsub.f32 %v547, %v561
      %v564 = vmul.f32 %v563, 1.442695
      %v565 = vpow.pop %v564
      %s566 = scalar_lea.vmem [#allocation3], 24
      %v567 = vld [vmem:[%s566] sm:$0xff]
      %v568 = vmul.f32 %v557, %v567
      %v569 = vsel %vm256, %v565, 0.0
      %570 = vadd.xlane.f32.xlu0 %v569
      %v571 = vpop.xlane.xlu0 %570
      %v572 = vadd.f32 %v568, %v571
      %573 = vst.msk [vmem:[%s566] sm:$0xff] %vm305, %v572
      %s574 = scalar_lea.vmem [#allocation4], 24
      %v575 = vld [vmem:[%s574] sm:$0xff]
      %577 = vset.pattern.permute.xlu0 0
      %578 = vperm.xlu0 %577, %v557
      %v579 = vpop.permute.xlu0 %578
      %v581 = vmul.f32 %v579, %v575
      %582 = vrot.lane.b32.xlu0 %v255, 104
      %v583 = vpop.permute.xlu0 %582
      %v586 = vsel %vm256, %v565, 0
      %588 = vmatpush.msra.mxu0 0.0
      %589 = vmatpush.msra.mxu0 0.0
      %590 = vmatpush.msra.mxu0 0.0
      %591 = vmatpush.msra.mxu0 0.0
      %592 = vmatpush.msra.mxu0 0.0
      %593 = vmatpush.msra.mxu0 0.0
      %594 = vmatpush.msra.mxu0 0.0
      %595 = vmatpush.msra.mxu0 0.0
      %596 = vmatpush.msra.mxu0 0.0
      %597 = vmatpush.msra.mxu0 0.0
      %598 = vmatpush.msra.mxu0 0.0
      %599 = vmatpush.msra.mxu0 0.0
      %600 = vmatpush.msra.mxu0 0.0
      %601 = vmatpush.msra.mxu0 0.0
      %602 = vmatpush.msra.mxu0 0.0
      %603 = vmatpush.msra.mxu0 %v583
      %604 = vmatmul.f32.gmra.mxu0 %v586
      %v605 = vpop.f32.mrf.mxu0
      %v606 = vadd.f32 0.0, %v605
      %607 = vdwg.mxu0
      %v608 = vadd.f32 %v581, %v606
      %609 = vst.msk [vmem:[%s574] sm:$0xff] %vm256, %v608
      %610 = vst.msk [vmem:[%s549] sm:$0xff] %vm305, %v554
      // Predicated region
      $region37: #{whisper_encoder_forward.14} parent=31 // pred_check
        %p611 = pneg %p234
      $region38: #{whisper_encoder_forward.14} parent=31 // pred_check_branch
        %613 = sbr.rel (%p611) target = $region40
      $region39: #{whisper_encoder_forward.14} parent=31 // pred_region
        %v614 = vld [vmem:[#allocation4] sm:$0xff]
        %v615 = vld [vmem:[#allocation3] sm:$0xff]
        %617 = vset.pattern.permute.xlu0 0
        %618 = vperm.xlu0 %617, %v615
        %v619 = vpop.permute.xlu0 %618
        %v621 = vrcp.pop %v619
        %v622 = vmul.f32 %v619, %v621
        %v623 = vsub.f32 1.0, %v622
        %v624 = vmul.f32 %v621, %v623
        %v625 = vadd.f32 %v621, %v624
        %vm626 = vweird.f32 %v619
        %vm627 = vweird.f32 %v621
        %vm628 = vmor %vm626, %vm627
        %v629 = vsel %vm628, %v621, %v625
        %v630 = vand.u32 2147483647, %v619
        %vm631 = vcmp.eq.f32.partialorder %v630, 8.507059e+37
        %v632 = vand.u32 %v619, 2147483648
        %v633 = vor.u32 1.1754944e-38, %v632
        %v634 = vsel %vm631, %v633, %v629
        %v635 = vmul.f32 %v614, %v634
        %v636 = vld [vmem:[%s393] sm:$0xff]
        %v637 = vld [vmem:[%s385] sm:$0xff]
        %639 = vset.pattern.permute.xlu0 0
        %640 = vperm.xlu0 %639, %v637
        %v641 = vpop.permute.xlu0 %640
        %v643 = vrcp.pop %v641
        %v644 = vmul.f32 %v641, %v643
        %v645 = vsub.f32 1.0, %v644
        %v646 = vmul.f32 %v643, %v645
        %v647 = vadd.f32 %v643, %v646
        %vm648 = vweird.f32 %v641
        %vm649 = vweird.f32 %v643
        %vm650 = vmor %vm648, %vm649
        %v651 = vsel %vm650, %v643, %v647
        %v652 = vand.u32 2147483647, %v641
        %vm653 = vcmp.eq.f32.partialorder %v652, 8.507059e+37
        %v654 = vand.u32 %v641, 2147483648
        %v655 = vor.u32 1.1754944e-38, %v654
        %v656 = vsel %vm653, %v655, %v651
        %v657 = vmul.f32 %v636, %v656
        %v658 = vld [vmem:[%s484] sm:$0xff]
        %v659 = vld [vmem:[%s476] sm:$0xff]
        %661 = vset.pattern.permute.xlu0 0
        %662 = vperm.xlu0 %661, %v659
        %v663 = vpop.permute.xlu0 %662
        %v665 = vrcp.pop %v663
        %v666 = vmul.f32 %v663, %v665
        %v667 = vsub.f32 1.0, %v666
        %v668 = vmul.f32 %v665, %v667
        %v669 = vadd.f32 %v665, %v668
        %vm670 = vweird.f32 %v663
        %vm671 = vweird.f32 %v665
        %vm672 = vmor %vm670, %vm671
        %v673 = vsel %vm672, %v665, %v669
        %v674 = vand.u32 2147483647, %v663
        %vm675 = vcmp.eq.f32.partialorder %v674, 8.507059e+37
        %v676 = vand.u32 %v663, 2147483648
        %v677 = vor.u32 1.1754944e-38, %v676
        %v678 = vsel %vm675, %v677, %v673
        %v679 = vmul.f32 %v658, %v678
        %v680 = vld [vmem:[%s574] sm:$0xff]
        %v681 = vld [vmem:[%s566] sm:$0xff]
        %683 = vset.pattern.permute.xlu0 0
        %684 = vperm.xlu0 %683, %v681
        %v685 = vpop.permute.xlu0 %684
        %v687 = vrcp.pop %v685
        %v688 = vmul.f32 %v685, %v687
        %v689 = vsub.f32 1.0, %v688
        %v690 = vmul.f32 %v687, %v689
        %v691 = vadd.f32 %v687, %v690
        %vm692 = vweird.f32 %v685
        %vm693 = vweird.f32 %v687
        %vm694 = vmor %vm692, %vm693
        %v695 = vsel %vm694, %v687, %v691
        %v696 = vand.u32 2147483647, %v685
        %vm697 = vcmp.eq.f32.partialorder %v696, 8.507059e+37
        %v698 = vand.u32 %v685, 2147483648
        %v699 = vor.u32 1.1754944e-38, %v698
        %v700 = vsel %vm697, %v699, %v695
        %v701 = vmul.f32 %v680, %v700
        %703 = vrot.lane.b32.xlu0 %v657, 8
        %v704 = vpop.permute.xlu0 %703
        %707 = vrot.lane.b32.xlu0 %v679, 16
        %v708 = vpop.permute.xlu0 %707
        %711 = vrot.lane.b32.xlu0 %v701, 24
        %v712 = vpop.permute.xlu0 %711
        %v714 = vsel %vm256, %v635, %v704
        %vm715 = vcmask 130048
        %v716 = vsel %vm715, %v714, %v708
        %vm717 = vcmask 195584
        %v718 = vsel %vm717, %v716, %v712
        %vm719 = vcmask 261120
        %720 = vst.msk [vmem:[%s233] sm:$0xff] %vm719, %v718
      $region40: #{whisper_encoder_forward.14} parent=31 // pred_fallthru
        _
      %p721 = scmp.lt.s32.totalorder %s18, 1
      %s722 = scalar_select %p721, %s18, 1
      %s723 = smul.addr %s722, 8
      %s724 = scalar_lea.vmem %s3, %s723
      // Predicated region
      $region41: #{whisper_encoder_forward.14} parent=31 // pred_check
        %p725 = pneg %p126
      $region42: #{whisper_encoder_forward.14} parent=31 // pred_check_branch
        %727 = sbr.rel (%p725) target = $region44
      $region43: #{whisper_encoder_forward.14} parent=31 // pred_region
        _
      $region44: #{whisper_encoder_forward.14} parent=31 // pred_fallthru
        _
    $region32: #{whisper_encoder_forward.14} parent=5 // pred_fallthru
      _
    %p728 = scmp.le.s32.totalorder 2, %s9
    // Predicated region
    $region45: #{whisper_encoder_forward.14} parent=5 // pred_check
      %p729 = pneg %p728
    $region46: #{whisper_encoder_forward.14} parent=5 // pred_check_branch
      %731 = sbr.rel (%p729) target = $region48
    $region47: #{whisper_encoder_forward.14} parent=5 // pred_region
      %s732 = ssub.s32 %s9, 2
      // Predicated region
      $region49: #{whisper_encoder_forward.14} parent=47 // pred_check
        %p733 = pneg %p132
      $region50: #{whisper_encoder_forward.14} parent=47 // pred_check_branch
        %735 = sbr.rel (%p733) target = $region52
      $region51: #{whisper_encoder_forward.14} parent=47 // pred_region
        %p736 = scmp.lt.s32.totalorder %s20, 1
        %s737 = scalar_select %p736, %s20, 1
        %s738 = smul.addr %s737, 8
        %s739 = scalar_lea.vmem %s3, %s738
      $region52: #{whisper_encoder_forward.14} parent=47 // pred_fallthru
        _
    $region48: #{whisper_encoder_forward.14} parent=5 // pred_fallthru
      _
  $region6: #{whisper_encoder_forward.14} parent=0 // loop_footer
    %s13 = sadd.s32 1, %s9
  $region7: #{whisper_encoder_forward.14} parent=0 // loop_footer_branch
    %8 = sbr.rel target = $region3
  $region8: #{whisper_encoder_forward.14} parent=0 // loop_exit
    _

// kernel: whisper_encoder_forward.15
$region0: #{whisper_encoder_forward.15}
  #allocation0 [shape = 'u32[]', space=smem, size = 0x4, offset = 0x4, fixed_abs, tag = 'smem constant byte address 0x4 - core index']
  #allocation1 [shape = 'u32[72,128]{1,0:T(1,128)}', space=vmem, size = 0x9000, scoped, tag = 'internal scratch']
  %s0 = inlined_call_operand.vmem [shape: f32[16,32], index: 0, kind: input, shape index: {}]
  %s1 = inlined_call_operand.vmem [shape: f32[32,32], index: 1, kind: input, shape index: {}]
  %s2 = inlined_call_operand.vmem [shape: f32[1,32], index: 2, kind: input, shape index: {}]
  %s3 = inlined_call_operand.vmem [shape: f32[16,32], index: 3, kind: input, shape index: {}]
  %s4 = inlined_call_operand.vmem [shape: f32[16,32], index: 4, kind: output, shape index: {}]
  %s5 = sld [smem:[#allocation0]]
  $region49: #{whisper_encoder_forward.15} parent=0
    _
  %s7 = ssub.s32 1, %s5
  %s8 = scalar_select 0, %s7, %s5
  loop: start=0, step=1, limit=4
  $region2: #{whisper_encoder_forward.15} parent=0 // loop_pre_header
    _
  $region3: #{whisper_encoder_forward.15} parent=0 // loop_header
    %s10 = sphi 0, %s14
    %p11 = scmp.ge.s32.totalorder %s10, 4
    %s20 = sphi 0, %s22
    %s23 = sphi 0, %s20
    %s24 = sphi 0, %s23
    %s40 = sphi 0, %s24
    %s44 = sphi 0, %s44
    %s46 = sphi 0, %s44
    %s47 = sphi 0, %s46
    %s61 = sphi 0, %s47
    %s65 = sphi 0, %s65
    %s67 = sphi 0, %s65
    %s68 = sphi 0, %s67
    %s82 = sphi 0, %s68
    %s88 = sphi 0, %s90
    %s91 = sphi 0, %s88
    %s92 = sphi 0, %s91
    %s108 = sphi 0, %s92
    %s114 = sphi 0, %s116
    %s117 = sphi 0, %s114
    %s118 = sphi 0, %s117
    %s134 = sphi 0, %s118
  $region4: #{whisper_encoder_forward.15} parent=0 // loop_header_branch
    %13 = sbr.rel (%p11) target = $region8
  $region5: #{whisper_encoder_forward.15} parent=0 // loop_body
    %s15 = ssub.s32 %s10, 1
    %s16 = ssub.s32 %s10, 2
    %s17 = sadd.s32 %s10, 1
    %s18 = ssub.s32 %s10, %s17
    %p19 = scmp.eq.s32.totalorder %s18, 0
    %s21 = sadd.s32 %s20, 1
    %s22 = scalar_select %p19, %s20, %s21
    %p25 = pneg %p19
    %p26 = scmp.eq.s32.totalorder %s10, 1
    %p27 = por %p25, %p26
    %p28 = scmp.ne.s32.totalorder %s20, %s23
    %p29 = scmp.eq.s32.totalorder %s10, 0
    %p30 = por %p28, %p29
    %p31 = scmp.ne.s32.totalorder %s20, %s23
    %p32 = scmp.eq.s32.totalorder %s15, 1
    %p33 = por %p31, %p32
    %p34 = scmp.ne.s32.totalorder %s23, %s24
    %p35 = scmp.eq.s32.totalorder %s15, 0
    %p36 = por %p34, %p35
    %p37 = scmp.ne.s32.totalorder %s23, %s24
    %p38 = scmp.eq.s32.totalorder %s16, 1
    %p39 = por %p37, %p38
    %p41 = scmp.ne.s32.totalorder %s24, %s40
    %p42 = scmp.eq.s32.totalorder %s16, 0
    %p43 = por %p41, %p42
    %s45 = sadd.s32 %s44, 1
    %p48 = scmp.eq.s32.totalorder %s10, 1
    %p49 = scmp.ne.s32.totalorder %s44, %s46
    %p50 = scmp.eq.s32.totalorder %s10, 0
    %p51 = por %p49, %p50
    %p52 = scmp.ne.s32.totalorder %s44, %s46
    %p53 = scmp.eq.s32.totalorder %s15, 1
    %p54 = por %p52, %p53
    %p55 = scmp.ne.s32.totalorder %s46, %s47
    %p56 = scmp.eq.s32.totalorder %s15, 0
    %p57 = por %p55, %p56
    %p58 = scmp.ne.s32.totalorder %s46, %s47
    %p59 = scmp.eq.s32.totalorder %s16, 1
    %p60 = por %p58, %p59
    %p62 = scmp.ne.s32.totalorder %s47, %s61
    %p63 = scmp.eq.s32.totalorder %s16, 0
    %p64 = por %p62, %p63
    %s66 = sadd.s32 %s65, 1
    %p69 = scmp.eq.s32.totalorder %s10, 1
    %p70 = scmp.ne.s32.totalorder %s65, %s67
    %p71 = scmp.eq.s32.totalorder %s10, 0
    %p72 = por %p70, %p71
    %p73 = scmp.ne.s32.totalorder %s65, %s67
    %p74 = scmp.eq.s32.totalorder %s15, 1
    %p75 = por %p73, %p74
    %p76 = scmp.ne.s32.totalorder %s67, %s68
    %p77 = scmp.eq.s32.totalorder %s15, 0
    %p78 = por %p76, %p77
    %p79 = scmp.ne.s32.totalorder %s67, %s68
    %p80 = scmp.eq.s32.totalorder %s16, 1
    %p81 = por %p79, %p80
    %p83 = scmp.ne.s32.totalorder %s68, %s82
    %p84 = scmp.eq.s32.totalorder %s16, 0
    %p85 = por %p83, %p84
    %s86 = ssub.s32 %s10, %s17
    %p87 = scmp.eq.s32.totalorder %s86, 0
    %s89 = sadd.s32 %s88, 1
    %s90 = scalar_select %p87, %s88, %s89
    %p93 = pneg %p87
    %p94 = scmp.eq.s32.totalorder %s10, 1
    %p95 = por %p93, %p94
    %p96 = scmp.ne.s32.totalorder %s88, %s91
    %p97 = scmp.eq.s32.totalorder %s10, 0
    %p98 = por %p96, %p97
    %p99 = scmp.ne.s32.totalorder %s88, %s91
    %p100 = scmp.eq.s32.totalorder %s15, 1
    %p101 = por %p99, %p100
    %p102 = scmp.ne.s32.totalorder %s91, %s92
    %p103 = scmp.eq.s32.totalorder %s15, 0
    %p104 = por %p102, %p103
    %p105 = scmp.ne.s32.totalorder %s91, %s92
    %p106 = scmp.eq.s32.totalorder %s16, 1
    %p107 = por %p105, %p106
    %p109 = scmp.ne.s32.totalorder %s92, %s108
    %p110 = scmp.eq.s32.totalorder %s16, 0
    %p111 = por %p109, %p110
    %s112 = ssub.s32 %s10, %s17
    %p113 = scmp.eq.s32.totalorder %s112, 0
    %s115 = sadd.s32 %s114, 1
    %s116 = scalar_select %p113, %s114, %s115
    %p119 = pneg %p113
    %p120 = scmp.eq.s32.totalorder %s10, 1
    %p121 = por %p119, %p120
    %p122 = scmp.ne.s32.totalorder %s114, %s117
    %p123 = scmp.eq.s32.totalorder %s10, 0
    %p124 = por %p122, %p123
    %p125 = scmp.ne.s32.totalorder %s114, %s117
    %p126 = scmp.eq.s32.totalorder %s15, 1
    %p127 = por %p125, %p126
    %p128 = scmp.ne.s32.totalorder %s117, %s118
    %p129 = scmp.eq.s32.totalorder %s15, 0
    %p130 = por %p128, %p129
    %p131 = scmp.ne.s32.totalorder %s117, %s118
    %p132 = scmp.eq.s32.totalorder %s16, 1
    %p133 = por %p131, %p132
    %p135 = scmp.ne.s32.totalorder %s118, %s134
    %p136 = scmp.eq.s32.totalorder %s16, 0
    %p137 = por %p135, %p136
    %p138 = scmp.le.s32.totalorder 1, %s10
    %p139 = scmp.lt.s32.totalorder %s10, 3
    %p140 = pnand %p138, %p139
    %p141 = pneg %p140
    // Predicated region
    $region9: #{whisper_encoder_forward.15} parent=5 // pred_check
      _
    $region10: #{whisper_encoder_forward.15} parent=5 // pred_check_branch
      %143 = sbr.rel (%p140) target = $region12
    $region11: #{whisper_encoder_forward.15} parent=5 // pred_region
      %s144 = ssub.s32 %s10, 1
      // Predicated region
      $region13: #{whisper_encoder_forward.15} parent=11 // pred_check
        %p145 = pneg %p57
      $region14: #{whisper_encoder_forward.15} parent=11 // pred_check_branch
        %147 = sbr.rel (%p145) target = $region16
      $region15: #{whisper_encoder_forward.15} parent=11 // pred_region
        _
      $region16: #{whisper_encoder_forward.15} parent=11 // pred_fallthru
        _
      // Predicated region
      $region17: #{whisper_encoder_forward.15} parent=11 // pred_check
        %p148 = pneg %p78
      $region18: #{whisper_encoder_forward.15} parent=11 // pred_check_branch
        %150 = sbr.rel (%p148) target = $region20
      $region19: #{whisper_encoder_forward.15} parent=11 // pred_region
        _
      $region20: #{whisper_encoder_forward.15} parent=11 // pred_fallthru
        _
    $region12: #{whisper_encoder_forward.15} parent=5 // pred_fallthru
      _
    %p151 = scmp.lt.s32.totalorder %s10, 2
    // Predicated region
    $region21: #{whisper_encoder_forward.15} parent=5 // pred_check
      %p152 = pneg %p151
    $region22: #{whisper_encoder_forward.15} parent=5 // pred_check_branch
      %154 = sbr.rel (%p152) target = $region24
    $region23: #{whisper_encoder_forward.15} parent=5 // pred_region
      // Predicated region
      $region25: #{whisper_encoder_forward.15} parent=23 // pred_check
        %p155 = pneg %p30
      $region26: #{whisper_encoder_forward.15} parent=23 // pred_check_branch
        %157 = sbr.rel (%p155) target = $region28
      $region27: #{whisper_encoder_forward.15} parent=23 // pred_region
        %p158 = scmp.lt.s32.totalorder %s10, 1
        %s159 = scalar_select %p158, %s10, 1
        %s160 = smul.addr %s159, 8
        %s161 = scalar_lea.vmem %s0, %s160
      $region28: #{whisper_encoder_forward.15} parent=23 // pred_fallthru
        _
      // Predicated region
      $region29: #{whisper_encoder_forward.15} parent=23 // pred_check
        %p162 = pneg %p98
      $region30: #{whisper_encoder_forward.15} parent=23 // pred_check_branch
        %164 = sbr.rel (%p162) target = $region32
      $region31: #{whisper_encoder_forward.15} parent=23 // pred_region
        %p165 = scmp.lt.s32.totalorder %s10, 1
        %s166 = scalar_select %p165, %s10, 1
        %s167 = smul.addr %s166, 8
        %s168 = scalar_lea.vmem %s3, %s167
      $region32: #{whisper_encoder_forward.15} parent=23 // pred_fallthru
        _
    $region24: #{whisper_encoder_forward.15} parent=5 // pred_fallthru
      _
    %p169 = scmp.le.s32.totalorder 1, %s10
    %p170 = scmp.lt.s32.totalorder %s10, 3
    %p171 = pnand %p169, %p170
    %p172 = pneg %p171
    // Predicated region
    $region33: #{whisper_encoder_forward.15} parent=5 // pred_check
      _
    $region34: #{whisper_encoder_forward.15} parent=5 // pred_check_branch
      %174 = sbr.rel (%p171) target = $region36
    $region35: #{whisper_encoder_forward.15} parent=5 // pred_region
      %s175 = ssub.s32 %s10, 1
      %p176 = scmp.lt.s32.totalorder %s15, 1
      %s177 = scalar_select %p176, %s15, 1
      %s178 = smul.addr %s177, 8
      %s179 = scalar_lea.vmem %s0, %s178
      %p180 = pneg %p36
      %p181 = pneg %p33
      %p182 = pneg %p57
      %p183 = pneg %p54
      %p184 = pneg %p78
      %p185 = pneg %p75
      %p186 = scmp.lt.s32.totalorder %s15, 1
      %s187 = scalar_select %p186, %s15, 1
      %s188 = smul.addr %s187, 8
      %s189 = scalar_lea.vmem %s3, %s188
      %p190 = pneg %p104
      %p191 = pneg %p101
      %p192 = pneg %p130
      %p193 = pneg %p127
      %p194 = scmp.lt.s32.totalorder %s15, 1
      %s195 = scalar_select %p194, %s15, 1
      %s196 = smul.addr %s195, 8
      %s197 = scalar_lea.vmem %s4, %s196
      %p198 = scmp.lt.s32.totalorder %s15, 1
      %s199 = scalar_select %p198, %s15, 1
      %s200 = smul.addr %s199, 8
      %s201 = scalar_lea.vmem %s0, %s200
      %p202 = scmp.lt.s32.totalorder %s15, 1
      %s203 = scalar_select %p202, %s15, 1
      %s204 = smul.addr %s203, 8
      %s205 = scalar_lea.vmem %s3, %s204
      %p206 = scmp.lt.s32.totalorder %s15, 1
      %s207 = scalar_select %p206, %s15, 1
      %s208 = smul.addr %s207, 8
      %s209 = scalar_lea.vmem %s4, %s208
      %v210 = vld [vmem:[%s205] sm:$0xff]
      %v211 = vld [vmem:[%s2] sm:$0x1]
      %v213 = vperm.slane %v211, 0
      %v215 = vadd.f32 %v210, %v213
      %v216 = vld [vmem:[%s201] sm:$0xff]
      %v217 = vld [vmem:[%s1] sm:$0xff]
      %v218 = vld [vmem:[%s1 + $0x8] sm:$0xff]
      %v219 = vld [vmem:[%s1 + $0x10] sm:$0xff]
      %v220 = vld [vmem:[%s1 + $0x18] sm:$0xff]
      %vm221 = vcmask 261120
      %v223 = vsel %vm221, %v216, 0
      %225 = vmatpush.msra.mxu0 0.0
      %226 = vmatpush.msra.mxu0 0.0
      %227 = vmatpush.msra.mxu0 0.0
      %228 = vmatpush.msra.mxu0 0.0
      %229 = vmatpush.msra.mxu0 0.0
      %230 = vmatpush.msra.mxu0 0.0
      %231 = vmatpush.msra.mxu0 0.0
      %232 = vmatpush.msra.mxu0 0.0
      %233 = vmatpush.msra.mxu0 0.0
      %234 = vmatpush.msra.mxu0 0.0
      %235 = vmatpush.msra.mxu0 0.0
      %236 = vmatpush.msra.mxu0 0.0
      %237 = vmatpush.msra.mxu0 %v220
      %238 = vmatpush.msra.mxu0 %v219
      %239 = vmatpush.msra.mxu0 %v218
      %240 = vmatpush.msra.mxu0 %v217
      %241 = vmatmul.f32.gmra.mxu0 %v223
      %v242 = vpop.f32.mrf.mxu0
      %v243 = vadd.f32 0.0, %v242
      %244 = vdwg.mxu0
      %v245 = vadd.f32 %v215, %v243
      %246 = vst.msk [vmem:[%s209] sm:$0xff] %vm221, %v245
      %p247 = scmp.lt.s32.totalorder %s15, 1
      %s248 = scalar_select %p247, %s15, 1
      %s249 = smul.addr %s248, 8
      %s250 = scalar_lea.vmem %s4, %s249
      // Predicated region
      $region37: #{whisper_encoder_forward.15} parent=35 // pred_check
        %p251 = pneg %p127
      $region38: #{whisper_encoder_forward.15} parent=35 // pred_check_branch
        %253 = sbr.rel (%p251) target = $region40
      $region39: #{whisper_encoder_forward.15} parent=35 // pred_region
        _
      $region40: #{whisper_encoder_forward.15} parent=35 // pred_fallthru
        _
    $region36: #{whisper_encoder_forward.15} parent=5 // pred_fallthru
      _
    %p254 = scmp.le.s32.totalorder 2, %s10
    // Predicated region
    $region41: #{whisper_encoder_forward.15} parent=5 // pred_check
      %p255 = pneg %p254
    $region42: #{whisper_encoder_forward.15} parent=5 // pred_check_branch
      %257 = sbr.rel (%p255) target = $region44
    $region43: #{whisper_encoder_forward.15} parent=5 // pred_region
      %s258 = ssub.s32 %s10, 2
      // Predicated region
      $region45: #{whisper_encoder_forward.15} parent=43 // pred_check
        %p259 = pneg %p133
      $region46: #{whisper_encoder_forward.15} parent=43 // pred_check_branch
        %261 = sbr.rel (%p259) target = $region48
      $region47: #{whisper_encoder_forward.15} parent=43 // pred_region
        %p262 = scmp.lt.s32.totalorder %s16, 1
        %s263 = scalar_select %p262, %s16, 1
        %s264 = smul.addr %s263, 8
        %s265 = scalar_lea.vmem %s4, %s264
      $region48: #{whisper_encoder_forward.15} parent=43 // pred_fallthru
        _
    $region44: #{whisper_encoder_forward.15} parent=5 // pred_fallthru
      _
  $region6: #{whisper_encoder_forward.15} parent=0 // loop_footer
    %s14 = sadd.s32 1, %s10
  $region7: #{whisper_encoder_forward.15} parent=0 // loop_footer_branch
    %9 = sbr.rel target = $region3
  $region8: #{whisper_encoder_forward.15} parent=0 // loop_exit
    _

// kernel: whisper_encoder_forward.21
$region0: #{whisper_encoder_forward.21}
  #allocation0 [shape = 'u32[]', space=smem, size = 0x4, offset = 0x4, fixed_abs, tag = 'smem constant byte address 0x4 - core index']
  #allocation1 [shape = 'u32[72,128]{1,0:T(1,128)}', space=vmem, size = 0x9000, scoped, tag = 'internal scratch']
  %s0 = inlined_call_operand.vmem [shape: f32[16,32], index: 0, kind: input, shape index: {}]
  %s1 = inlined_call_operand.vmem [shape: f32[1,32], index: 1, kind: input, shape index: {}]
  %s2 = inlined_call_operand.vmem [shape: f32[1,32], index: 2, kind: input, shape index: {}]
  %s3 = inlined_call_operand.hbm [shape: f32[16,32], index: 3, kind: output, shape index: {}]
  %s4 = sld [smem:[#allocation0]]
  $region45: #{whisper_encoder_forward.21} parent=0
    _
  %s6 = ssub.s32 1, %s4
  %s7 = scalar_select 0, %s6, %s4
  $region1: #{whisper_encoder_forward.21} parent=0
    #allocation2 [shape = 'u8[8192]{0}', space=vmem, size = 0x2000, scoped, tag = 'output window, operand 0']
    #allocation3 [shape = 's32[2]{0}', space=sflag, size = 0x8, scoped, tag = 'scoped memory for whisper_encoder_forward.21']
    %8 = vsyncpa [#allocation3], 0
    %s9 = scalar_lea.sflag [#allocation3], 1
    %10 = vsyncpa %s9, 0
    loop: start=0, step=1, limit=4
    $region2: #{whisper_encoder_forward.21} parent=1 // loop_pre_header
      _
    $region3: #{whisper_encoder_forward.21} parent=1 // loop_header
      %s12 = sphi 0, %s16
      %p13 = scmp.ge.s32.totalorder %s12, 4
      %s22 = sphi 0, %s24
      %s25 = sphi 0, %s22
      %s26 = sphi 0, %s25
      %s42 = sphi 0, %s26
      %s46 = sphi 0, %s46
      %s48 = sphi 0, %s46
      %s49 = sphi 0, %s48
      %s63 = sphi 0, %s49
      %s67 = sphi 0, %s67
      %s69 = sphi 0, %s67
      %s70 = sphi 0, %s69
      %s84 = sphi 0, %s70
      %s90 = sphi 0, %s92
      %s93 = sphi 0, %s90
      %s94 = sphi 0, %s93
      %s110 = sphi 0, %s94
    $region4: #{whisper_encoder_forward.21} parent=1 // loop_header_branch
      %15 = sbr.rel (%p13) target = $region8
    $region5: #{whisper_encoder_forward.21} parent=1 // loop_body
      %s17 = ssub.s32 %s12, 1
      %s18 = ssub.s32 %s12, 2
      %s19 = sadd.s32 %s12, 1
      %s20 = ssub.s32 %s12, %s19
      %p21 = scmp.eq.s32.totalorder %s20, 0
      %s23 = sadd.s32 %s22, 1
      %s24 = scalar_select %p21, %s22, %s23
      %p27 = pneg %p21
      %p28 = scmp.eq.s32.totalorder %s12, 1
      %p29 = por %p27, %p28
      %p30 = scmp.ne.s32.totalorder %s22, %s25
      %p31 = scmp.eq.s32.totalorder %s12, 0
      %p32 = por %p30, %p31
      %p33 = scmp.ne.s32.totalorder %s22, %s25
      %p34 = scmp.eq.s32.totalorder %s17, 1
      %p35 = por %p33, %p34
      %p36 = scmp.ne.s32.totalorder %s25, %s26
      %p37 = scmp.eq.s32.totalorder %s17, 0
      %p38 = por %p36, %p37
      %p39 = scmp.ne.s32.totalorder %s25, %s26
      %p40 = scmp.eq.s32.totalorder %s18, 1
      %p41 = por %p39, %p40
      %p43 = scmp.ne.s32.totalorder %s26, %s42
      %p44 = scmp.eq.s32.totalorder %s18, 0
      %p45 = por %p43, %p44
      %s47 = sadd.s32 %s46, 1
      %p50 = scmp.eq.s32.totalorder %s12, 1
      %p51 = scmp.ne.s32.totalorder %s46, %s48
      %p52 = scmp.eq.s32.totalorder %s12, 0
      %p53 = por %p51, %p52
      %p54 = scmp.ne.s32.totalorder %s46, %s48
      %p55 = scmp.eq.s32.totalorder %s17, 1
      %p56 = por %p54, %p55
      %p57 = scmp.ne.s32.totalorder %s48, %s49
      %p58 = scmp.eq.s32.totalorder %s17, 0
      %p59 = por %p57, %p58
      %p60 = scmp.ne.s32.totalorder %s48, %s49
      %p61 = scmp.eq.s32.totalorder %s18, 1
      %p62 = por %p60, %p61
      %p64 = scmp.ne.s32.totalorder %s49, %s63
      %p65 = scmp.eq.s32.totalorder %s18, 0
      %p66 = por %p64, %p65
      %s68 = sadd.s32 %s67, 1
      %p71 = scmp.eq.s32.totalorder %s12, 1
      %p72 = scmp.ne.s32.totalorder %s67, %s69
      %p73 = scmp.eq.s32.totalorder %s12, 0
      %p74 = por %p72, %p73
      %p75 = scmp.ne.s32.totalorder %s67, %s69
      %p76 = scmp.eq.s32.totalorder %s17, 1
      %p77 = por %p75, %p76
      %p78 = scmp.ne.s32.totalorder %s69, %s70
      %p79 = scmp.eq.s32.totalorder %s17, 0
      %p80 = por %p78, %p79
      %p81 = scmp.ne.s32.totalorder %s69, %s70
      %p82 = scmp.eq.s32.totalorder %s18, 1
      %p83 = por %p81, %p82
      %p85 = scmp.ne.s32.totalorder %s70, %s84
      %p86 = scmp.eq.s32.totalorder %s18, 0
      %p87 = por %p85, %p86
      %s88 = ssub.s32 %s12, %s19
      %p89 = scmp.eq.s32.totalorder %s88, 0
      %s91 = sadd.s32 %s90, 1
      %s92 = scalar_select %p89, %s90, %s91
      %p95 = pneg %p89
      %p96 = scmp.eq.s32.totalorder %s12, 1
      %p97 = por %p95, %p96
      %p98 = scmp.ne.s32.totalorder %s90, %s93
      %p99 = scmp.eq.s32.totalorder %s12, 0
      %p100 = por %p98, %p99
      %p101 = scmp.ne.s32.totalorder %s90, %s93
      %p102 = scmp.eq.s32.totalorder %s17, 1
      %p103 = por %p101, %p102
      %p104 = scmp.ne.s32.totalorder %s93, %s94
      %p105 = scmp.eq.s32.totalorder %s17, 0
      %p106 = por %p104, %p105
      %p107 = scmp.ne.s32.totalorder %s93, %s94
      %p108 = scmp.eq.s32.totalorder %s18, 1
      %p109 = por %p107, %p108
      %p111 = scmp.ne.s32.totalorder %s94, %s110
      %p112 = scmp.eq.s32.totalorder %s18, 0
      %p113 = por %p111, %p112
      %p114 = scmp.le.s32.totalorder 1, %s12
      %p115 = scmp.lt.s32.totalorder %s12, 3
      %p116 = pnand %p114, %p115
      %p117 = pneg %p116
      // Predicated region
      $region9: #{whisper_encoder_forward.21} parent=5 // pred_check
        _
      $region10: #{whisper_encoder_forward.21} parent=5 // pred_check_branch
        %119 = sbr.rel (%p116) target = $region12
      $region11: #{whisper_encoder_forward.21} parent=5 // pred_region
        %s120 = ssub.s32 %s12, 1
        // Predicated region
        $region13: #{whisper_encoder_forward.21} parent=11 // pred_check
          %p121 = pneg %p59
        $region14: #{whisper_encoder_forward.21} parent=11 // pred_check_branch
          %123 = sbr.rel (%p121) target = $region16
        $region15: #{whisper_encoder_forward.21} parent=11 // pred_region
          _
        $region16: #{whisper_encoder_forward.21} parent=11 // pred_fallthru
          _
        // Predicated region
        $region17: #{whisper_encoder_forward.21} parent=11 // pred_check
          %p124 = pneg %p80
        $region18: #{whisper_encoder_forward.21} parent=11 // pred_check_branch
          %126 = sbr.rel (%p124) target = $region20
        $region19: #{whisper_encoder_forward.21} parent=11 // pred_region
          _
        $region20: #{whisper_encoder_forward.21} parent=11 // pred_fallthru
          _
      $region12: #{whisper_encoder_forward.21} parent=5 // pred_fallthru
        _
      %p127 = scmp.lt.s32.totalorder %s12, 2
      // Predicated region
      $region21: #{whisper_encoder_forward.21} parent=5 // pred_check
        %p128 = pneg %p127
      $region22: #{whisper_encoder_forward.21} parent=5 // pred_check_branch
        %130 = sbr.rel (%p128) target = $region24
      $region23: #{whisper_encoder_forward.21} parent=5 // pred_region
        // Predicated region
        $region25: #{whisper_encoder_forward.21} parent=23 // pred_check
          %p131 = pneg %p32
        $region26: #{whisper_encoder_forward.21} parent=23 // pred_check_branch
          %133 = sbr.rel (%p131) target = $region28
        $region27: #{whisper_encoder_forward.21} parent=23 // pred_region
          %p134 = scmp.lt.s32.totalorder %s12, 1
          %s135 = scalar_select %p134, %s12, 1
          %s136 = smul.addr %s135, 8
          %s137 = scalar_lea.vmem %s0, %s136
        $region28: #{whisper_encoder_forward.21} parent=23 // pred_fallthru
          _
      $region24: #{whisper_encoder_forward.21} parent=5 // pred_fallthru
        _
      %p138 = scmp.le.s32.totalorder 1, %s12
      %p139 = scmp.lt.s32.totalorder %s12, 3
      %p140 = pnand %p138, %p139
      %p141 = pneg %p140
      // Predicated region
      $region29: #{whisper_encoder_forward.21} parent=5 // pred_check
        _
      $region30: #{whisper_encoder_forward.21} parent=5 // pred_check_branch
        %143 = sbr.rel (%p140) target = $region32
      $region31: #{whisper_encoder_forward.21} parent=5 // pred_region
        %s144 = ssub.s32 %s12, 1
        %p145 = scmp.lt.s32.totalorder %s17, 1
        %s146 = scalar_select %p145, %s17, 1
        %s147 = smul.addr %s146, 8
        %s148 = scalar_lea.vmem %s0, %s147
        %p149 = pneg %p38
        %p150 = pneg %p35
        %p151 = pneg %p59
        %p152 = pneg %p56
        %p153 = pneg %p80
        %p154 = pneg %p77
        %p155 = pneg %p106
        %p156 = pneg %p103
        %s157 = sand.u32 %s93, 1
        %s158 = scalar_lea.sflag [#allocation3], %s157
        %s159 = sand.u32 %s93, 1
        %s160 = smul.addr %s159, 8
        %s161 = scalar_lea.vmem [#allocation2], %s160
        %p162 = scmp.lt.s32.totalorder %s17, 1
        %s163 = scalar_select %p162, %s17, 1
        %s164 = smul.addr %s163, 8
        %s165 = scalar_lea.vmem %s0, %s164
        %v166 = vld [vmem:[%s165] sm:$0xff]
        %v167 = vld [vmem:[%s1] sm:$0x1]
        %v168 = vld [vmem:[%s2] sm:$0x1]
        %vm169 = vcmask 261120
        %v170 = vsel %vm169, %v166, 0.0
        %171 = vadd.xlane.f32.xlu0 %v170
        %v172 = vpop.xlane.xlu0 %171
        %v173 = vrcp.pop 32.0
        %v174 = vmul.f32 32.0, %v173
        %v175 = vsub.f32 1.0, %v174
        %v176 = vmul.f32 %v173, %v175
        %v177 = vadd.f32 %v173, %v176
        %vm178 = vweird.f32 %v173
        %v179 = vsel %vm178, %v173, %v177
        %v180 = vmul.f32 %v172, %v179
        %v181 = vsub.f32 %v166, %v180
        %v182 = vmul.f32 %v181, %v181
        %v183 = vsel %vm169, %v182, 0.0
        %184 = vadd.xlane.f32.xlu0 %v183
        %v185 = vpop.xlane.xlu0 %184
        %v186 = vmul.f32 %v185, %v179
        %v187 = vadd.f32 %v186, 1e-05
        %v188 = vrsqrt.pop %v187
        %v189 = vmul.f32 %v188, %v187
        %v190 = vmul.f32 %v189, %v188
        %v191 = vmul.f32 0.5, %v190
        %v192 = vsub.f32 1.5, %v191
        %v193 = vmul.f32 %v188, %v192
        %vm194 = vweird.f32 %v187
        %vm195 = vweird.f32 %v188
        %vm196 = vmor %vm194, %vm195
        %v197 = vsel %vm196, %v188, %v193
        %v198 = vmul.f32 %v181, %v197
        %v200 = vperm.slane %v167, 0
        %v202 = vmul.f32 %v198, %v200
        %v204 = vperm.slane %v168, 0
        %v206 = vadd.f32 %v202, %v204
        %207 = vst.msk [vmem:[%s161] sm:$0xff] %vm169, %v206
        %s208 = sand.u32 %s93, 1
        %s209 = scalar_lea.sflag [#allocation3], %s208
        %s210 = sand.u32 %s93, 1
        %s211 = smul.addr %s210, 8
        %s212 = scalar_lea.vmem [#allocation2], %s211
        // Predicated region
        $region33: #{whisper_encoder_forward.21} parent=31 // pred_check
          %p213 = pneg %p103
        $region34: #{whisper_encoder_forward.21} parent=31 // pred_check_branch
          %215 = sbr.rel (%p213) target = $region36
        $region35: #{whisper_encoder_forward.21} parent=31 // pred_region
          %217 = vsyncadd %s209, 0
          %s218 = smul.addr %s17, 8
          %s219 = scalar_lea.hbm %s3, %s218
          %s221 = sshll.u32 %s212, 4
          %s222 = int_to_ptr.vmem [resolvable:$true] %s221
          %s223 = sshll.u32 %s219, 4
          %s224 = int_to_ptr.hbm [resolvable:$true] %s223
          %226 = dma.vmem_to_hbm [thread:$0]  %s222, 128, %s224, %s209
        $region36: #{whisper_encoder_forward.21} parent=31 // pred_fallthru
          _
      $region32: #{whisper_encoder_forward.21} parent=5 // pred_fallthru
        _
      %p227 = scmp.le.s32.totalorder 2, %s12
      // Predicated region
      $region37: #{whisper_encoder_forward.21} parent=5 // pred_check
        %p228 = pneg %p227
      $region38: #{whisper_encoder_forward.21} parent=5 // pred_check_branch
        %230 = sbr.rel (%p228) target = $region40
      $region39: #{whisper_encoder_forward.21} parent=5 // pred_region
        %s231 = ssub.s32 %s12, 2
        // Predicated region
        $region41: #{whisper_encoder_forward.21} parent=39 // pred_check
          %p232 = pneg %p109
        $region42: #{whisper_encoder_forward.21} parent=39 // pred_check_branch
          %234 = sbr.rel (%p232) target = $region44
        $region43: #{whisper_encoder_forward.21} parent=39 // pred_region
          %s235 = sand.u32 %s94, 1
          %s236 = scalar_lea.sflag [#allocation3], %s235
          %s237 = sand.u32 %s94, 1
          %s238 = smul.addr %s237, 8
          %s239 = scalar_lea.vmem [#allocation2], %s238
          %241 = dma.done %s236, 128
        $region44: #{whisper_encoder_forward.21} parent=39 // pred_fallthru
          _
      $region40: #{whisper_encoder_forward.21} parent=5 // pred_fallthru
        _
    $region6: #{whisper_encoder_forward.21} parent=1 // loop_footer
      %s16 = sadd.s32 1, %s12
    $region7: #{whisper_encoder_forward.21} parent=1 // loop_footer_branch
      %11 = sbr.rel target = $region3
    $region8: #{whisper_encoder_forward.21} parent=1 // loop_exit
      _
    %242 = vsyncpa [#allocation3], 1
    %s243 = scalar_lea.sflag [#allocation3], 1
    %244 = vsyncpa %s243, 1

// kernel: whisper_encoder_forward.16
$region0: #{whisper_encoder_forward.16}
  #allocation0 [shape = 'u32[]', space=smem, size = 0x4, offset = 0x4, fixed_abs, tag = 'smem constant byte address 0x4 - core index']
  #allocation1 [shape = 'u32[72,128]{1,0:T(1,128)}', space=vmem, size = 0x9000, scoped, tag = 'internal scratch']
  %s0 = inlined_call_operand.vmem [shape: f32[16,32], index: 0, kind: input, shape index: {}]
  %s1 = inlined_call_operand.vmem [shape: f32[1,32], index: 1, kind: input, shape index: {}]
  %s2 = inlined_call_operand.vmem [shape: f32[1,32], index: 2, kind: input, shape index: {}]
  %s3 = inlined_call_operand.vmem [shape: f32[32,64], index: 3, kind: input, shape index: {}]
  %s4 = inlined_call_operand.vmem [shape: f32[1,64], index: 4, kind: input, shape index: {}]
  %s5 = inlined_call_operand.vmem [shape: f32[64,32], index: 5, kind: input, shape index: {}]
  %s6 = inlined_call_operand.vmem [shape: f32[1,32], index: 6, kind: input, shape index: {}]
  %s7 = inlined_call_operand.vmem [shape: f32[16,32], index: 7, kind: output, shape index: {}]
  %s8 = sld [smem:[#allocation0]]
  $region61: #{whisper_encoder_forward.16} parent=0
    _
  %s10 = ssub.s32 1, %s8
  %s11 = scalar_select 0, %s10, %s8
  loop: start=0, step=1, limit=4
  $region2: #{whisper_encoder_forward.16} parent=0 // loop_pre_header
    _
  $region3: #{whisper_encoder_forward.16} parent=0 // loop_header
    %s13 = sphi 0, %s17
    %p14 = scmp.ge.s32.totalorder %s13, 4
    %s23 = sphi 0, %s25
    %s26 = sphi 0, %s23
    %s27 = sphi 0, %s26
    %s43 = sphi 0, %s27
    %s47 = sphi 0, %s47
    %s49 = sphi 0, %s47
    %s50 = sphi 0, %s49
    %s64 = sphi 0, %s50
    %s68 = sphi 0, %s68
    %s70 = sphi 0, %s68
    %s71 = sphi 0, %s70
    %s85 = sphi 0, %s71
    %s89 = sphi 0, %s89
    %s91 = sphi 0, %s89
    %s92 = sphi 0, %s91
    %s106 = sphi 0, %s92
    %s110 = sphi 0, %s110
    %s112 = sphi 0, %s110
    %s113 = sphi 0, %s112
    %s127 = sphi 0, %s113
    %s131 = sphi 0, %s131
    %s133 = sphi 0, %s131
    %s134 = sphi 0, %s133
    %s148 = sphi 0, %s134
    %s152 = sphi 0, %s152
    %s154 = sphi 0, %s152
    %s155 = sphi 0, %s154
    %s169 = sphi 0, %s155
    %s175 = sphi 0, %s177
    %s178 = sphi 0, %s175
    %s179 = sphi 0, %s178
    %s195 = sphi 0, %s179
  $region4: #{whisper_encoder_forward.16} parent=0 // loop_header_branch
    %16 = sbr.rel (%p14) target = $region8
  $region5: #{whisper_encoder_forward.16} parent=0 // loop_body
    %s18 = ssub.s32 %s13, 1
    %s19 = ssub.s32 %s13, 2
    %s20 = sadd.s32 %s13, 1
    %s21 = ssub.s32 %s13, %s20
    %p22 = scmp.eq.s32.totalorder %s21, 0
    %s24 = sadd.s32 %s23, 1
    %s25 = scalar_select %p22, %s23, %s24
    %p28 = pneg %p22
    %p29 = scmp.eq.s32.totalorder %s13, 1
    %p30 = por %p28, %p29
    %p31 = scmp.ne.s32.totalorder %s23, %s26
    %p32 = scmp.eq.s32.totalorder %s13, 0
    %p33 = por %p31, %p32
    %p34 = scmp.ne.s32.totalorder %s23, %s26
    %p35 = scmp.eq.s32.totalorder %s18, 1
    %p36 = por %p34, %p35
    %p37 = scmp.ne.s32.totalorder %s26, %s27
    %p38 = scmp.eq.s32.totalorder %s18, 0
    %p39 = por %p37, %p38
    %p40 = scmp.ne.s32.totalorder %s26, %s27
    %p41 = scmp.eq.s32.totalorder %s19, 1
    %p42 = por %p40, %p41
    %p44 = scmp.ne.s32.totalorder %s27, %s43
    %p45 = scmp.eq.s32.totalorder %s19, 0
    %p46 = por %p44, %p45
    %s48 = sadd.s32 %s47, 1
    %p51 = scmp.eq.s32.totalorder %s13, 1
    %p52 = scmp.ne.s32.totalorder %s47, %s49
    %p53 = scmp.eq.s32.totalorder %s13, 0
    %p54 = por %p52, %p53
    %p55 = scmp.ne.s32.totalorder %s47, %s49
    %p56 = scmp.eq.s32.totalorder %s18, 1
    %p57 = por %p55, %p56
    %p58 = scmp.ne.s32.totalorder %s49, %s50
    %p59 = scmp.eq.s32.totalorder %s18, 0
    %p60 = por %p58, %p59
    %p61 = scmp.ne.s32.totalorder %s49, %s50
    %p62 = scmp.eq.s32.totalorder %s19, 1
    %p63 = por %p61, %p62
    %p65 = scmp.ne.s32.totalorder %s50, %s64
    %p66 = scmp.eq.s32.totalorder %s19, 0
    %p67 = por %p65, %p66
    %s69 = sadd.s32 %s68, 1
    %p72 = scmp.eq.s32.totalorder %s13, 1
    %p73 = scmp.ne.s32.totalorder %s68, %s70
    %p74 = scmp.eq.s32.totalorder %s13, 0
    %p75 = por %p73, %p74
    %p76 = scmp.ne.s32.totalorder %s68, %s70
    %p77 = scmp.eq.s32.totalorder %s18, 1
    %p78 = por %p76, %p77
    %p79 = scmp.ne.s32.totalorder %s70, %s71
    %p80 = scmp.eq.s32.totalorder %s18, 0
    %p81 = por %p79, %p80
    %p82 = scmp.ne.s32.totalorder %s70, %s71
    %p83 = scmp.eq.s32.totalorder %s19, 1
    %p84 = por %p82, %p83
    %p86 = scmp.ne.s32.totalorder %s71, %s85
    %p87 = scmp.eq.s32.totalorder %s19, 0
    %p88 = por %p86, %p87
    %s90 = sadd.s32 %s89, 1
    %p93 = scmp.eq.s32.totalorder %s13, 1
    %p94 = scmp.ne.s32.totalorder %s89, %s91
    %p95 = scmp.eq.s32.totalorder %s13, 0
    %p96 = por %p94, %p95
    %p97 = scmp.ne.s32.totalorder %s89, %s91
    %p98 = scmp.eq.s32.totalorder %s18, 1
    %p99 = por %p97, %p98
    %p100 = scmp.ne.s32.totalorder %s91, %s92
    %p101 = scmp.eq.s32.totalorder %s18, 0
    %p102 = por %p100, %p101
    %p103 = scmp.ne.s32.totalorder %s91, %s92
    %p104 = scmp.eq.s32.totalorder %s19, 1
    %p105 = por %p103, %p104
    %p107 = scmp.ne.s32.totalorder %s92, %s106
    %p108 = scmp.eq.s32.totalorder %s19, 0
    %p109 = por %p107, %p108
    %s111 = sadd.s32 %s110, 1
    %p114 = scmp.eq.s32.totalorder %s13, 1
    %p115 = scmp.ne.s32.totalorder %s110, %s112
    %p116 = scmp.eq.s32.totalorder %s13, 0
    %p117 = por %p115, %p116
    %p118 = scmp.ne.s32.totalorder %s110, %s112
    %p119 = scmp.eq.s32.totalorder %s18, 1
    %p120 = por %p118, %p119
    %p121 = scmp.ne.s32.totalorder %s112, %s113
    %p122 = scmp.eq.s32.totalorder %s18, 0
    %p123 = por %p121, %p122
    %p124 = scmp.ne.s32.totalorder %s112, %s113
    %p125 = scmp.eq.s32.totalorder %s19, 1
    %p126 = por %p124, %p125
    %p128 = scmp.ne.s32.totalorder %s113, %s127
    %p129 = scmp.eq.s32.totalorder %s19, 0
    %p130 = por %p128, %p129
    %s132 = sadd.s32 %s131, 1
    %p135 = scmp.eq.s32.totalorder %s13, 1
    %p136 = scmp.ne.s32.totalorder %s131, %s133
    %p137 = scmp.eq.s32.totalorder %s13, 0
    %p138 = por %p136, %p137
    %p139 = scmp.ne.s32.totalorder %s131, %s133
    %p140 = scmp.eq.s32.totalorder %s18, 1
    %p141 = por %p139, %p140
    %p142 = scmp.ne.s32.totalorder %s133, %s134
    %p143 = scmp.eq.s32.totalorder %s18, 0
    %p144 = por %p142, %p143
    %p145 = scmp.ne.s32.totalorder %s133, %s134
    %p146 = scmp.eq.s32.totalorder %s19, 1
    %p147 = por %p145, %p146
    %p149 = scmp.ne.s32.totalorder %s134, %s148
    %p150 = scmp.eq.s32.totalorder %s19, 0
    %p151 = por %p149, %p150
    %s153 = sadd.s32 %s152, 1
    %p156 = scmp.eq.s32.totalorder %s13, 1
    %p157 = scmp.ne.s32.totalorder %s152, %s154
    %p158 = scmp.eq.s32.totalorder %s13, 0
    %p159 = por %p157, %p158
    %p160 = scmp.ne.s32.totalorder %s152, %s154
    %p161 = scmp.eq.s32.totalorder %s18, 1
    %p162 = por %p160, %p161
    %p163 = scmp.ne.s32.totalorder %s154, %s155
    %p164 = scmp.eq.s32.totalorder %s18, 0
    %p165 = por %p163, %p164
    %p166 = scmp.ne.s32.totalorder %s154, %s155
    %p167 = scmp.eq.s32.totalorder %s19, 1
    %p168 = por %p166, %p167
    %p170 = scmp.ne.s32.totalorder %s155, %s169
    %p171 = scmp.eq.s32.totalorder %s19, 0
    %p172 = por %p170, %p171
    %s173 = ssub.s32 %s13, %s20
    %p174 = scmp.eq.s32.totalorder %s173, 0
    %s176 = sadd.s32 %s175, 1
    %s177 = scalar_select %p174, %s175, %s176
    %p180 = pneg %p174
    %p181 = scmp.eq.s32.totalorder %s13, 1
    %p182 = por %p180, %p181
    %p183 = scmp.ne.s32.totalorder %s175, %s178
    %p184 = scmp.eq.s32.totalorder %s13, 0
    %p185 = por %p183, %p184
    %p186 = scmp.ne.s32.totalorder %s175, %s178
    %p187 = scmp.eq.s32.totalorder %s18, 1
    %p188 = por %p186, %p187
    %p189 = scmp.ne.s32.totalorder %s178, %s179
    %p190 = scmp.eq.s32.totalorder %s18, 0
    %p191 = por %p189, %p190
    %p192 = scmp.ne.s32.totalorder %s178, %s179
    %p193 = scmp.eq.s32.totalorder %s19, 1
    %p194 = por %p192, %p193
    %p196 = scmp.ne.s32.totalorder %s179, %s195
    %p197 = scmp.eq.s32.totalorder %s19, 0
    %p198 = por %p196, %p197
    %p199 = scmp.le.s32.totalorder 1, %s13
    %p200 = scmp.lt.s32.totalorder %s13, 3
    %p201 = pnand %p199, %p200
    %p202 = pneg %p201
    // Predicated region
    $region9: #{whisper_encoder_forward.16} parent=5 // pred_check
      _
    $region10: #{whisper_encoder_forward.16} parent=5 // pred_check_branch
      %204 = sbr.rel (%p201) target = $region12
    $region11: #{whisper_encoder_forward.16} parent=5 // pred_region
      %s205 = ssub.s32 %s13, 1
      // Predicated region
      $region13: #{whisper_encoder_forward.16} parent=11 // pred_check
        %p206 = pneg %p60
      $region14: #{whisper_encoder_forward.16} parent=11 // pred_check_branch
        %208 = sbr.rel (%p206) target = $region16
      $region15: #{whisper_encoder_forward.16} parent=11 // pred_region
        _
      $region16: #{whisper_encoder_forward.16} parent=11 // pred_fallthru
        _
      // Predicated region
      $region17: #{whisper_encoder_forward.16} parent=11 // pred_check
        %p209 = pneg %p81
      $region18: #{whisper_encoder_forward.16} parent=11 // pred_check_branch
        %211 = sbr.rel (%p209) target = $region20
      $region19: #{whisper_encoder_forward.16} parent=11 // pred_region
        _
      $region20: #{whisper_encoder_forward.16} parent=11 // pred_fallthru
        _
      // Predicated region
      $region21: #{whisper_encoder_forward.16} parent=11 // pred_check
        %p212 = pneg %p102
      $region22: #{whisper_encoder_forward.16} parent=11 // pred_check_branch
        %214 = sbr.rel (%p212) target = $region24
      $region23: #{whisper_encoder_forward.16} parent=11 // pred_region
        _
      $region24: #{whisper_encoder_forward.16} parent=11 // pred_fallthru
        _
      // Predicated region
      $region25: #{whisper_encoder_forward.16} parent=11 // pred_check
        %p215 = pneg %p123
      $region26: #{whisper_encoder_forward.16} parent=11 // pred_check_branch
        %217 = sbr.rel (%p215) target = $region28
      $region27: #{whisper_encoder_forward.16} parent=11 // pred_region
        _
      $region28: #{whisper_encoder_forward.16} parent=11 // pred_fallthru
        _
      // Predicated region
      $region29: #{whisper_encoder_forward.16} parent=11 // pred_check
        %p218 = pneg %p144
      $region30: #{whisper_encoder_forward.16} parent=11 // pred_check_branch
        %220 = sbr.rel (%p218) target = $region32
      $region31: #{whisper_encoder_forward.16} parent=11 // pred_region
        _
      $region32: #{whisper_encoder_forward.16} parent=11 // pred_fallthru
        _
      // Predicated region
      $region33: #{whisper_encoder_forward.16} parent=11 // pred_check
        %p221 = pneg %p165
      $region34: #{whisper_encoder_forward.16} parent=11 // pred_check_branch
        %223 = sbr.rel (%p221) target = $region36
      $region35: #{whisper_encoder_forward.16} parent=11 // pred_region
        _
      $region36: #{whisper_encoder_forward.16} parent=11 // pred_fallthru
        _
    $region12: #{whisper_encoder_forward.16} parent=5 // pred_fallthru
      _
    %p224 = scmp.lt.s32.totalorder %s13, 2
    // Predicated region
    $region37: #{whisper_encoder_forward.16} parent=5 // pred_check
      %p225 = pneg %p224
    $region38: #{whisper_encoder_forward.16} parent=5 // pred_check_branch
      %227 = sbr.rel (%p225) target = $region40
    $region39: #{whisper_encoder_forward.16} parent=5 // pred_region
      // Predicated region
      $region41: #{whisper_encoder_forward.16} parent=39 // pred_check
        %p228 = pneg %p33
      $region42: #{whisper_encoder_forward.16} parent=39 // pred_check_branch
        %230 = sbr.rel (%p228) target = $region44
      $region43: #{whisper_encoder_forward.16} parent=39 // pred_region
        %p231 = scmp.lt.s32.totalorder %s13, 1
        %s232 = scalar_select %p231, %s13, 1
        %s233 = smul.addr %s232, 8
        %s234 = scalar_lea.vmem %s0, %s233
      $region44: #{whisper_encoder_forward.16} parent=39 // pred_fallthru
        _
    $region40: #{whisper_encoder_forward.16} parent=5 // pred_fallthru
      _
    %p235 = scmp.le.s32.totalorder 1, %s13
    %p236 = scmp.lt.s32.totalorder %s13, 3
    %p237 = pnand %p235, %p236
    %p238 = pneg %p237
    // Predicated region
    $region45: #{whisper_encoder_forward.16} parent=5 // pred_check
      _
    $region46: #{whisper_encoder_forward.16} parent=5 // pred_check_branch
      %240 = sbr.rel (%p237) target = $region48
    $region47: #{whisper_encoder_forward.16} parent=5 // pred_region
      %s241 = ssub.s32 %s13, 1
      %p242 = scmp.lt.s32.totalorder %s18, 1
      %s243 = scalar_select %p242, %s18, 1
      %s244 = smul.addr %s243, 8
      %s245 = scalar_lea.vmem %s0, %s244
      %p246 = pneg %p39
      %p247 = pneg %p36
      %p248 = pneg %p60
      %p249 = pneg %p57
      %p250 = pneg %p81
      %p251 = pneg %p78
      %p252 = pneg %p102
      %p253 = pneg %p99
      %p254 = pneg %p123
      %p255 = pneg %p120
      %p256 = pneg %p144
      %p257 = pneg %p141
      %p258 = pneg %p165
      %p259 = pneg %p162
      %p260 = pneg %p191
      %p261 = pneg %p188
      %p262 = scmp.lt.s32.totalorder %s18, 1
      %s263 = scalar_select %p262, %s18, 1
      %s264 = smul.addr %s263, 8
      %s265 = scalar_lea.vmem %s7, %s264
      %p266 = scmp.lt.s32.totalorder %s18, 1
      %s267 = scalar_select %p266, %s18, 1
      %s268 = smul.addr %s267, 8
      %s269 = scalar_lea.vmem %s0, %s268
      %p270 = scmp.lt.s32.totalorder %s18, 1
      %s271 = scalar_select %p270, %s18, 1
      %s272 = smul.addr %s271, 8
      %s273 = scalar_lea.vmem %s7, %s272
      %v274 = vld [vmem:[%s269] sm:$0xff]
      %v275 = vld [vmem:[%s1] sm:$0x1]
      %v276 = vld [vmem:[%s2] sm:$0x1]
      %vm277 = vcmask 261120
      %v278 = vsel %vm277, %v274, 0.0
      %279 = vadd.xlane.f32.xlu0 %v278
      %v280 = vpop.xlane.xlu0 %279
      %v281 = vrcp.pop 32.0
      %v282 = vmul.f32 32.0, %v281
      %v283 = vsub.f32 1.0, %v282
      %v284 = vmul.f32 %v281, %v283
      %v285 = vadd.f32 %v281, %v284
      %vm286 = vweird.f32 %v281
      %v287 = vsel %vm286, %v281, %v285
      %v288 = vmul.f32 %v280, %v287
      %v289 = vsub.f32 %v274, %v288
      %v290 = vmul.f32 %v289, %v289
      %v291 = vsel %vm277, %v290, 0.0
      %292 = vadd.xlane.f32.xlu0 %v291
      %v293 = vpop.xlane.xlu0 %292
      %v294 = vmul.f32 %v293, %v287
      %v295 = vadd.f32 %v294, 1e-05
      %v296 = vrsqrt.pop %v295
      %v297 = vmul.f32 %v296, %v295
      %v298 = vmul.f32 %v297, %v296
      %v299 = vmul.f32 0.5, %v298
      %v300 = vsub.f32 1.5, %v299
      %v301 = vmul.f32 %v296, %v300
      %vm302 = vweird.f32 %v295
      %vm303 = vweird.f32 %v296
      %vm304 = vmor %vm302, %vm303
      %v305 = vsel %vm304, %v296, %v301
      %v306 = vmul.f32 %v289, %v305
      %v308 = vperm.slane %v275, 0
      %v310 = vmul.f32 %v306, %v308
      %v312 = vperm.slane %v276, 0
      %v314 = vadd.f32 %v310, %v312
      %v315 = vld [vmem:[%s3] sm:$0xff]
      %v316 = vld [vmem:[%s3 + $0x8] sm:$0xff]
      %v317 = vld [vmem:[%s3 + $0x10] sm:$0xff]
      %v318 = vld [vmem:[%s3 + $0x18] sm:$0xff]
      %v319 = vld [vmem:[%s4] sm:$0x1]
      %v321 = vperm.slane %v319, 0
      %v324 = vsel %vm277, %v314, 0
      %326 = vmatpush.msra.mxu0 0.0
      %327 = vmatpush.msra.mxu0 0.0
      %328 = vmatpush.msra.mxu0 0.0
      %329 = vmatpush.msra.mxu0 0.0
      %330 = vmatpush.msra.mxu0 0.0
      %331 = vmatpush.msra.mxu0 0.0
      %332 = vmatpush.msra.mxu0 0.0
      %333 = vmatpush.msra.mxu0 0.0
      %334 = vmatpush.msra.mxu0 0.0
      %335 = vmatpush.msra.mxu0 0.0
      %336 = vmatpush.msra.mxu0 0.0
      %337 = vmatpush.msra.mxu0 0.0
      %338 = vmatpush.msra.mxu0 %v318
      %339 = vmatpush.msra.mxu0 %v317
      %340 = vmatpush.msra.mxu0 %v316
      %341 = vmatpush.msra.mxu0 %v315
      %342 = vmatmul.f32.gmra.mxu0 %v324
      %v343 = vpop.f32.mrf.mxu0
      %v344 = vadd.f32 %v321, %v343
      %345 = vdwg.mxu0
      %v346 = vmul.f32 %v344, 0.5
      %v347 = vmul.f32 %v344, 0.70710677
      %vm348 = vcmp.lt.f32.partialorder %v347, 0.0
      %v349 = vsel %vm348, -1.0, 1.0
      %v350 = vand.u32 2147483647, %v347
      %v351 = vmul.f32 %v350, 0.3275911
      %v352 = vadd.f32 %v351, 1.0
      %v353 = vrcp.pop %v352
      %v354 = vmul.f32 %v352, %v353
      %v355 = vsub.f32 1.0, %v354
      %v356 = vmul.f32 %v353, %v355
      %v357 = vadd.f32 %v353, %v356
      %vm358 = vweird.f32 %v352
      %vm359 = vweird.f32 %v353
      %vm360 = vmor %vm358, %vm359
      %v361 = vsel %vm360, %v353, %v357
      %v362 = vand.u32 2147483647, %v352
      %vm363 = vcmp.eq.f32.partialorder %v362, 8.507059e+37
      %v364 = vand.u32 %v352, 2147483648
      %v365 = vor.u32 1.1754944e-38, %v364
      %v366 = vsel %vm363, %v365, %v361
      %v367 = vmul.f32 1.0, %v366
      %v368 = vmul.f32 %v367, 1.0614054
      %v369 = vadd.f32 %v368, -1.4531521
      %v370 = vmul.f32 %v369, %v367
      %v371 = vadd.f32 %v370, 1.4214138
      %v372 = vmul.f32 %v371, %v367
      %v373 = vadd.f32 %v372, -0.28449672
      %v374 = vmul.f32 %v373, %v367
      %v375 = vadd.f32 %v374, 0.2548296
      %v376 = vmul.f32 %v375, %v367
      %v377 = vsub.f32 0.0, %v350
      %v378 = vmul.f32 %v377, %v350
      %v379 = vmul.f32 %v378, 1.442695
      %v380 = vpow.pop %v379
      %v381 = vmul.f32 %v376, %v380
      %v382 = vsub.f32 1.0, %v381
      %v383 = vmul.f32 %v349, %v382
      %v384 = vadd.f32 %v383, 1.0
      %v385 = vmul.f32 %v346, %v384
      %v386 = vld [vmem:[%s6] sm:$0x1]
      %v388 = vperm.slane %v386, 0
      %v390 = vadd.f32 %v274, %v388
      %v391 = vld [vmem:[%s5] sm:$0xff]
      %v392 = vld [vmem:[%s5 + $0x8] sm:$0xff]
      %v393 = vld [vmem:[%s5 + $0x10] sm:$0xff]
      %v394 = vld [vmem:[%s5 + $0x18] sm:$0xff]
      %v395 = vld [vmem:[%s5 + $0x20] sm:$0xff]
      %v396 = vld [vmem:[%s5 + $0x28] sm:$0xff]
      %v397 = vld [vmem:[%s5 + $0x30] sm:$0xff]
      %v398 = vld [vmem:[%s5 + $0x38] sm:$0xff]
      %vm399 = vcmask 523264
      %v401 = vsel %vm399, %v385, 0
      %403 = vmatpush.msra.mxu0 0.0
      %404 = vmatpush.msra.mxu0 0.0
      %405 = vmatpush.msra.mxu0 0.0
      %406 = vmatpush.msra.mxu0 0.0
      %407 = vmatpush.msra.mxu0 0.0
      %408 = vmatpush.msra.mxu0 0.0
      %409 = vmatpush.msra.mxu0 0.0
      %410 = vmatpush.msra.mxu0 0.0
      %411 = vmatpush.msra.mxu0 %v398
      %412 = vmatpush.msra.mxu0 %v397
      %413 = vmatpush.msra.mxu0 %v396
      %414 = vmatpush.msra.mxu0 %v395
      %415 = vmatpush.msra.mxu0 %v394
      %416 = vmatpush.msra.mxu0 %v393
      %417 = vmatpush.msra.mxu0 %v392
      %418 = vmatpush.msra.mxu0 %v391
      %419 = vmatmul.f32.gmra.mxu0 %v401
      %v420 = vpop.f32.mrf.mxu0
      %v421 = vadd.f32 0.0, %v420
      %422 = vdwg.mxu0
      %v423 = vadd.f32 %v390, %v421
      %424 = vst.msk [vmem:[%s273] sm:$0xff] %vm277, %v423
      %p425 = scmp.lt.s32.totalorder %s18, 1
      %s426 = scalar_select %p425, %s18, 1
      %s427 = smul.addr %s426, 8
      %s428 = scalar_lea.vmem %s7, %s427
      // Predicated region
      $region49: #{whisper_encoder_forward.16} parent=47 // pred_check
        %p429 = pneg %p188
      $region50: #{whisper_encoder_forward.16} parent=47 // pred_check_branch
        %431 = sbr.rel (%p429) target = $region52
      $region51: #{whisper_encoder_forward.16} parent=47 // pred_region
        _
      $region52: #{whisper_encoder_forward.16} parent=47 // pred_fallthru
        _
    $region48: #{whisper_encoder_forward.16} parent=5 // pred_fallthru
      _
    %p432 = scmp.le.s32.totalorder 2, %s13
    // Predicated region
    $region53: #{whisper_encoder_forward.16} parent=5 // pred_check
      %p433 = pneg %p432
    $region54: #{whisper_encoder_forward.16} parent=5 // pred_check_branch
      %435 = sbr.rel (%p433) target = $region56
    $region55: #{whisper_encoder_forward.16} parent=5 // pred_region
      %s436 = ssub.s32 %s13, 2
      // Predicated region
      $region57: #{whisper_encoder_forward.16} parent=55 // pred_check
        %p437 = pneg %p194
      $region58: #{whisper_encoder_forward.16} parent=55 // pred_check_branch
        %439 = sbr.rel (%p437) target = $region60
      $region59: #{whisper_encoder_forward.16} parent=55 // pred_region
        %p440 = scmp.lt.s32.totalorder %s19, 1
        %s441 = scalar_select %p440, %s19, 1
        %s442 = smul.addr %s441, 8
        %s443 = scalar_lea.vmem %s7, %s442
      $region60: #{whisper_encoder_forward.16} parent=55 // pred_fallthru
        _
    $region56: #{whisper_encoder_forward.16} parent=5 // pred_fallthru
      _
  $region6: #{whisper_encoder_forward.16} parent=0 // loop_footer
    %s17 = sadd.s32 1, %s13
  $region7: #{whisper_encoder_forward.16} parent=0 // loop_footer_branch
    %12 = sbr.rel target = $region3
  $region8: #{whisper_encoder_forward.16} parent=0 // loop_exit
    _

</llo_original>
